<compile_context>
chip_gen: v5e
topology: v5e:2x2
jax: 0.10.0
libtpu: 0.0.40
codegen_flags: <defaults>
</compile_context>

<pallas_src>
import jax
import jax.numpy as jnp
from jax.experimental import pallas as pl
from jax.experimental.pallas import tpu as pltpu

HIDDEN_SIZE = 128
INPUT_SIZE = 28
NUM_CLASSES = 10
NUM_LAYERS = 2      # kernel below is hard-wired to 2 layers
LANE = 128          # FC head padded to this many output columns (lane-dense store)
SUBLANES = 8        # f32 sublane granularity; batch is padded to a multiple of this


def _lstm_fc_kernel(x_ref,       # [T*BP, D]  bf16  (time-major, batch-padded)
                    wih0_ref,    # [D, 4H]    bf16
                    b0_ref,      # [1, 4H]    f32   (b_ih0 + b_hh0)
                    whh0_ref,    # [H, 4H]    bf16
                    wih1_ref,    # [H, 4H]    bf16
                    whh1_ref,    # [H, 4H]    bf16
                    b1_ref,      # [1, 4H]    f32   (b_ih1 + b_hh1)
                    wfc_ref,     # [H, LANE]  bf16  (first C cols real)
                    bfc_ref,     # [1, LANE]  f32
                    out_ref):    # [BP, LANE] f32
    TB = x_ref.shape[0]
    H = whh0_ref.shape[0]
    BP = out_ref.shape[0]
    T = TB // BP

    # ---- Hoisted layer-0 input projection: ONE MXU call for all T timesteps,
    # layer-0 bias folded in here (single broadcast add).
    xw0 = (jnp.dot(x_ref[...], wih0_ref[...], preferred_element_type=jnp.float32)
           + b0_ref[...])                                   # [T*BP, 4H] f32

    # Hoisted bias broadcast for layer 1 (JAX won't CSE it inside the loop).
    b1b = jnp.broadcast_to(b1_ref[...], (BP, 4 * H))        # [BP, 4H] f32

    def sigmoid(x):
        # exactly sigmoid, but a single tanh EUP op instead of exp + reciprocal
        return 0.5 * jnp.tanh(0.5 * x) + 0.5

    def gates_to_hc(gates, c_prev):
        i_g = sigmoid(gates[:, 0 * H:1 * H])
        f_g = sigmoid(gates[:, 1 * H:2 * H])
        g_g = jnp.tanh(gates[:, 2 * H:3 * H])
        o_g = sigmoid(gates[:, 3 * H:4 * H])
        c_new = f_g * c_prev + i_g * g_g
        h_new = o_g * jnp.tanh(c_new)
        return h_new, c_new

    c0 = c1 = jnp.zeros((BP, H), jnp.float32)
    h0_bf = h1_bf = jnp.zeros((BP, H), jnp.bfloat16)

    # Fully unrolled over the static T timesteps: 3 small matmuls per step,
    # ordered so the h1-recurrent matmul overlaps layer-0's work.
    # Weight tiles are re-read from VMEM each step on purpose (vreg pressure).
    for t in range(T):
        # Layer-1 recurrent half: only needs h1(t-1) -> issue before layer 0.
        g1_rec = jnp.dot(h1_bf, whh1_ref[...],
                         preferred_element_type=jnp.float32)

        # Layer 0: pre-projected input slice (sublane-aligned) + recurrent matmul.
        g0 = xw0[t * BP:(t + 1) * BP, :] + jnp.dot(
            h0_bf, whh0_ref[...], preferred_element_type=jnp.float32)
        h0, c0 = gates_to_hc(g0, c0)
        h0_bf = h0.astype(jnp.bfloat16)   # single bf16 pack, reused next step

        # Layer 1: input half + previously-issued recurrent half + bias.
        g1 = (g1_rec
              + jnp.dot(h0_bf, wih1_ref[...], preferred_element_type=jnp.float32)
              + b1b)
        h1, c1 = gates_to_hc(g1, c1)
        h1_bf = h1.astype(jnp.bfloat16)

    # fc(out[:, -1, :]) == fc(h1 at the last timestep); lane-dense padded store.
    out_ref[...] = (jnp.dot(h1_bf, wfc_ref[...],
                            preferred_element_type=jnp.float32)
                    + bfc_ref[...])


def rnn_forward(x, kparams):
    """x: [B, T, D] float32 (batch_first, like the PyTorch module)."""
    B, T, D = x.shape
    C = NUM_CLASSES
    BP = -(-B // SUBLANES) * SUBLANES                     # pad batch to 8 sublanes

    # Batch-pad, go time-major, flatten to [T*BP, D]; bf16 feed for the MXU.
    x_pad = jnp.zeros((BP, T, D), jnp.float32).at[:B].set(x)
    x2d = jnp.transpose(x_pad, (1, 0, 2)).reshape(T * BP, D).astype(jnp.bfloat16)

    kernel_args = (
        x2d,
        kparams["wih0"], kparams["b0"],
        kparams["whh0"], kparams["wih1"], kparams["whh1"], kparams["b1"],
        kparams["wfc"], kparams["bfc"],
    )

    vmem_spec = pl.BlockSpec(memory_space=pltpu.MemorySpace.VMEM)
    out = pl.pallas_call(
        _lstm_fc_kernel,
        out_shape=jax.ShapeDtypeStruct((BP, LANE), jnp.float32),
        in_specs=[vmem_spec] * len(kernel_args),
        out_specs=vmem_spec,
    )(*kernel_args)
    return out[:B, :C]


def init_params(key):
    """Deterministic init mimicking PyTorch LSTM/Linear uniform(-1/sqrt(H), 1/sqrt(H))."""
    H, D, C = HIDDEN_SIZE, INPUT_SIZE, NUM_CLASSES
    bound = 1.0 / jnp.sqrt(jnp.float32(H))
    keys = jax.random.split(key, 12)

    def u(k, shape):
        return jax.random.uniform(k, shape, jnp.float32, -bound, bound)

    # Layer 0 (input D -> hidden H); gate order i, f, g, o (PyTorch convention).
    wih0 = u(keys[0], (D, 4 * H))          # pre-transposed: x @ wih0
    whh0 = u(keys[1], (H, 4 * H))
    b0 = u(keys[2], (1, 4 * H)) + u(keys[3], (1, 4 * H))   # b_ih + b_hh

    # Layer 1 (hidden H -> hidden H).
    wih1 = u(keys[4], (H, 4 * H))
    whh1 = u(keys[5], (H, 4 * H))
    b1 = u(keys[6], (1, 4 * H)) + u(keys[7], (1, 4 * H))

    # Final fc (Linear(H, C)), pre-transposed.
    wfc = u(keys[8], (H, C))
    bfc = u(keys[9], (1, C))

    return dict(wih0=wih0, whh0=whh0, b0=b0,
                wih1=wih1, whh1=whh1, b1=b1,
                wfc=wfc, bfc=bfc)


def prepare_kernel_params(params):
    """One-time prep: bf16 weights (f32 biases), lane-padded fc head."""
    H, C = HIDDEN_SIZE, NUM_CLASSES
    wfc_pad = jnp.zeros((H, LANE), jnp.float32).at[:, :C].set(params["wfc"])
    bfc_pad = jnp.zeros((1, LANE), jnp.float32).at[:, :C].set(params["bfc"])
    return dict(
        wih0=params["wih0"].astype(jnp.bfloat16),
        b0=params["b0"],
        whh0=params["whh0"].astype(jnp.bfloat16),
        wih1=params["wih1"].astype(jnp.bfloat16),
        whh1=params["whh1"].astype(jnp.bfloat16),
        b1=params["b1"],
        wfc=wfc_pad.astype(jnp.bfloat16),
        bfc=bfc_pad,
    )


def rnn_reference(x, params):
    """Pure-f32 JAX reference of the PyTorch module (nn.LSTM 2-layer + fc)."""
    H = HIDDEN_SIZE
    B, T, _ = x.shape

    def gates_to_hc(g, c):
        i = jax.nn.sigmoid(g[:, :H])
        f = jax.nn.sigmoid(g[:, H:2 * H])
        gg = jnp.tanh(g[:, 2 * H:3 * H])
        o = jax.nn.sigmoid(g[:, 3 * H:])
        c = f * c + i * gg
        return o * jnp.tanh(c), c

    h0 = c0 = h1 = c1 = jnp.zeros((B, H), jnp.float32)
    for t in range(T):
        g0 = x[:, t, :] @ params["wih0"] + params["b0"] + h0 @ params["whh0"]
        h0, c0 = gates_to_hc(g0, c0)
        g1 = h0 @ params["wih1"] + h1 @ params["whh1"] + params["b1"]
        h1, c1 = gates_to_hc(g1, c1)
    return h1 @ params["wfc"] + params["bfc"]


if __name__ == "__main__":
    key = jax.random.PRNGKey(0)
    k_param, k_x = jax.random.split(key)

    B, T = 2, 8
    x = jax.random.normal(k_x, (B, T, INPUT_SIZE), jnp.float32)
    params = init_params(k_param)
    kparams = prepare_kernel_params(params)

    out = jax.block_until_ready(rnn_forward(x, kparams))
    ref = rnn_reference(x, params)   # full-f32 reference (not self-mirroring)

    assert out.shape == (B, NUM_CLASSES)
    # Tolerance covers the bf16 weight/input quantization vs. the f32 reference.
    assert jnp.allclose(out, ref, atol=2e-2, rtol=2e-2), \
        float(jnp.max(jnp.abs(out - ref)))
    print("KERNEL_OK")
</pallas_src>

<mosaic_0001>
module attributes {stable_mosaic.version = 11 : i64} {
  func.func @_lstm_fc_kernel(%arg0: memref<64x28xbf16, #tpu.memory_space<vmem>>, %arg1: memref<28x512xbf16, #tpu.memory_space<vmem>>, %arg2: memref<1x512xf32, #tpu.memory_space<vmem>>, %arg3: memref<128x512xbf16, #tpu.memory_space<vmem>>, %arg4: memref<128x512xbf16, #tpu.memory_space<vmem>>, %arg5: memref<128x512xbf16, #tpu.memory_space<vmem>>, %arg6: memref<1x512xf32, #tpu.memory_space<vmem>>, %arg7: memref<128x128xbf16, #tpu.memory_space<vmem>>, %arg8: memref<1x128xf32, #tpu.memory_space<vmem>>, %arg9: memref<8x128xf32, #tpu.memory_space<vmem>>) attributes {dimension_semantics = [], scalar_prefetch = 0 : i64, scratch_operands = 0 : i64, tpu.core_type = #tpu.core_type<tc>} {
    %c0 = arith.constant 0 : index
    %c0_0 = arith.constant 0 : index
    %0 = vector.load %arg0[%c0, %c0_0] : memref<64x28xbf16, #tpu.memory_space<vmem>>, vector<64x28xbf16>
    %c0_1 = arith.constant 0 : index
    %c0_2 = arith.constant 0 : index
    %1 = vector.load %arg1[%c0_1, %c0_2] : memref<28x512xbf16, #tpu.memory_space<vmem>>, vector<28x512xbf16>
    %cst = arith.constant dense<0.000000e+00> : vector<64x512xf32>
    %2 = tpu.matmul %0, %1, %cst {dimension_numbers = #tpu.dot_dimension_numbers<[1], [0], [0], [1], [0, 0, 1, 1], [], []>} : vector<64x28xbf16>, vector<28x512xbf16>, vector<64x512xf32> -> vector<64x512xf32>
    %c0_3 = arith.constant 0 : index
    %c0_4 = arith.constant 0 : index
    %3 = vector.load %arg2[%c0_3, %c0_4] : memref<1x512xf32, #tpu.memory_space<vmem>>, vector<1x512xf32>
    %4 = vector.broadcast %3 : vector<1x512xf32> to vector<64x512xf32>
    %5 = arith.addf %2, %4 : vector<64x512xf32>
    %c0_5 = arith.constant 0 : index
    %c0_6 = arith.constant 0 : index
    %6 = vector.load %arg6[%c0_5, %c0_6] : memref<1x512xf32, #tpu.memory_space<vmem>>, vector<1x512xf32>
    %7 = vector.shape_cast %6 : vector<1x512xf32> to vector<1x512xf32>
    %8 = vector.broadcast %7 : vector<1x512xf32> to vector<8x512xf32>
    %cst_7 = arith.constant 0.000000e+00 : f32
    %9 = vector.broadcast %cst_7 : f32 to vector<8x128xf32>
    %cst_8 = arith.constant 0.000000e+00 : bf16
    %10 = vector.broadcast %cst_8 : bf16 to vector<8x128xbf16>
    %c0_9 = arith.constant 0 : index
    %c0_10 = arith.constant 0 : index
    %11 = vector.load %arg5[%c0_9, %c0_10] : memref<128x512xbf16, #tpu.memory_space<vmem>>, vector<128x512xbf16>
    %cst_11 = arith.constant dense<0.000000e+00> : vector<8x512xf32>
    %12 = tpu.matmul %10, %11, %cst_11 {dimension_numbers = #tpu.dot_dimension_numbers<[1], [0], [0], [1], [0, 0, 1, 1], [], []>} : vector<8x128xbf16>, vector<128x512xbf16>, vector<8x512xf32> -> vector<8x512xf32>
    %13 = vector.extract_strided_slice %5 {offsets = [0, 0], sizes = [8, 512], strides = [1, 1]} : vector<64x512xf32> to vector<8x512xf32>
    %c0_12 = arith.constant 0 : index
    %c0_13 = arith.constant 0 : index
    %14 = vector.load %arg3[%c0_12, %c0_13] : memref<128x512xbf16, #tpu.memory_space<vmem>>, vector<128x512xbf16>
    %cst_14 = arith.constant dense<0.000000e+00> : vector<8x512xf32>
    %15 = tpu.matmul %10, %14, %cst_14 {dimension_numbers = #tpu.dot_dimension_numbers<[1], [0], [0], [1], [0, 0, 1, 1], [], []>} : vector<8x128xbf16>, vector<128x512xbf16>, vector<8x512xf32> -> vector<8x512xf32>
    %16 = arith.addf %13, %15 : vector<8x512xf32>
    %17 = vector.extract_strided_slice %16 {offsets = [0, 0], sizes = [8, 128], strides = [1, 1]} : vector<8x512xf32> to vector<8x128xf32>
    %cst_15 = arith.constant 5.000000e-01 : f32
    %18 = vector.broadcast %cst_15 : f32 to vector<8x128xf32>
    %19 = arith.mulf %18, %17 : vector<8x128xf32>
    %20 = math.tanh %19 : vector<8x128xf32>
    %cst_16 = arith.constant 5.000000e-01 : f32
    %21 = vector.broadcast %cst_16 : f32 to vector<8x128xf32>
    %22 = arith.mulf %21, %20 : vector<8x128xf32>
    %cst_17 = arith.constant 5.000000e-01 : f32
    %23 = vector.broadcast %cst_17 : f32 to vector<8x128xf32>
    %24 = arith.addf %22, %23 : vector<8x128xf32>
    %25 = vector.extract_strided_slice %16 {offsets = [0, 128], sizes = [8, 128], strides = [1, 1]} : vector<8x512xf32> to vector<8x128xf32>
    %cst_18 = arith.constant 5.000000e-01 : f32
    %26 = vector.broadcast %cst_18 : f32 to vector<8x128xf32>
    %27 = arith.mulf %26, %25 : vector<8x128xf32>
    %28 = math.tanh %27 : vector<8x128xf32>
    %cst_19 = arith.constant 5.000000e-01 : f32
    %29 = vector.broadcast %cst_19 : f32 to vector<8x128xf32>
    %30 = arith.mulf %29, %28 : vector<8x128xf32>
    %cst_20 = arith.constant 5.000000e-01 : f32
    %31 = vector.broadcast %cst_20 : f32 to vector<8x128xf32>
    %32 = arith.addf %30, %31 : vector<8x128xf32>
    %33 = vector.extract_strided_slice %16 {offsets = [0, 256], sizes = [8, 128], strides = [1, 1]} : vector<8x512xf32> to vector<8x128xf32>
    %34 = math.tanh %33 : vector<8x128xf32>
    %35 = vector.extract_strided_slice %16 {offsets = [0, 384], sizes = [8, 128], strides = [1, 1]} : vector<8x512xf32> to vector<8x128xf32>
    %cst_21 = arith.constant 5.000000e-01 : f32
    %36 = vector.broadcast %cst_21 : f32 to vector<8x128xf32>
    %37 = arith.mulf %36, %35 : vector<8x128xf32>
    %38 = math.tanh %37 : vector<8x128xf32>
    %cst_22 = arith.constant 5.000000e-01 : f32
    %39 = vector.broadcast %cst_22 : f32 to vector<8x128xf32>
    %40 = arith.mulf %39, %38 : vector<8x128xf32>
    %cst_23 = arith.constant 5.000000e-01 : f32
    %41 = vector.broadcast %cst_23 : f32 to vector<8x128xf32>
    %42 = arith.addf %40, %41 : vector<8x128xf32>
    %43 = arith.mulf %32, %9 : vector<8x128xf32>
    %44 = arith.mulf %24, %34 : vector<8x128xf32>
    %45 = arith.addf %43, %44 : vector<8x128xf32>
    %46 = math.tanh %45 : vector<8x128xf32>
    %47 = arith.mulf %42, %46 : vector<8x128xf32>
    %48 = arith.truncf %47 : vector<8x128xf32> to vector<8x128xbf16>
    %c0_24 = arith.constant 0 : index
    %c0_25 = arith.constant 0 : index
    %49 = vector.load %arg4[%c0_24, %c0_25] : memref<128x512xbf16, #tpu.memory_space<vmem>>, vector<128x512xbf16>
    %cst_26 = arith.constant dense<0.000000e+00> : vector<8x512xf32>
    %50 = tpu.matmul %48, %49, %cst_26 {dimension_numbers = #tpu.dot_dimension_numbers<[1], [0], [0], [1], [0, 0, 1, 1], [], []>} : vector<8x128xbf16>, vector<128x512xbf16>, vector<8x512xf32> -> vector<8x512xf32>
    %51 = arith.addf %12, %50 : vector<8x512xf32>
    %52 = arith.addf %51, %8 : vector<8x512xf32>
    %53 = vector.extract_strided_slice %52 {offsets = [0, 0], sizes = [8, 128], strides = [1, 1]} : vector<8x512xf32> to vector<8x128xf32>
    %cst_27 = arith.constant 5.000000e-01 : f32
    %54 = vector.broadcast %cst_27 : f32 to vector<8x128xf32>
    %55 = arith.mulf %54, %53 : vector<8x128xf32>
    %56 = math.tanh %55 : vector<8x128xf32>
    %cst_28 = arith.constant 5.000000e-01 : f32
    %57 = vector.broadcast %cst_28 : f32 to vector<8x128xf32>
    %58 = arith.mulf %57, %56 : vector<8x128xf32>
    %cst_29 = arith.constant 5.000000e-01 : f32
    %59 = vector.broadcast %cst_29 : f32 to vector<8x128xf32>
    %60 = arith.addf %58, %59 : vector<8x128xf32>
    %61 = vector.extract_strided_slice %52 {offsets = [0, 128], sizes = [8, 128], strides = [1, 1]} : vector<8x512xf32> to vector<8x128xf32>
    %cst_30 = arith.constant 5.000000e-01 : f32
    %62 = vector.broadcast %cst_30 : f32 to vector<8x128xf32>
    %63 = arith.mulf %62, %61 : vector<8x128xf32>
    %64 = math.tanh %63 : vector<8x128xf32>
    %cst_31 = arith.constant 5.000000e-01 : f32
    %65 = vector.broadcast %cst_31 : f32 to vector<8x128xf32>
    %66 = arith.mulf %65, %64 : vector<8x128xf32>
    %cst_32 = arith.constant 5.000000e-01 : f32
    %67 = vector.broadcast %cst_32 : f32 to vector<8x128xf32>
    %68 = arith.addf %66, %67 : vector<8x128xf32>
    %69 = vector.extract_strided_slice %52 {offsets = [0, 256], sizes = [8, 128], strides = [1, 1]} : vector<8x512xf32> to vector<8x128xf32>
    %70 = math.tanh %69 : vector<8x128xf32>
    %71 = vector.extract_strided_slice %52 {offsets = [0, 384], sizes = [8, 128], strides = [1, 1]} : vector<8x512xf32> to vector<8x128xf32>
    %cst_33 = arith.constant 5.000000e-01 : f32
    %72 = vector.broadcast %cst_33 : f32 to vector<8x128xf32>
    %73 = arith.mulf %72, %71 : vector<8x128xf32>
    %74 = math.tanh %73 : vector<8x128xf32>
    %cst_34 = arith.constant 5.000000e-01 : f32
    %75 = vector.broadcast %cst_34 : f32 to vector<8x128xf32>
    %76 = arith.mulf %75, %74 : vector<8x128xf32>
    %cst_35 = arith.constant 5.000000e-01 : f32
    %77 = vector.broadcast %cst_35 : f32 to vector<8x128xf32>
    %78 = arith.addf %76, %77 : vector<8x128xf32>
    %79 = arith.mulf %68, %9 : vector<8x128xf32>
    %80 = arith.mulf %60, %70 : vector<8x128xf32>
    %81 = arith.addf %79, %80 : vector<8x128xf32>
    %82 = math.tanh %81 : vector<8x128xf32>
    %83 = arith.mulf %78, %82 : vector<8x128xf32>
    %84 = arith.truncf %83 : vector<8x128xf32> to vector<8x128xbf16>
    %c0_36 = arith.constant 0 : index
    %c0_37 = arith.constant 0 : index
    %85 = vector.load %arg5[%c0_36, %c0_37] : memref<128x512xbf16, #tpu.memory_space<vmem>>, vector<128x512xbf16>
    %cst_38 = arith.constant dense<0.000000e+00> : vector<8x512xf32>
    %86 = tpu.matmul %84, %85, %cst_38 {dimension_numbers = #tpu.dot_dimension_numbers<[1], [0], [0], [1], [0, 0, 1, 1], [], []>} : vector<8x128xbf16>, vector<128x512xbf16>, vector<8x512xf32> -> vector<8x512xf32>
    %87 = vector.extract_strided_slice %5 {offsets = [8, 0], sizes = [8, 512], strides = [1, 1]} : vector<64x512xf32> to vector<8x512xf32>
    %c0_39 = arith.constant 0 : index
    %c0_40 = arith.constant 0 : index
    %88 = vector.load %arg3[%c0_39, %c0_40] : memref<128x512xbf16, #tpu.memory_space<vmem>>, vector<128x512xbf16>
    %cst_41 = arith.constant dense<0.000000e+00> : vector<8x512xf32>
    %89 = tpu.matmul %48, %88, %cst_41 {dimension_numbers = #tpu.dot_dimension_numbers<[1], [0], [0], [1], [0, 0, 1, 1], [], []>} : vector<8x128xbf16>, vector<128x512xbf16>, vector<8x512xf32> -> vector<8x512xf32>
    %90 = arith.addf %87, %89 : vector<8x512xf32>
    %91 = vector.extract_strided_slice %90 {offsets = [0, 0], sizes = [8, 128], strides = [1, 1]} : vector<8x512xf32> to vector<8x128xf32>
    %cst_42 = arith.constant 5.000000e-01 : f32
    %92 = vector.broadcast %cst_42 : f32 to vector<8x128xf32>
    %93 = arith.mulf %92, %91 : vector<8x128xf32>
    %94 = math.tanh %93 : vector<8x128xf32>
    %cst_43 = arith.constant 5.000000e-01 : f32
    %95 = vector.broadcast %cst_43 : f32 to vector<8x128xf32>
    %96 = arith.mulf %95, %94 : vector<8x128xf32>
    %cst_44 = arith.constant 5.000000e-01 : f32
    %97 = vector.broadcast %cst_44 : f32 to vector<8x128xf32>
    %98 = arith.addf %96, %97 : vector<8x128xf32>
    %99 = vector.extract_strided_slice %90 {offsets = [0, 128], sizes = [8, 128], strides = [1, 1]} : vector<8x512xf32> to vector<8x128xf32>
    %cst_45 = arith.constant 5.000000e-01 : f32
    %100 = vector.broadcast %cst_45 : f32 to vector<8x128xf32>
    %101 = arith.mulf %100, %99 : vector<8x128xf32>
    %102 = math.tanh %101 : vector<8x128xf32>
    %cst_46 = arith.constant 5.000000e-01 : f32
    %103 = vector.broadcast %cst_46 : f32 to vector<8x128xf32>
    %104 = arith.mulf %103, %102 : vector<8x128xf32>
    %cst_47 = arith.constant 5.000000e-01 : f32
    %105 = vector.broadcast %cst_47 : f32 to vector<8x128xf32>
    %106 = arith.addf %104, %105 : vector<8x128xf32>
    %107 = vector.extract_strided_slice %90 {offsets = [0, 256], sizes = [8, 128], strides = [1, 1]} : vector<8x512xf32> to vector<8x128xf32>
    %108 = math.tanh %107 : vector<8x128xf32>
    %109 = vector.extract_strided_slice %90 {offsets = [0, 384], sizes = [8, 128], strides = [1, 1]} : vector<8x512xf32> to vector<8x128xf32>
    %cst_48 = arith.constant 5.000000e-01 : f32
    %110 = vector.broadcast %cst_48 : f32 to vector<8x128xf32>
    %111 = arith.mulf %110, %109 : vector<8x128xf32>
    %112 = math.tanh %111 : vector<8x128xf32>
    %cst_49 = arith.constant 5.000000e-01 : f32
    %113 = vector.broadcast %cst_49 : f32 to vector<8x128xf32>
    %114 = arith.mulf %113, %112 : vector<8x128xf32>
    %cst_50 = arith.constant 5.000000e-01 : f32
    %115 = vector.broadcast %cst_50 : f32 to vector<8x128xf32>
    %116 = arith.addf %114, %115 : vector<8x128xf32>
    %117 = arith.mulf %106, %45 : vector<8x128xf32>
    %118 = arith.mulf %98, %108 : vector<8x128xf32>
    %119 = arith.addf %117, %118 : vector<8x128xf32>
    %120 = math.tanh %119 : vector<8x128xf32>
    %121 = arith.mulf %116, %120 : vector<8x128xf32>
    %122 = arith.truncf %121 : vector<8x128xf32> to vector<8x128xbf16>
    %c0_51 = arith.constant 0 : index
    %c0_52 = arith.constant 0 : index
    %123 = vector.load %arg4[%c0_51, %c0_52] : memref<128x512xbf16, #tpu.memory_space<vmem>>, vector<128x512xbf16>
    %cst_53 = arith.constant dense<0.000000e+00> : vector<8x512xf32>
    %124 = tpu.matmul %122, %123, %cst_53 {dimension_numbers = #tpu.dot_dimension_numbers<[1], [0], [0], [1], [0, 0, 1, 1], [], []>} : vector<8x128xbf16>, vector<128x512xbf16>, vector<8x512xf32> -> vector<8x512xf32>
    %125 = arith.addf %86, %124 : vector<8x512xf32>
    %126 = arith.addf %125, %8 : vector<8x512xf32>
    %127 = vector.extract_strided_slice %126 {offsets = [0, 0], sizes = [8, 128], strides = [1, 1]} : vector<8x512xf32> to vector<8x128xf32>
    %cst_54 = arith.constant 5.000000e-01 : f32
    %128 = vector.broadcast %cst_54 : f32 to vector<8x128xf32>
    %129 = arith.mulf %128, %127 : vector<8x128xf32>
    %130 = math.tanh %129 : vector<8x128xf32>
    %cst_55 = arith.constant 5.000000e-01 : f32
    %131 = vector.broadcast %cst_55 : f32 to vector<8x128xf32>
    %132 = arith.mulf %131, %130 : vector<8x128xf32>
    %cst_56 = arith.constant 5.000000e-01 : f32
    %133 = vector.broadcast %cst_56 : f32 to vector<8x128xf32>
    %134 = arith.addf %132, %133 : vector<8x128xf32>
    %135 = vector.extract_strided_slice %126 {offsets = [0, 128], sizes = [8, 128], strides = [1, 1]} : vector<8x512xf32> to vector<8x128xf32>
    %cst_57 = arith.constant 5.000000e-01 : f32
    %136 = vector.broadcast %cst_57 : f32 to vector<8x128xf32>
    %137 = arith.mulf %136, %135 : vector<8x128xf32>
    %138 = math.tanh %137 : vector<8x128xf32>
    %cst_58 = arith.constant 5.000000e-01 : f32
    %139 = vector.broadcast %cst_58 : f32 to vector<8x128xf32>
    %140 = arith.mulf %139, %138 : vector<8x128xf32>
    %cst_59 = arith.constant 5.000000e-01 : f32
    %141 = vector.broadcast %cst_59 : f32 to vector<8x128xf32>
    %142 = arith.addf %140, %141 : vector<8x128xf32>
    %143 = vector.extract_strided_slice %126 {offsets = [0, 256], sizes = [8, 128], strides = [1, 1]} : vector<8x512xf32> to vector<8x128xf32>
    %144 = math.tanh %143 : vector<8x128xf32>
    %145 = vector.extract_strided_slice %126 {offsets = [0, 384], sizes = [8, 128], strides = [1, 1]} : vector<8x512xf32> to vector<8x128xf32>
    %cst_60 = arith.constant 5.000000e-01 : f32
    %146 = vector.broadcast %cst_60 : f32 to vector<8x128xf32>
    %147 = arith.mulf %146, %145 : vector<8x128xf32>
    %148 = math.tanh %147 : vector<8x128xf32>
    %cst_61 = arith.constant 5.000000e-01 : f32
    %149 = vector.broadcast %cst_61 : f32 to vector<8x128xf32>
    %150 = arith.mulf %149, %148 : vector<8x128xf32>
    %cst_62 = arith.constant 5.000000e-01 : f32
    %151 = vector.broadcast %cst_62 : f32 to vector<8x128xf32>
    %152 = arith.addf %150, %151 : vector<8x128xf32>
    %153 = arith.mulf %142, %81 : vector<8x128xf32>
    %154 = arith.mulf %134, %144 : vector<8x128xf32>
    %155 = arith.addf %153, %154 : vector<8x128xf32>
    %156 = math.tanh %155 : vector<8x128xf32>
    %157 = arith.mulf %152, %156 : vector<8x128xf32>
    %158 = arith.truncf %157 : vector<8x128xf32> to vector<8x128xbf16>
    %c0_63 = arith.constant 0 : index
    %c0_64 = arith.constant 0 : index
    %159 = vector.load %arg5[%c0_63, %c0_64] : memref<128x512xbf16, #tpu.memory_space<vmem>>, vector<128x512xbf16>
    %cst_65 = arith.constant dense<0.000000e+00> : vector<8x512xf32>
    %160 = tpu.matmul %158, %159, %cst_65 {dimension_numbers = #tpu.dot_dimension_numbers<[1], [0], [0], [1], [0, 0, 1, 1], [], []>} : vector<8x128xbf16>, vector<128x512xbf16>, vector<8x512xf32> -> vector<8x512xf32>
    %161 = vector.extract_strided_slice %5 {offsets = [16, 0], sizes = [8, 512], strides = [1, 1]} : vector<64x512xf32> to vector<8x512xf32>
    %c0_66 = arith.constant 0 : index
    %c0_67 = arith.constant 0 : index
    %162 = vector.load %arg3[%c0_66, %c0_67] : memref<128x512xbf16, #tpu.memory_space<vmem>>, vector<128x512xbf16>
    %cst_68 = arith.constant dense<0.000000e+00> : vector<8x512xf32>
    %163 = tpu.matmul %122, %162, %cst_68 {dimension_numbers = #tpu.dot_dimension_numbers<[1], [0], [0], [1], [0, 0, 1, 1], [], []>} : vector<8x128xbf16>, vector<128x512xbf16>, vector<8x512xf32> -> vector<8x512xf32>
    %164 = arith.addf %161, %163 : vector<8x512xf32>
    %165 = vector.extract_strided_slice %164 {offsets = [0, 0], sizes = [8, 128], strides = [1, 1]} : vector<8x512xf32> to vector<8x128xf32>
    %cst_69 = arith.constant 5.000000e-01 : f32
    %166 = vector.broadcast %cst_69 : f32 to vector<8x128xf32>
    %167 = arith.mulf %166, %165 : vector<8x128xf32>
    %168 = math.tanh %167 : vector<8x128xf32>
    %cst_70 = arith.constant 5.000000e-01 : f32
    %169 = vector.broadcast %cst_70 : f32 to vector<8x128xf32>
    %170 = arith.mulf %169, %168 : vector<8x128xf32>
    %cst_71 = arith.constant 5.000000e-01 : f32
    %171 = vector.broadcast %cst_71 : f32 to vector<8x128xf32>
    %172 = arith.addf %170, %171 : vector<8x128xf32>
    %173 = vector.extract_strided_slice %164 {offsets = [0, 128], sizes = [8, 128], strides = [1, 1]} : vector<8x512xf32> to vector<8x128xf32>
    %cst_72 = arith.constant 5.000000e-01 : f32
    %174 = vector.broadcast %cst_72 : f32 to vector<8x128xf32>
    %175 = arith.mulf %174, %173 : vector<8x128xf32>
    %176 = math.tanh %175 : vector<8x128xf32>
    %cst_73 = arith.constant 5.000000e-01 : f32
    %177 = vector.broadcast %cst_73 : f32 to vector<8x128xf32>
    %178 = arith.mulf %177, %176 : vector<8x128xf32>
    %cst_74 = arith.constant 5.000000e-01 : f32
    %179 = vector.broadcast %cst_74 : f32 to vector<8x128xf32>
    %180 = arith.addf %178, %179 : vector<8x128xf32>
    %181 = vector.extract_strided_slice %164 {offsets = [0, 256], sizes = [8, 128], strides = [1, 1]} : vector<8x512xf32> to vector<8x128xf32>
    %182 = math.tanh %181 : vector<8x128xf32>
    %183 = vector.extract_strided_slice %164 {offsets = [0, 384], sizes = [8, 128], strides = [1, 1]} : vector<8x512xf32> to vector<8x128xf32>
    %cst_75 = arith.constant 5.000000e-01 : f32
    %184 = vector.broadcast %cst_75 : f32 to vector<8x128xf32>
    %185 = arith.mulf %184, %183 : vector<8x128xf32>
    %186 = math.tanh %185 : vector<8x128xf32>
    %cst_76 = arith.constant 5.000000e-01 : f32
    %187 = vector.broadcast %cst_76 : f32 to vector<8x128xf32>
    %188 = arith.mulf %187, %186 : vector<8x128xf32>
    %cst_77 = arith.constant 5.000000e-01 : f32
    %189 = vector.broadcast %cst_77 : f32 to vector<8x128xf32>
    %190 = arith.addf %188, %189 : vector<8x128xf32>
    %191 = arith.mulf %180, %119 : vector<8x128xf32>
    %192 = arith.mulf %172, %182 : vector<8x128xf32>
    %193 = arith.addf %191, %192 : vector<8x128xf32>
    %194 = math.tanh %193 : vector<8x128xf32>
    %195 = arith.mulf %190, %194 : vector<8x128xf32>
    %196 = arith.truncf %195 : vector<8x128xf32> to vector<8x128xbf16>
    %c0_78 = arith.constant 0 : index
    %c0_79 = arith.constant 0 : index
    %197 = vector.load %arg4[%c0_78, %c0_79] : memref<128x512xbf16, #tpu.memory_space<vmem>>, vector<128x512xbf16>
    %cst_80 = arith.constant dense<0.000000e+00> : vector<8x512xf32>
    %198 = tpu.matmul %196, %197, %cst_80 {dimension_numbers = #tpu.dot_dimension_numbers<[1], [0], [0], [1], [0, 0, 1, 1], [], []>} : vector<8x128xbf16>, vector<128x512xbf16>, vector<8x512xf32> -> vector<8x512xf32>
    %199 = arith.addf %160, %198 : vector<8x512xf32>
    %200 = arith.addf %199, %8 : vector<8x512xf32>
    %201 = vector.extract_strided_slice %200 {offsets = [0, 0], sizes = [8, 128], strides = [1, 1]} : vector<8x512xf32> to vector<8x128xf32>
    %cst_81 = arith.constant 5.000000e-01 : f32
    %202 = vector.broadcast %cst_81 : f32 to vector<8x128xf32>
    %203 = arith.mulf %202, %201 : vector<8x128xf32>
    %204 = math.tanh %203 : vector<8x128xf32>
    %cst_82 = arith.constant 5.000000e-01 : f32
    %205 = vector.broadcast %cst_82 : f32 to vector<8x128xf32>
    %206 = arith.mulf %205, %204 : vector<8x128xf32>
    %cst_83 = arith.constant 5.000000e-01 : f32
    %207 = vector.broadcast %cst_83 : f32 to vector<8x128xf32>
    %208 = arith.addf %206, %207 : vector<8x128xf32>
    %209 = vector.extract_strided_slice %200 {offsets = [0, 128], sizes = [8, 128], strides = [1, 1]} : vector<8x512xf32> to vector<8x128xf32>
    %cst_84 = arith.constant 5.000000e-01 : f32
    %210 = vector.broadcast %cst_84 : f32 to vector<8x128xf32>
    %211 = arith.mulf %210, %209 : vector<8x128xf32>
    %212 = math.tanh %211 : vector<8x128xf32>
    %cst_85 = arith.constant 5.000000e-01 : f32
    %213 = vector.broadcast %cst_85 : f32 to vector<8x128xf32>
    %214 = arith.mulf %213, %212 : vector<8x128xf32>
    %cst_86 = arith.constant 5.000000e-01 : f32
    %215 = vector.broadcast %cst_86 : f32 to vector<8x128xf32>
    %216 = arith.addf %214, %215 : vector<8x128xf32>
    %217 = vector.extract_strided_slice %200 {offsets = [0, 256], sizes = [8, 128], strides = [1, 1]} : vector<8x512xf32> to vector<8x128xf32>
    %218 = math.tanh %217 : vector<8x128xf32>
    %219 = vector.extract_strided_slice %200 {offsets = [0, 384], sizes = [8, 128], strides = [1, 1]} : vector<8x512xf32> to vector<8x128xf32>
    %cst_87 = arith.constant 5.000000e-01 : f32
    %220 = vector.broadcast %cst_87 : f32 to vector<8x128xf32>
    %221 = arith.mulf %220, %219 : vector<8x128xf32>
    %222 = math.tanh %221 : vector<8x128xf32>
    %cst_88 = arith.constant 5.000000e-01 : f32
    %223 = vector.broadcast %cst_88 : f32 to vector<8x128xf32>
    %224 = arith.mulf %223, %222 : vector<8x128xf32>
    %cst_89 = arith.constant 5.000000e-01 : f32
    %225 = vector.broadcast %cst_89 : f32 to vector<8x128xf32>
    %226 = arith.addf %224, %225 : vector<8x128xf32>
    %227 = arith.mulf %216, %155 : vector<8x128xf32>
    %228 = arith.mulf %208, %218 : vector<8x128xf32>
    %229 = arith.addf %227, %228 : vector<8x128xf32>
    %230 = math.tanh %229 : vector<8x128xf32>
    %231 = arith.mulf %226, %230 : vector<8x128xf32>
    %232 = arith.truncf %231 : vector<8x128xf32> to vector<8x128xbf16>
    %c0_90 = arith.constant 0 : index
    %c0_91 = arith.constant 0 : index
    %233 = vector.load %arg5[%c0_90, %c0_91] : memref<128x512xbf16, #tpu.memory_space<vmem>>, vector<128x512xbf16>
    %cst_92 = arith.constant dense<0.000000e+00> : vector<8x512xf32>
    %234 = tpu.matmul %232, %233, %cst_92 {dimension_numbers = #tpu.dot_dimension_numbers<[1], [0], [0], [1], [0, 0, 1, 1], [], []>} : vector<8x128xbf16>, vector<128x512xbf16>, vector<8x512xf32> -> vector<8x512xf32>
    %235 = vector.extract_strided_slice %5 {offsets = [24, 0], sizes = [8, 512], strides = [1, 1]} : vector<64x512xf32> to vector<8x512xf32>
    %c0_93 = arith.constant 0 : index
    %c0_94 = arith.constant 0 : index
    %236 = vector.load %arg3[%c0_93, %c0_94] : memref<128x512xbf16, #tpu.memory_space<vmem>>, vector<128x512xbf16>
    %cst_95 = arith.constant dense<0.000000e+00> : vector<8x512xf32>
    %237 = tpu.matmul %196, %236, %cst_95 {dimension_numbers = #tpu.dot_dimension_numbers<[1], [0], [0], [1], [0, 0, 1, 1], [], []>} : vector<8x128xbf16>, vector<128x512xbf16>, vector<8x512xf32> -> vector<8x512xf32>
    %238 = arith.addf %235, %237 : vector<8x512xf32>
    %239 = vector.extract_strided_slice %238 {offsets = [0, 0], sizes = [8, 128], strides = [1, 1]} : vector<8x512xf32> to vector<8x128xf32>
    %cst_96 = arith.constant 5.000000e-01 : f32
    %240 = vector.broadcast %cst_96 : f32 to vector<8x128xf32>
    %241 = arith.mulf %240, %239 : vector<8x128xf32>
    %242 = math.tanh %241 : vector<8x128xf32>
    %cst_97 = arith.constant 5.000000e-01 : f32
    %243 = vector.broadcast %cst_97 : f32 to vector<8x128xf32>
    %244 = arith.mulf %243, %242 : vector<8x128xf32>
    %cst_98 = arith.constant 5.000000e-01 : f32
    %245 = vector.broadcast %cst_98 : f32 to vector<8x128xf32>
    %246 = arith.addf %244, %245 : vector<8x128xf32>
    %247 = vector.extract_strided_slice %238 {offsets = [0, 128], sizes = [8, 128], strides = [1, 1]} : vector<8x512xf32> to vector<8x128xf32>
    %cst_99 = arith.constant 5.000000e-01 : f32
    %248 = vector.broadcast %cst_99 : f32 to vector<8x128xf32>
    %249 = arith.mulf %248, %247 : vector<8x128xf32>
    %250 = math.tanh %249 : vector<8x128xf32>
    %cst_100 = arith.constant 5.000000e-01 : f32
    %251 = vector.broadcast %cst_100 : f32 to vector<8x128xf32>
    %252 = arith.mulf %251, %250 : vector<8x128xf32>
    %cst_101 = arith.constant 5.000000e-01 : f32
    %253 = vector.broadcast %cst_101 : f32 to vector<8x128xf32>
    %254 = arith.addf %252, %253 : vector<8x128xf32>
    %255 = vector.extract_strided_slice %238 {offsets = [0, 256], sizes = [8, 128], strides = [1, 1]} : vector<8x512xf32> to vector<8x128xf32>
    %256 = math.tanh %255 : vector<8x128xf32>
    %257 = vector.extract_strided_slice %238 {offsets = [0, 384], sizes = [8, 128], strides = [1, 1]} : vector<8x512xf32> to vector<8x128xf32>
    %cst_102 = arith.constant 5.000000e-01 : f32
    %258 = vector.broadcast %cst_102 : f32 to vector<8x128xf32>
    %259 = arith.mulf %258, %257 : vector<8x128xf32>
    %260 = math.tanh %259 : vector<8x128xf32>
    %cst_103 = arith.constant 5.000000e-01 : f32
    %261 = vector.broadcast %cst_103 : f32 to vector<8x128xf32>
    %262 = arith.mulf %261, %260 : vector<8x128xf32>
    %cst_104 = arith.constant 5.000000e-01 : f32
    %263 = vector.broadcast %cst_104 : f32 to vector<8x128xf32>
    %264 = arith.addf %262, %263 : vector<8x128xf32>
    %265 = arith.mulf %254, %193 : vector<8x128xf32>
    %266 = arith.mulf %246, %256 : vector<8x128xf32>
    %267 = arith.addf %265, %266 : vector<8x128xf32>
    %268 = math.tanh %267 : vector<8x128xf32>
    %269 = arith.mulf %264, %268 : vector<8x128xf32>
    %270 = arith.truncf %269 : vector<8x128xf32> to vector<8x128xbf16>
    %c0_105 = arith.constant 0 : index
    %c0_106 = arith.constant 0 : index
    %271 = vector.load %arg4[%c0_105, %c0_106] : memref<128x512xbf16, #tpu.memory_space<vmem>>, vector<128x512xbf16>
    %cst_107 = arith.constant dense<0.000000e+00> : vector<8x512xf32>
    %272 = tpu.matmul %270, %271, %cst_107 {dimension_numbers = #tpu.dot_dimension_numbers<[1], [0], [0], [1], [0, 0, 1, 1], [], []>} : vector<8x128xbf16>, vector<128x512xbf16>, vector<8x512xf32> -> vector<8x512xf32>
    %273 = arith.addf %234, %272 : vector<8x512xf32>
    %274 = arith.addf %273, %8 : vector<8x512xf32>
    %275 = vector.extract_strided_slice %274 {offsets = [0, 0], sizes = [8, 128], strides = [1, 1]} : vector<8x512xf32> to vector<8x128xf32>
    %cst_108 = arith.constant 5.000000e-01 : f32
    %276 = vector.broadcast %cst_108 : f32 to vector<8x128xf32>
    %277 = arith.mulf %276, %275 : vector<8x128xf32>
    %278 = math.tanh %277 : vector<8x128xf32>
    %cst_109 = arith.constant 5.000000e-01 : f32
    %279 = vector.broadcast %cst_109 : f32 to vector<8x128xf32>
    %280 = arith.mulf %279, %278 : vector<8x128xf32>
    %cst_110 = arith.constant 5.000000e-01 : f32
    %281 = vector.broadcast %cst_110 : f32 to vector<8x128xf32>
    %282 = arith.addf %280, %281 : vector<8x128xf32>
    %283 = vector.extract_strided_slice %274 {offsets = [0, 128], sizes = [8, 128], strides = [1, 1]} : vector<8x512xf32> to vector<8x128xf32>
    %cst_111 = arith.constant 5.000000e-01 : f32
    %284 = vector.broadcast %cst_111 : f32 to vector<8x128xf32>
    %285 = arith.mulf %284, %283 : vector<8x128xf32>
    %286 = math.tanh %285 : vector<8x128xf32>
    %cst_112 = arith.constant 5.000000e-01 : f32
    %287 = vector.broadcast %cst_112 : f32 to vector<8x128xf32>
    %288 = arith.mulf %287, %286 : vector<8x128xf32>
    %cst_113 = arith.constant 5.000000e-01 : f32
    %289 = vector.broadcast %cst_113 : f32 to vector<8x128xf32>
    %290 = arith.addf %288, %289 : vector<8x128xf32>
    %291 = vector.extract_strided_slice %274 {offsets = [0, 256], sizes = [8, 128], strides = [1, 1]} : vector<8x512xf32> to vector<8x128xf32>
    %292 = math.tanh %291 : vector<8x128xf32>
    %293 = vector.extract_strided_slice %274 {offsets = [0, 384], sizes = [8, 128], strides = [1, 1]} : vector<8x512xf32> to vector<8x128xf32>
    %cst_114 = arith.constant 5.000000e-01 : f32
    %294 = vector.broadcast %cst_114 : f32 to vector<8x128xf32>
    %295 = arith.mulf %294, %293 : vector<8x128xf32>
    %296 = math.tanh %295 : vector<8x128xf32>
    %cst_115 = arith.constant 5.000000e-01 : f32
    %297 = vector.broadcast %cst_115 : f32 to vector<8x128xf32>
    %298 = arith.mulf %297, %296 : vector<8x128xf32>
    %cst_116 = arith.constant 5.000000e-01 : f32
    %299 = vector.broadcast %cst_116 : f32 to vector<8x128xf32>
    %300 = arith.addf %298, %299 : vector<8x128xf32>
    %301 = arith.mulf %290, %229 : vector<8x128xf32>
    %302 = arith.mulf %282, %292 : vector<8x128xf32>
    %303 = arith.addf %301, %302 : vector<8x128xf32>
    %304 = math.tanh %303 : vector<8x128xf32>
    %305 = arith.mulf %300, %304 : vector<8x128xf32>
    %306 = arith.truncf %305 : vector<8x128xf32> to vector<8x128xbf16>
    %c0_117 = arith.constant 0 : index
    %c0_118 = arith.constant 0 : index
    %307 = vector.load %arg5[%c0_117, %c0_118] : memref<128x512xbf16, #tpu.memory_space<vmem>>, vector<128x512xbf16>
    %cst_119 = arith.constant dense<0.000000e+00> : vector<8x512xf32>
    %308 = tpu.matmul %306, %307, %cst_119 {dimension_numbers = #tpu.dot_dimension_numbers<[1], [0], [0], [1], [0, 0, 1, 1], [], []>} : vector<8x128xbf16>, vector<128x512xbf16>, vector<8x512xf32> -> vector<8x512xf32>
    %309 = vector.extract_strided_slice %5 {offsets = [32, 0], sizes = [8, 512], strides = [1, 1]} : vector<64x512xf32> to vector<8x512xf32>
    %c0_120 = arith.constant 0 : index
    %c0_121 = arith.constant 0 : index
    %310 = vector.load %arg3[%c0_120, %c0_121] : memref<128x512xbf16, #tpu.memory_space<vmem>>, vector<128x512xbf16>
    %cst_122 = arith.constant dense<0.000000e+00> : vector<8x512xf32>
    %311 = tpu.matmul %270, %310, %cst_122 {dimension_numbers = #tpu.dot_dimension_numbers<[1], [0], [0], [1], [0, 0, 1, 1], [], []>} : vector<8x128xbf16>, vector<128x512xbf16>, vector<8x512xf32> -> vector<8x512xf32>
    %312 = arith.addf %309, %311 : vector<8x512xf32>
    %313 = vector.extract_strided_slice %312 {offsets = [0, 0], sizes = [8, 128], strides = [1, 1]} : vector<8x512xf32> to vector<8x128xf32>
    %cst_123 = arith.constant 5.000000e-01 : f32
    %314 = vector.broadcast %cst_123 : f32 to vector<8x128xf32>
    %315 = arith.mulf %314, %313 : vector<8x128xf32>
    %316 = math.tanh %315 : vector<8x128xf32>
    %cst_124 = arith.constant 5.000000e-01 : f32
    %317 = vector.broadcast %cst_124 : f32 to vector<8x128xf32>
    %318 = arith.mulf %317, %316 : vector<8x128xf32>
    %cst_125 = arith.constant 5.000000e-01 : f32
    %319 = vector.broadcast %cst_125 : f32 to vector<8x128xf32>
    %320 = arith.addf %318, %319 : vector<8x128xf32>
    %321 = vector.extract_strided_slice %312 {offsets = [0, 128], sizes = [8, 128], strides = [1, 1]} : vector<8x512xf32> to vector<8x128xf32>
    %cst_126 = arith.constant 5.000000e-01 : f32
    %322 = vector.broadcast %cst_126 : f32 to vector<8x128xf32>
    %323 = arith.mulf %322, %321 : vector<8x128xf32>
    %324 = math.tanh %323 : vector<8x128xf32>
    %cst_127 = arith.constant 5.000000e-01 : f32
    %325 = vector.broadcast %cst_127 : f32 to vector<8x128xf32>
    %326 = arith.mulf %325, %324 : vector<8x128xf32>
    %cst_128 = arith.constant 5.000000e-01 : f32
    %327 = vector.broadcast %cst_128 : f32 to vector<8x128xf32>
    %328 = arith.addf %326, %327 : vector<8x128xf32>
    %329 = vector.extract_strided_slice %312 {offsets = [0, 256], sizes = [8, 128], strides = [1, 1]} : vector<8x512xf32> to vector<8x128xf32>
    %330 = math.tanh %329 : vector<8x128xf32>
    %331 = vector.extract_strided_slice %312 {offsets = [0, 384], sizes = [8, 128], strides = [1, 1]} : vector<8x512xf32> to vector<8x128xf32>
    %cst_129 = arith.constant 5.000000e-01 : f32
    %332 = vector.broadcast %cst_129 : f32 to vector<8x128xf32>
    %333 = arith.mulf %332, %331 : vector<8x128xf32>
    %334 = math.tanh %333 : vector<8x128xf32>
    %cst_130 = arith.constant 5.000000e-01 : f32
    %335 = vector.broadcast %cst_130 : f32 to vector<8x128xf32>
    %336 = arith.mulf %335, %334 : vector<8x128xf32>
    %cst_131 = arith.constant 5.000000e-01 : f32
    %337 = vector.broadcast %cst_131 : f32 to vector<8x128xf32>
    %338 = arith.addf %336, %337 : vector<8x128xf32>
    %339 = arith.mulf %328, %267 : vector<8x128xf32>
    %340 = arith.mulf %320, %330 : vector<8x128xf32>
    %341 = arith.addf %339, %340 : vector<8x128xf32>
    %342 = math.tanh %341 : vector<8x128xf32>
    %343 = arith.mulf %338, %342 : vector<8x128xf32>
    %344 = arith.truncf %343 : vector<8x128xf32> to vector<8x128xbf16>
    %c0_132 = arith.constant 0 : index
    %c0_133 = arith.constant 0 : index
    %345 = vector.load %arg4[%c0_132, %c0_133] : memref<128x512xbf16, #tpu.memory_space<vmem>>, vector<128x512xbf16>
    %cst_134 = arith.constant dense<0.000000e+00> : vector<8x512xf32>
    %346 = tpu.matmul %344, %345, %cst_134 {dimension_numbers = #tpu.dot_dimension_numbers<[1], [0], [0], [1], [0, 0, 1, 1], [], []>} : vector<8x128xbf16>, vector<128x512xbf16>, vector<8x512xf32> -> vector<8x512xf32>
    %347 = arith.addf %308, %346 : vector<8x512xf32>
    %348 = arith.addf %347, %8 : vector<8x512xf32>
    %349 = vector.extract_strided_slice %348 {offsets = [0, 0], sizes = [8, 128], strides = [1, 1]} : vector<8x512xf32> to vector<8x128xf32>
    %cst_135 = arith.constant 5.000000e-01 : f32
    %350 = vector.broadcast %cst_135 : f32 to vector<8x128xf32>
    %351 = arith.mulf %350, %349 : vector<8x128xf32>
    %352 = math.tanh %351 : vector<8x128xf32>
    %cst_136 = arith.constant 5.000000e-01 : f32
    %353 = vector.broadcast %cst_136 : f32 to vector<8x128xf32>
    %354 = arith.mulf %353, %352 : vector<8x128xf32>
    %cst_137 = arith.constant 5.000000e-01 : f32
    %355 = vector.broadcast %cst_137 : f32 to vector<8x128xf32>
    %356 = arith.addf %354, %355 : vector<8x128xf32>
    %357 = vector.extract_strided_slice %348 {offsets = [0, 128], sizes = [8, 128], strides = [1, 1]} : vector<8x512xf32> to vector<8x128xf32>
    %cst_138 = arith.constant 5.000000e-01 : f32
    %358 = vector.broadcast %cst_138 : f32 to vector<8x128xf32>
    %359 = arith.mulf %358, %357 : vector<8x128xf32>
    %360 = math.tanh %359 : vector<8x128xf32>
    %cst_139 = arith.constant 5.000000e-01 : f32
    %361 = vector.broadcast %cst_139 : f32 to vector<8x128xf32>
    %362 = arith.mulf %361, %360 : vector<8x128xf32>
    %cst_140 = arith.constant 5.000000e-01 : f32
    %363 = vector.broadcast %cst_140 : f32 to vector<8x128xf32>
    %364 = arith.addf %362, %363 : vector<8x128xf32>
    %365 = vector.extract_strided_slice %348 {offsets = [0, 256], sizes = [8, 128], strides = [1, 1]} : vector<8x512xf32> to vector<8x128xf32>
    %366 = math.tanh %365 : vector<8x128xf32>
    %367 = vector.extract_strided_slice %348 {offsets = [0, 384], sizes = [8, 128], strides = [1, 1]} : vector<8x512xf32> to vector<8x128xf32>
    %cst_141 = arith.constant 5.000000e-01 : f32
    %368 = vector.broadcast %cst_141 : f32 to vector<8x128xf32>
    %369 = arith.mulf %368, %367 : vector<8x128xf32>
    %370 = math.tanh %369 : vector<8x128xf32>
    %cst_142 = arith.constant 5.000000e-01 : f32
    %371 = vector.broadcast %cst_142 : f32 to vector<8x128xf32>
    %372 = arith.mulf %371, %370 : vector<8x128xf32>
    %cst_143 = arith.constant 5.000000e-01 : f32
    %373 = vector.broadcast %cst_143 : f32 to vector<8x128xf32>
    %374 = arith.addf %372, %373 : vector<8x128xf32>
    %375 = arith.mulf %364, %303 : vector<8x128xf32>
    %376 = arith.mulf %356, %366 : vector<8x128xf32>
    %377 = arith.addf %375, %376 : vector<8x128xf32>
    %378 = math.tanh %377 : vector<8x128xf32>
    %379 = arith.mulf %374, %378 : vector<8x128xf32>
    %380 = arith.truncf %379 : vector<8x128xf32> to vector<8x128xbf16>
    %c0_144 = arith.constant 0 : index
    %c0_145 = arith.constant 0 : index
    %381 = vector.load %arg5[%c0_144, %c0_145] : memref<128x512xbf16, #tpu.memory_space<vmem>>, vector<128x512xbf16>
    %cst_146 = arith.constant dense<0.000000e+00> : vector<8x512xf32>
    %382 = tpu.matmul %380, %381, %cst_146 {dimension_numbers = #tpu.dot_dimension_numbers<[1], [0], [0], [1], [0, 0, 1, 1], [], []>} : vector<8x128xbf16>, vector<128x512xbf16>, vector<8x512xf32> -> vector<8x512xf32>
    %383 = vector.extract_strided_slice %5 {offsets = [40, 0], sizes = [8, 512], strides = [1, 1]} : vector<64x512xf32> to vector<8x512xf32>
    %c0_147 = arith.constant 0 : index
    %c0_148 = arith.constant 0 : index
    %384 = vector.load %arg3[%c0_147, %c0_148] : memref<128x512xbf16, #tpu.memory_space<vmem>>, vector<128x512xbf16>
    %cst_149 = arith.constant dense<0.000000e+00> : vector<8x512xf32>
    %385 = tpu.matmul %344, %384, %cst_149 {dimension_numbers = #tpu.dot_dimension_numbers<[1], [0], [0], [1], [0, 0, 1, 1], [], []>} : vector<8x128xbf16>, vector<128x512xbf16>, vector<8x512xf32> -> vector<8x512xf32>
    %386 = arith.addf %383, %385 : vector<8x512xf32>
    %387 = vector.extract_strided_slice %386 {offsets = [0, 0], sizes = [8, 128], strides = [1, 1]} : vector<8x512xf32> to vector<8x128xf32>
    %cst_150 = arith.constant 5.000000e-01 : f32
    %388 = vector.broadcast %cst_150 : f32 to vector<8x128xf32>
    %389 = arith.mulf %388, %387 : vector<8x128xf32>
    %390 = math.tanh %389 : vector<8x128xf32>
    %cst_151 = arith.constant 5.000000e-01 : f32
    %391 = vector.broadcast %cst_151 : f32 to vector<8x128xf32>
    %392 = arith.mulf %391, %390 : vector<8x128xf32>
    %cst_152 = arith.constant 5.000000e-01 : f32
    %393 = vector.broadcast %cst_152 : f32 to vector<8x128xf32>
    %394 = arith.addf %392, %393 : vector<8x128xf32>
    %395 = vector.extract_strided_slice %386 {offsets = [0, 128], sizes = [8, 128], strides = [1, 1]} : vector<8x512xf32> to vector<8x128xf32>
    %cst_153 = arith.constant 5.000000e-01 : f32
    %396 = vector.broadcast %cst_153 : f32 to vector<8x128xf32>
    %397 = arith.mulf %396, %395 : vector<8x128xf32>
    %398 = math.tanh %397 : vector<8x128xf32>
    %cst_154 = arith.constant 5.000000e-01 : f32
    %399 = vector.broadcast %cst_154 : f32 to vector<8x128xf32>
    %400 = arith.mulf %399, %398 : vector<8x128xf32>
    %cst_155 = arith.constant 5.000000e-01 : f32
    %401 = vector.broadcast %cst_155 : f32 to vector<8x128xf32>
    %402 = arith.addf %400, %401 : vector<8x128xf32>
    %403 = vector.extract_strided_slice %386 {offsets = [0, 256], sizes = [8, 128], strides = [1, 1]} : vector<8x512xf32> to vector<8x128xf32>
    %404 = math.tanh %403 : vector<8x128xf32>
    %405 = vector.extract_strided_slice %386 {offsets = [0, 384], sizes = [8, 128], strides = [1, 1]} : vector<8x512xf32> to vector<8x128xf32>
    %cst_156 = arith.constant 5.000000e-01 : f32
    %406 = vector.broadcast %cst_156 : f32 to vector<8x128xf32>
    %407 = arith.mulf %406, %405 : vector<8x128xf32>
    %408 = math.tanh %407 : vector<8x128xf32>
    %cst_157 = arith.constant 5.000000e-01 : f32
    %409 = vector.broadcast %cst_157 : f32 to vector<8x128xf32>
    %410 = arith.mulf %409, %408 : vector<8x128xf32>
    %cst_158 = arith.constant 5.000000e-01 : f32
    %411 = vector.broadcast %cst_158 : f32 to vector<8x128xf32>
    %412 = arith.addf %410, %411 : vector<8x128xf32>
    %413 = arith.mulf %402, %341 : vector<8x128xf32>
    %414 = arith.mulf %394, %404 : vector<8x128xf32>
    %415 = arith.addf %413, %414 : vector<8x128xf32>
    %416 = math.tanh %415 : vector<8x128xf32>
    %417 = arith.mulf %412, %416 : vector<8x128xf32>
    %418 = arith.truncf %417 : vector<8x128xf32> to vector<8x128xbf16>
    %c0_159 = arith.constant 0 : index
    %c0_160 = arith.constant 0 : index
    %419 = vector.load %arg4[%c0_159, %c0_160] : memref<128x512xbf16, #tpu.memory_space<vmem>>, vector<128x512xbf16>
    %cst_161 = arith.constant dense<0.000000e+00> : vector<8x512xf32>
    %420 = tpu.matmul %418, %419, %cst_161 {dimension_numbers = #tpu.dot_dimension_numbers<[1], [0], [0], [1], [0, 0, 1, 1], [], []>} : vector<8x128xbf16>, vector<128x512xbf16>, vector<8x512xf32> -> vector<8x512xf32>
    %421 = arith.addf %382, %420 : vector<8x512xf32>
    %422 = arith.addf %421, %8 : vector<8x512xf32>
    %423 = vector.extract_strided_slice %422 {offsets = [0, 0], sizes = [8, 128], strides = [1, 1]} : vector<8x512xf32> to vector<8x128xf32>
    %cst_162 = arith.constant 5.000000e-01 : f32
    %424 = vector.broadcast %cst_162 : f32 to vector<8x128xf32>
    %425 = arith.mulf %424, %423 : vector<8x128xf32>
    %426 = math.tanh %425 : vector<8x128xf32>
    %cst_163 = arith.constant 5.000000e-01 : f32
    %427 = vector.broadcast %cst_163 : f32 to vector<8x128xf32>
    %428 = arith.mulf %427, %426 : vector<8x128xf32>
    %cst_164 = arith.constant 5.000000e-01 : f32
    %429 = vector.broadcast %cst_164 : f32 to vector<8x128xf32>
    %430 = arith.addf %428, %429 : vector<8x128xf32>
    %431 = vector.extract_strided_slice %422 {offsets = [0, 128], sizes = [8, 128], strides = [1, 1]} : vector<8x512xf32> to vector<8x128xf32>
    %cst_165 = arith.constant 5.000000e-01 : f32
    %432 = vector.broadcast %cst_165 : f32 to vector<8x128xf32>
    %433 = arith.mulf %432, %431 : vector<8x128xf32>
    %434 = math.tanh %433 : vector<8x128xf32>
    %cst_166 = arith.constant 5.000000e-01 : f32
    %435 = vector.broadcast %cst_166 : f32 to vector<8x128xf32>
    %436 = arith.mulf %435, %434 : vector<8x128xf32>
    %cst_167 = arith.constant 5.000000e-01 : f32
    %437 = vector.broadcast %cst_167 : f32 to vector<8x128xf32>
    %438 = arith.addf %436, %437 : vector<8x128xf32>
    %439 = vector.extract_strided_slice %422 {offsets = [0, 256], sizes = [8, 128], strides = [1, 1]} : vector<8x512xf32> to vector<8x128xf32>
    %440 = math.tanh %439 : vector<8x128xf32>
    %441 = vector.extract_strided_slice %422 {offsets = [0, 384], sizes = [8, 128], strides = [1, 1]} : vector<8x512xf32> to vector<8x128xf32>
    %cst_168 = arith.constant 5.000000e-01 : f32
    %442 = vector.broadcast %cst_168 : f32 to vector<8x128xf32>
    %443 = arith.mulf %442, %441 : vector<8x128xf32>
    %444 = math.tanh %443 : vector<8x128xf32>
    %cst_169 = arith.constant 5.000000e-01 : f32
    %445 = vector.broadcast %cst_169 : f32 to vector<8x128xf32>
    %446 = arith.mulf %445, %444 : vector<8x128xf32>
    %cst_170 = arith.constant 5.000000e-01 : f32
    %447 = vector.broadcast %cst_170 : f32 to vector<8x128xf32>
    %448 = arith.addf %446, %447 : vector<8x128xf32>
    %449 = arith.mulf %438, %377 : vector<8x128xf32>
    %450 = arith.mulf %430, %440 : vector<8x128xf32>
    %451 = arith.addf %449, %450 : vector<8x128xf32>
    %452 = math.tanh %451 : vector<8x128xf32>
    %453 = arith.mulf %448, %452 : vector<8x128xf32>
    %454 = arith.truncf %453 : vector<8x128xf32> to vector<8x128xbf16>
    %c0_171 = arith.constant 0 : index
    %c0_172 = arith.constant 0 : index
    %455 = vector.load %arg5[%c0_171, %c0_172] : memref<128x512xbf16, #tpu.memory_space<vmem>>, vector<128x512xbf16>
    %cst_173 = arith.constant dense<0.000000e+00> : vector<8x512xf32>
    %456 = tpu.matmul %454, %455, %cst_173 {dimension_numbers = #tpu.dot_dimension_numbers<[1], [0], [0], [1], [0, 0, 1, 1], [], []>} : vector<8x128xbf16>, vector<128x512xbf16>, vector<8x512xf32> -> vector<8x512xf32>
    %457 = vector.extract_strided_slice %5 {offsets = [48, 0], sizes = [8, 512], strides = [1, 1]} : vector<64x512xf32> to vector<8x512xf32>
    %c0_174 = arith.constant 0 : index
    %c0_175 = arith.constant 0 : index
    %458 = vector.load %arg3[%c0_174, %c0_175] : memref<128x512xbf16, #tpu.memory_space<vmem>>, vector<128x512xbf16>
    %cst_176 = arith.constant dense<0.000000e+00> : vector<8x512xf32>
    %459 = tpu.matmul %418, %458, %cst_176 {dimension_numbers = #tpu.dot_dimension_numbers<[1], [0], [0], [1], [0, 0, 1, 1], [], []>} : vector<8x128xbf16>, vector<128x512xbf16>, vector<8x512xf32> -> vector<8x512xf32>
    %460 = arith.addf %457, %459 : vector<8x512xf32>
    %461 = vector.extract_strided_slice %460 {offsets = [0, 0], sizes = [8, 128], strides = [1, 1]} : vector<8x512xf32> to vector<8x128xf32>
    %cst_177 = arith.constant 5.000000e-01 : f32
    %462 = vector.broadcast %cst_177 : f32 to vector<8x128xf32>
    %463 = arith.mulf %462, %461 : vector<8x128xf32>
    %464 = math.tanh %463 : vector<8x128xf32>
    %cst_178 = arith.constant 5.000000e-01 : f32
    %465 = vector.broadcast %cst_178 : f32 to vector<8x128xf32>
    %466 = arith.mulf %465, %464 : vector<8x128xf32>
    %cst_179 = arith.constant 5.000000e-01 : f32
    %467 = vector.broadcast %cst_179 : f32 to vector<8x128xf32>
    %468 = arith.addf %466, %467 : vector<8x128xf32>
    %469 = vector.extract_strided_slice %460 {offsets = [0, 128], sizes = [8, 128], strides = [1, 1]} : vector<8x512xf32> to vector<8x128xf32>
    %cst_180 = arith.constant 5.000000e-01 : f32
    %470 = vector.broadcast %cst_180 : f32 to vector<8x128xf32>
    %471 = arith.mulf %470, %469 : vector<8x128xf32>
    %472 = math.tanh %471 : vector<8x128xf32>
    %cst_181 = arith.constant 5.000000e-01 : f32
    %473 = vector.broadcast %cst_181 : f32 to vector<8x128xf32>
    %474 = arith.mulf %473, %472 : vector<8x128xf32>
    %cst_182 = arith.constant 5.000000e-01 : f32
    %475 = vector.broadcast %cst_182 : f32 to vector<8x128xf32>
    %476 = arith.addf %474, %475 : vector<8x128xf32>
    %477 = vector.extract_strided_slice %460 {offsets = [0, 256], sizes = [8, 128], strides = [1, 1]} : vector<8x512xf32> to vector<8x128xf32>
    %478 = math.tanh %477 : vector<8x128xf32>
    %479 = vector.extract_strided_slice %460 {offsets = [0, 384], sizes = [8, 128], strides = [1, 1]} : vector<8x512xf32> to vector<8x128xf32>
    %cst_183 = arith.constant 5.000000e-01 : f32
    %480 = vector.broadcast %cst_183 : f32 to vector<8x128xf32>
    %481 = arith.mulf %480, %479 : vector<8x128xf32>
    %482 = math.tanh %481 : vector<8x128xf32>
    %cst_184 = arith.constant 5.000000e-01 : f32
    %483 = vector.broadcast %cst_184 : f32 to vector<8x128xf32>
    %484 = arith.mulf %483, %482 : vector<8x128xf32>
    %cst_185 = arith.constant 5.000000e-01 : f32
    %485 = vector.broadcast %cst_185 : f32 to vector<8x128xf32>
    %486 = arith.addf %484, %485 : vector<8x128xf32>
    %487 = arith.mulf %476, %415 : vector<8x128xf32>
    %488 = arith.mulf %468, %478 : vector<8x128xf32>
    %489 = arith.addf %487, %488 : vector<8x128xf32>
    %490 = math.tanh %489 : vector<8x128xf32>
    %491 = arith.mulf %486, %490 : vector<8x128xf32>
    %492 = arith.truncf %491 : vector<8x128xf32> to vector<8x128xbf16>
    %c0_186 = arith.constant 0 : index
    %c0_187 = arith.constant 0 : index
    %493 = vector.load %arg4[%c0_186, %c0_187] : memref<128x512xbf16, #tpu.memory_space<vmem>>, vector<128x512xbf16>
    %cst_188 = arith.constant dense<0.000000e+00> : vector<8x512xf32>
    %494 = tpu.matmul %492, %493, %cst_188 {dimension_numbers = #tpu.dot_dimension_numbers<[1], [0], [0], [1], [0, 0, 1, 1], [], []>} : vector<8x128xbf16>, vector<128x512xbf16>, vector<8x512xf32> -> vector<8x512xf32>
    %495 = arith.addf %456, %494 : vector<8x512xf32>
    %496 = arith.addf %495, %8 : vector<8x512xf32>
    %497 = vector.extract_strided_slice %496 {offsets = [0, 0], sizes = [8, 128], strides = [1, 1]} : vector<8x512xf32> to vector<8x128xf32>
    %cst_189 = arith.constant 5.000000e-01 : f32
    %498 = vector.broadcast %cst_189 : f32 to vector<8x128xf32>
    %499 = arith.mulf %498, %497 : vector<8x128xf32>
    %500 = math.tanh %499 : vector<8x128xf32>
    %cst_190 = arith.constant 5.000000e-01 : f32
    %501 = vector.broadcast %cst_190 : f32 to vector<8x128xf32>
    %502 = arith.mulf %501, %500 : vector<8x128xf32>
    %cst_191 = arith.constant 5.000000e-01 : f32
    %503 = vector.broadcast %cst_191 : f32 to vector<8x128xf32>
    %504 = arith.addf %502, %503 : vector<8x128xf32>
    %505 = vector.extract_strided_slice %496 {offsets = [0, 128], sizes = [8, 128], strides = [1, 1]} : vector<8x512xf32> to vector<8x128xf32>
    %cst_192 = arith.constant 5.000000e-01 : f32
    %506 = vector.broadcast %cst_192 : f32 to vector<8x128xf32>
    %507 = arith.mulf %506, %505 : vector<8x128xf32>
    %508 = math.tanh %507 : vector<8x128xf32>
    %cst_193 = arith.constant 5.000000e-01 : f32
    %509 = vector.broadcast %cst_193 : f32 to vector<8x128xf32>
    %510 = arith.mulf %509, %508 : vector<8x128xf32>
    %cst_194 = arith.constant 5.000000e-01 : f32
    %511 = vector.broadcast %cst_194 : f32 to vector<8x128xf32>
    %512 = arith.addf %510, %511 : vector<8x128xf32>
    %513 = vector.extract_strided_slice %496 {offsets = [0, 256], sizes = [8, 128], strides = [1, 1]} : vector<8x512xf32> to vector<8x128xf32>
    %514 = math.tanh %513 : vector<8x128xf32>
    %515 = vector.extract_strided_slice %496 {offsets = [0, 384], sizes = [8, 128], strides = [1, 1]} : vector<8x512xf32> to vector<8x128xf32>
    %cst_195 = arith.constant 5.000000e-01 : f32
    %516 = vector.broadcast %cst_195 : f32 to vector<8x128xf32>
    %517 = arith.mulf %516, %515 : vector<8x128xf32>
    %518 = math.tanh %517 : vector<8x128xf32>
    %cst_196 = arith.constant 5.000000e-01 : f32
    %519 = vector.broadcast %cst_196 : f32 to vector<8x128xf32>
    %520 = arith.mulf %519, %518 : vector<8x128xf32>
    %cst_197 = arith.constant 5.000000e-01 : f32
    %521 = vector.broadcast %cst_197 : f32 to vector<8x128xf32>
    %522 = arith.addf %520, %521 : vector<8x128xf32>
    %523 = arith.mulf %512, %451 : vector<8x128xf32>
    %524 = arith.mulf %504, %514 : vector<8x128xf32>
    %525 = arith.addf %523, %524 : vector<8x128xf32>
    %526 = math.tanh %525 : vector<8x128xf32>
    %527 = arith.mulf %522, %526 : vector<8x128xf32>
    %528 = arith.truncf %527 : vector<8x128xf32> to vector<8x128xbf16>
    %c0_198 = arith.constant 0 : index
    %c0_199 = arith.constant 0 : index
    %529 = vector.load %arg5[%c0_198, %c0_199] : memref<128x512xbf16, #tpu.memory_space<vmem>>, vector<128x512xbf16>
    %cst_200 = arith.constant dense<0.000000e+00> : vector<8x512xf32>
    %530 = tpu.matmul %528, %529, %cst_200 {dimension_numbers = #tpu.dot_dimension_numbers<[1], [0], [0], [1], [0, 0, 1, 1], [], []>} : vector<8x128xbf16>, vector<128x512xbf16>, vector<8x512xf32> -> vector<8x512xf32>
    %531 = vector.extract_strided_slice %5 {offsets = [56, 0], sizes = [8, 512], strides = [1, 1]} : vector<64x512xf32> to vector<8x512xf32>
    %c0_201 = arith.constant 0 : index
    %c0_202 = arith.constant 0 : index
    %532 = vector.load %arg3[%c0_201, %c0_202] : memref<128x512xbf16, #tpu.memory_space<vmem>>, vector<128x512xbf16>
    %cst_203 = arith.constant dense<0.000000e+00> : vector<8x512xf32>
    %533 = tpu.matmul %492, %532, %cst_203 {dimension_numbers = #tpu.dot_dimension_numbers<[1], [0], [0], [1], [0, 0, 1, 1], [], []>} : vector<8x128xbf16>, vector<128x512xbf16>, vector<8x512xf32> -> vector<8x512xf32>
    %534 = arith.addf %531, %533 : vector<8x512xf32>
    %535 = vector.extract_strided_slice %534 {offsets = [0, 0], sizes = [8, 128], strides = [1, 1]} : vector<8x512xf32> to vector<8x128xf32>
    %cst_204 = arith.constant 5.000000e-01 : f32
    %536 = vector.broadcast %cst_204 : f32 to vector<8x128xf32>
    %537 = arith.mulf %536, %535 : vector<8x128xf32>
    %538 = math.tanh %537 : vector<8x128xf32>
    %cst_205 = arith.constant 5.000000e-01 : f32
    %539 = vector.broadcast %cst_205 : f32 to vector<8x128xf32>
    %540 = arith.mulf %539, %538 : vector<8x128xf32>
    %cst_206 = arith.constant 5.000000e-01 : f32
    %541 = vector.broadcast %cst_206 : f32 to vector<8x128xf32>
    %542 = arith.addf %540, %541 : vector<8x128xf32>
    %543 = vector.extract_strided_slice %534 {offsets = [0, 128], sizes = [8, 128], strides = [1, 1]} : vector<8x512xf32> to vector<8x128xf32>
    %cst_207 = arith.constant 5.000000e-01 : f32
    %544 = vector.broadcast %cst_207 : f32 to vector<8x128xf32>
    %545 = arith.mulf %544, %543 : vector<8x128xf32>
    %546 = math.tanh %545 : vector<8x128xf32>
    %cst_208 = arith.constant 5.000000e-01 : f32
    %547 = vector.broadcast %cst_208 : f32 to vector<8x128xf32>
    %548 = arith.mulf %547, %546 : vector<8x128xf32>
    %cst_209 = arith.constant 5.000000e-01 : f32
    %549 = vector.broadcast %cst_209 : f32 to vector<8x128xf32>
    %550 = arith.addf %548, %549 : vector<8x128xf32>
    %551 = vector.extract_strided_slice %534 {offsets = [0, 256], sizes = [8, 128], strides = [1, 1]} : vector<8x512xf32> to vector<8x128xf32>
    %552 = math.tanh %551 : vector<8x128xf32>
    %553 = vector.extract_strided_slice %534 {offsets = [0, 384], sizes = [8, 128], strides = [1, 1]} : vector<8x512xf32> to vector<8x128xf32>
    %cst_210 = arith.constant 5.000000e-01 : f32
    %554 = vector.broadcast %cst_210 : f32 to vector<8x128xf32>
    %555 = arith.mulf %554, %553 : vector<8x128xf32>
    %556 = math.tanh %555 : vector<8x128xf32>
    %cst_211 = arith.constant 5.000000e-01 : f32
    %557 = vector.broadcast %cst_211 : f32 to vector<8x128xf32>
    %558 = arith.mulf %557, %556 : vector<8x128xf32>
    %cst_212 = arith.constant 5.000000e-01 : f32
    %559 = vector.broadcast %cst_212 : f32 to vector<8x128xf32>
    %560 = arith.addf %558, %559 : vector<8x128xf32>
    %561 = arith.mulf %550, %489 : vector<8x128xf32>
    %562 = arith.mulf %542, %552 : vector<8x128xf32>
    %563 = arith.addf %561, %562 : vector<8x128xf32>
    %564 = math.tanh %563 : vector<8x128xf32>
    %565 = arith.mulf %560, %564 : vector<8x128xf32>
    %566 = arith.truncf %565 : vector<8x128xf32> to vector<8x128xbf16>
    %c0_213 = arith.constant 0 : index
    %c0_214 = arith.constant 0 : index
    %567 = vector.load %arg4[%c0_213, %c0_214] : memref<128x512xbf16, #tpu.memory_space<vmem>>, vector<128x512xbf16>
    %cst_215 = arith.constant dense<0.000000e+00> : vector<8x512xf32>
    %568 = tpu.matmul %566, %567, %cst_215 {dimension_numbers = #tpu.dot_dimension_numbers<[1], [0], [0], [1], [0, 0, 1, 1], [], []>} : vector<8x128xbf16>, vector<128x512xbf16>, vector<8x512xf32> -> vector<8x512xf32>
    %569 = arith.addf %530, %568 : vector<8x512xf32>
    %570 = arith.addf %569, %8 : vector<8x512xf32>
    %571 = vector.extract_strided_slice %570 {offsets = [0, 0], sizes = [8, 128], strides = [1, 1]} : vector<8x512xf32> to vector<8x128xf32>
    %cst_216 = arith.constant 5.000000e-01 : f32
    %572 = vector.broadcast %cst_216 : f32 to vector<8x128xf32>
    %573 = arith.mulf %572, %571 : vector<8x128xf32>
    %574 = math.tanh %573 : vector<8x128xf32>
    %cst_217 = arith.constant 5.000000e-01 : f32
    %575 = vector.broadcast %cst_217 : f32 to vector<8x128xf32>
    %576 = arith.mulf %575, %574 : vector<8x128xf32>
    %cst_218 = arith.constant 5.000000e-01 : f32
    %577 = vector.broadcast %cst_218 : f32 to vector<8x128xf32>
    %578 = arith.addf %576, %577 : vector<8x128xf32>
    %579 = vector.extract_strided_slice %570 {offsets = [0, 128], sizes = [8, 128], strides = [1, 1]} : vector<8x512xf32> to vector<8x128xf32>
    %cst_219 = arith.constant 5.000000e-01 : f32
    %580 = vector.broadcast %cst_219 : f32 to vector<8x128xf32>
    %581 = arith.mulf %580, %579 : vector<8x128xf32>
    %582 = math.tanh %581 : vector<8x128xf32>
    %cst_220 = arith.constant 5.000000e-01 : f32
    %583 = vector.broadcast %cst_220 : f32 to vector<8x128xf32>
    %584 = arith.mulf %583, %582 : vector<8x128xf32>
    %cst_221 = arith.constant 5.000000e-01 : f32
    %585 = vector.broadcast %cst_221 : f32 to vector<8x128xf32>
    %586 = arith.addf %584, %585 : vector<8x128xf32>
    %587 = vector.extract_strided_slice %570 {offsets = [0, 256], sizes = [8, 128], strides = [1, 1]} : vector<8x512xf32> to vector<8x128xf32>
    %588 = math.tanh %587 : vector<8x128xf32>
    %589 = vector.extract_strided_slice %570 {offsets = [0, 384], sizes = [8, 128], strides = [1, 1]} : vector<8x512xf32> to vector<8x128xf32>
    %cst_222 = arith.constant 5.000000e-01 : f32
    %590 = vector.broadcast %cst_222 : f32 to vector<8x128xf32>
    %591 = arith.mulf %590, %589 : vector<8x128xf32>
    %592 = math.tanh %591 : vector<8x128xf32>
    %cst_223 = arith.constant 5.000000e-01 : f32
    %593 = vector.broadcast %cst_223 : f32 to vector<8x128xf32>
    %594 = arith.mulf %593, %592 : vector<8x128xf32>
    %cst_224 = arith.constant 5.000000e-01 : f32
    %595 = vector.broadcast %cst_224 : f32 to vector<8x128xf32>
    %596 = arith.addf %594, %595 : vector<8x128xf32>
    %597 = arith.mulf %586, %525 : vector<8x128xf32>
    %598 = arith.mulf %578, %588 : vector<8x128xf32>
    %599 = arith.addf %597, %598 : vector<8x128xf32>
    %600 = math.tanh %599 : vector<8x128xf32>
    %601 = arith.mulf %596, %600 : vector<8x128xf32>
    %602 = arith.truncf %601 : vector<8x128xf32> to vector<8x128xbf16>
    %c0_225 = arith.constant 0 : index
    %c0_226 = arith.constant 0 : index
    %603 = vector.load %arg7[%c0_225, %c0_226] : memref<128x128xbf16, #tpu.memory_space<vmem>>, vector<128x128xbf16>
    %cst_227 = arith.constant dense<0.000000e+00> : vector<8x128xf32>
    %604 = tpu.matmul %602, %603, %cst_227 {dimension_numbers = #tpu.dot_dimension_numbers<[1], [0], [0], [1], [0, 0, 1, 1], [], []>} : vector<8x128xbf16>, vector<128x128xbf16>, vector<8x128xf32> -> vector<8x128xf32>
    %c0_228 = arith.constant 0 : index
    %c0_229 = arith.constant 0 : index
    %605 = vector.load %arg8[%c0_228, %c0_229] : memref<1x128xf32, #tpu.memory_space<vmem>>, vector<1x128xf32>
    %606 = vector.broadcast %605 : vector<1x128xf32> to vector<8x128xf32>
    %607 = arith.addf %604, %606 : vector<8x128xf32>
    %c0_230 = arith.constant 0 : index
    %c0_231 = arith.constant 0 : index
    %608 = vector.load %arg9[%c0_230, %c0_231] : memref<8x128xf32, #tpu.memory_space<vmem>>, vector<8x128xf32>
    tpu.vector_store %arg9[%c0_230, %c0_231], %607 {strides = array<i32>} : memref<8x128xf32, #tpu.memory_space<vmem>>, vector<8x128xf32>,
    return
  }
}

</mosaic_0001>

<llo_original>
// kernel: tpu_custom_call.1
$region0: #{tpu_custom_call.1}
  #allocation0 [shape = 'u32[]', space=smem, size = 0x4, offset = 0x4, fixed_abs, tag = 'smem constant byte address 0x4 - core index']
  #allocation1 [shape = 'u32[72,128]{1,0:T(1,128)}', space=vmem, size = 0x9000, scoped, tag = 'internal scratch']
  %s0 = inlined_call_operand.vmem [shape: bf16[64,28], index: 0, kind: input, shape index: {}]
  %s1 = inlined_call_operand.hbm [shape: bf16[28,512], index: 1, kind: input, shape index: {}]
  %s2 = inlined_call_operand.vmem [shape: f32[1,512], index: 2, kind: input, shape index: {}]
  %s3 = inlined_call_operand.hbm [shape: bf16[128,512], index: 3, kind: input, shape index: {}]
  %s4 = inlined_call_operand.hbm [shape: bf16[128,512], index: 4, kind: input, shape index: {}]
  %s5 = inlined_call_operand.hbm [shape: bf16[128,512], index: 5, kind: input, shape index: {}]
  %s6 = inlined_call_operand.vmem [shape: f32[1,512], index: 6, kind: input, shape index: {}]
  %s7 = inlined_call_operand.hbm [shape: bf16[128,128], index: 7, kind: input, shape index: {}]
  %s8 = inlined_call_operand.vmem [shape: f32[1,128], index: 8, kind: input, shape index: {}]
  %s9 = inlined_call_operand.hbm [shape: f32[8,128], index: 9, kind: output, shape index: {}]
  %s10 = sld [smem:[#allocation0]]
  $region66: #{tpu_custom_call.1} parent=0
    _
  %s12 = ssub.s32 1, %s10
  %s13 = scalar_select 0, %s12, %s10
  $region1: #{tpu_custom_call.1} parent=0
    #allocation2 [shape = 'u8[32768]{0}', space=vmem, size = 0x8000, scoped, tag = 'input window, operand 1, single buffered']
    #allocation3 [shape = 's32[1]{0}', space=sflag, size = 0x4, scoped, tag = 'scoped memory for tpu_custom_call.1']
    #allocation4 [shape = 's32[1]{0}', space=sflag, size = 0x4, scoped, tag = 'scoped memory for tpu_custom_call.1']
    #allocation5 [shape = 'u8[131072]{0}', space=vmem, size = 0x20000, scoped, tag = 'input window, operand 3, single buffered']
    #allocation6 [shape = 's32[1]{0}', space=sflag, size = 0x4, scoped, tag = 'scoped memory for tpu_custom_call.1']
    #allocation7 [shape = 'u8[131072]{0}', space=vmem, size = 0x20000, scoped, tag = 'input window, operand 4, single buffered']
    #allocation8 [shape = 'u8[131072]{0}', space=vmem, size = 0x20000, scoped, tag = 'input window, operand 5, single buffered']
    #allocation9 [shape = 's32[1]{0}', space=sflag, size = 0x4, scoped, tag = 'scoped memory for tpu_custom_call.1']
    #allocation10 [shape = 'u8[32768]{0}', space=vmem, size = 0x8000, scoped, tag = 'input window, operand 7, single buffered']
    #allocation11 [shape = 'u8[4096]{0}', space=vmem, size = 0x1000, scoped, tag = 'output window, operand 0, single buffered']
    %14 = vsyncpa [#allocation3], 0
    %15 = vsyncpa [#allocation6], 0
    %16 = vsyncpa [#allocation9], 0
    %17 = vsyncpa [#allocation4], 0
    // Predicated region
    $region2: #{tpu_custom_call.1} parent=1 // pred_check
      _
    $region3: #{tpu_custom_call.1} parent=1 // pred_check_branch
      %19 = sbr.rel (0) target = $region5
    $region4: #{tpu_custom_call.1} parent=1 // pred_region
      _
    $region5: #{tpu_custom_call.1} parent=1 // pred_fallthru
      _
    // Predicated region
    $region6: #{tpu_custom_call.1} parent=1 // pred_check
      _
    $region7: #{tpu_custom_call.1} parent=1 // pred_check_branch
      %21 = sbr.rel (0) target = $region9
    $region8: #{tpu_custom_call.1} parent=1 // pred_region
      %23 = vsyncadd [#allocation3], 0
      %s24 = sshll.u32 %s1, 4
      %s25 = int_to_ptr.hbm [resolvable:$true] %s24
      %s26 = sshll.u32 [#allocation2], 4
      %s27 = int_to_ptr.vmem [resolvable:$true] %s26
      %32 = dma.hbm_to_vmem [thread:$0]  %s25, 1024, %s27, [#allocation3], 256, 256, 16
    $region9: #{tpu_custom_call.1} parent=1 // pred_fallthru
      _
    // Predicated region
    $region10: #{tpu_custom_call.1} parent=1 // pred_check
      _
    $region11: #{tpu_custom_call.1} parent=1 // pred_check_branch
      %34 = sbr.rel (0) target = $region13
    $region12: #{tpu_custom_call.1} parent=1 // pred_region
      _
    $region13: #{tpu_custom_call.1} parent=1 // pred_fallthru
      _
    // Predicated region
    $region14: #{tpu_custom_call.1} parent=1 // pred_check
      _
    $region15: #{tpu_custom_call.1} parent=1 // pred_check_branch
      %36 = sbr.rel (0) target = $region17
    $region16: #{tpu_custom_call.1} parent=1 // pred_region
      %38 = vsyncadd [#allocation6], 0
      %s39 = sshll.u32 %s3, 4
      %s40 = int_to_ptr.hbm [resolvable:$true] %s39
      %s41 = sshll.u32 [#allocation5], 4
      %s42 = int_to_ptr.vmem [resolvable:$true] %s41
      %47 = dma.hbm_to_vmem [thread:$0]  %s40, 4096, %s42, [#allocation6], 256, 256, 16
    $region17: #{tpu_custom_call.1} parent=1 // pred_fallthru
      _
    // Predicated region
    $region18: #{tpu_custom_call.1} parent=1 // pred_check
      _
    $region19: #{tpu_custom_call.1} parent=1 // pred_check_branch
      %49 = sbr.rel (0) target = $region21
    $region20: #{tpu_custom_call.1} parent=1 // pred_region
      %51 = vsyncadd [#allocation6], 0
      %s52 = sshll.u32 %s4, 4
      %s53 = int_to_ptr.hbm [resolvable:$true] %s52
      %s54 = sshll.u32 [#allocation7], 4
      %s55 = int_to_ptr.vmem [resolvable:$true] %s54
      %60 = dma.hbm_to_vmem [thread:$0]  %s53, 4096, %s55, [#allocation6], 256, 256, 16
    $region21: #{tpu_custom_call.1} parent=1 // pred_fallthru
      _
    // Predicated region
    $region22: #{tpu_custom_call.1} parent=1 // pred_check
      _
    $region23: #{tpu_custom_call.1} parent=1 // pred_check_branch
      %62 = sbr.rel (0) target = $region25
    $region24: #{tpu_custom_call.1} parent=1 // pred_region
      %64 = vsyncadd [#allocation9], 0
      %s65 = sshll.u32 %s5, 4
      %s66 = int_to_ptr.hbm [resolvable:$true] %s65
      %s67 = sshll.u32 [#allocation8], 4
      %s68 = int_to_ptr.vmem [resolvable:$true] %s67
      %73 = dma.hbm_to_vmem [thread:$0]  %s66, 4096, %s68, [#allocation9], 256, 256, 16
    $region25: #{tpu_custom_call.1} parent=1 // pred_fallthru
      _
    // Predicated region
    $region26: #{tpu_custom_call.1} parent=1 // pred_check
      _
    $region27: #{tpu_custom_call.1} parent=1 // pred_check_branch
      %75 = sbr.rel (0) target = $region29
    $region28: #{tpu_custom_call.1} parent=1 // pred_region
      _
    $region29: #{tpu_custom_call.1} parent=1 // pred_fallthru
      _
    // Predicated region
    $region30: #{tpu_custom_call.1} parent=1 // pred_check
      _
    $region31: #{tpu_custom_call.1} parent=1 // pred_check_branch
      %77 = sbr.rel (0) target = $region33
    $region32: #{tpu_custom_call.1} parent=1 // pred_region
      %79 = vsyncadd [#allocation9], 0
      %s80 = sshll.u32 %s7, 4
      %s81 = int_to_ptr.hbm [resolvable:$true] %s80
      %s82 = sshll.u32 [#allocation10], 4
      %s83 = int_to_ptr.vmem [resolvable:$true] %s82
      %88 = dma.hbm_to_vmem [thread:$0]  %s81, 1024, %s83, [#allocation9], 64, 64, 4
    $region33: #{tpu_custom_call.1} parent=1 // pred_fallthru
      _
    // Predicated region
    $region34: #{tpu_custom_call.1} parent=1 // pred_check
      _
    $region35: #{tpu_custom_call.1} parent=1 // pred_check_branch
      %90 = sbr.rel (0) target = $region37
    $region36: #{tpu_custom_call.1} parent=1 // pred_region
      _
    $region37: #{tpu_custom_call.1} parent=1 // pred_fallthru
      _
    // Predicated region
    $region38: #{tpu_custom_call.1} parent=1 // pred_check
      _
    $region39: #{tpu_custom_call.1} parent=1 // pred_check_branch
      %92 = sbr.rel (0) target = $region41
    $region40: #{tpu_custom_call.1} parent=1 // pred_region
      %94 = dma.done [#allocation3], 1024
    $region41: #{tpu_custom_call.1} parent=1 // pred_fallthru
      _
    // Predicated region
    $region42: #{tpu_custom_call.1} parent=1 // pred_check
      _
    $region43: #{tpu_custom_call.1} parent=1 // pred_check_branch
      %96 = sbr.rel (0) target = $region45
    $region44: #{tpu_custom_call.1} parent=1 // pred_region
      %98 = dma.done [#allocation6], 4096
    $region45: #{tpu_custom_call.1} parent=1 // pred_fallthru
      _
    // Predicated region
    $region46: #{tpu_custom_call.1} parent=1 // pred_check
      _
    $region47: #{tpu_custom_call.1} parent=1 // pred_check_branch
      %100 = sbr.rel (0) target = $region49
    $region48: #{tpu_custom_call.1} parent=1 // pred_region
      %102 = dma.done [#allocation6], 4096
    $region49: #{tpu_custom_call.1} parent=1 // pred_fallthru
      _
    // Predicated region
    $region50: #{tpu_custom_call.1} parent=1 // pred_check
      _
    $region51: #{tpu_custom_call.1} parent=1 // pred_check_branch
      %104 = sbr.rel (0) target = $region53
    $region52: #{tpu_custom_call.1} parent=1 // pred_region
      %106 = dma.done [#allocation9], 4096
    $region53: #{tpu_custom_call.1} parent=1 // pred_fallthru
      _
    // Predicated region
    $region54: #{tpu_custom_call.1} parent=1 // pred_check
      _
    $region55: #{tpu_custom_call.1} parent=1 // pred_check_branch
      %108 = sbr.rel (0) target = $region57
    $region56: #{tpu_custom_call.1} parent=1 // pred_region
      %110 = dma.done [#allocation9], 1024
    $region57: #{tpu_custom_call.1} parent=1 // pred_fallthru
      _
    %v112 = vld [vmem:[%s0] sm:$0xf]
    %v113 = vld [vmem:[%s0 + $0x4] sm:$0xf]
    %v114 = vld [vmem:[%s0 + $0x8] sm:$0xf]
    %v115 = vld [vmem:[%s0 + $0xc] sm:$0xf]
    %v116 = vld [vmem:[%s0 + $0x10] sm:$0xf]
    %v117 = vld [vmem:[%s0 + $0x14] sm:$0xf]
    %v118 = vld [vmem:[%s0 + $0x18] sm:$0xf]
    %v119 = vld [vmem:[%s0 + $0x1c] sm:$0xf]
    %v120 = vld [vmem:[#allocation2] sm:$0xff]
    %v121 = vld [vmem:[#allocation2 + $0x8] sm:$0xff]
    %v122 = vld [vmem:[#allocation2 + $0x10] sm:$0xff]
    %v123 = vld [vmem:[#allocation2 + $0x18] sm:$0xff]
    %v124 = vld [vmem:[#allocation2 + $0x20] sm:$0xff]
    %v125 = vld [vmem:[#allocation2 + $0x28] sm:$0xff]
    %v126 = vld [vmem:[#allocation2 + $0x30] sm:$0x33]
    %v127 = vld [vmem:[#allocation2 + $0x38] sm:$0x33]
    %v128 = vld [vmem:[%s2] sm:$0xf]
    %v130 = vperm.slane %v128, 0
    %v131 = vperm.slane %v128, 1
    %v132 = vperm.slane %v128, 2
    %v133 = vperm.slane %v128, 3
    %v146 = vunpack.c.l.b16 %v112
    %v147 = vunpack.c.l.b16 %v113
    %v148 = vunpack.c.l.b16 %v114
    %v149 = vunpack.c.l.b16 %v115
    %v150 = vunpack.c.l.b16 %v116
    %v151 = vunpack.c.l.b16 %v117
    %v152 = vunpack.c.l.b16 %v118
    %v153 = vunpack.c.l.b16 %v119
    %v154 = vpack.c.b16 %v147, %v146
    %v155 = vpack.c.b16 %v149, %v148
    %v156 = vpack.c.b16 %v151, %v150
    %v157 = vpack.c.b16 %v153, %v152
    %v166 = vunpack.c.l.b16 %v120
    %v167 = vunpack.c.h.b16 %v120
    %v168 = vunpack.c.l.b16 %v121
    %v169 = vunpack.c.h.b16 %v121
    %v170 = vunpack.c.l.b16 %v122
    %v171 = vunpack.c.h.b16 %v122
    %v172 = vunpack.c.l.b16 %v123
    %v173 = vunpack.c.h.b16 %v123
    %v174 = vunpack.c.l.b16 %v124
    %v175 = vunpack.c.h.b16 %v124
    %v176 = vunpack.c.l.b16 %v125
    %v177 = vunpack.c.h.b16 %v125
    %v178 = vunpack.c.l.b16 %v126
    %v179 = vunpack.c.h.b16 %v126
    %v180 = vunpack.c.l.b16 %v127
    %v181 = vunpack.c.h.b16 %v127
    %v182 = vpack.c.b16 %v170, %v166
    %v183 = vpack.c.b16 %v171, %v167
    %v184 = vpack.c.b16 %v172, %v168
    %v185 = vpack.c.b16 %v173, %v169
    %v186 = vpack.c.b16 %v178, %v174
    %v187 = vpack.c.b16 %v179, %v175
    %v188 = vpack.c.b16 %v180, %v176
    %v189 = vpack.c.b16 %v181, %v177
    %vm194 = vcmask 228352
    %v196 = vsel %vm194, %v154, 0
    %v199 = vsel %vm194, %v155, 0
    %v202 = vsel %vm194, %v156, 0
    %v205 = vsel %vm194, %v157, 0
    %vm207 = vcmask 1045504
    %v209 = vsel %vm207, %v186, 0
    %v212 = vsel %vm207, %v187, 0
    %v215 = vsel %vm207, %v188, 0
    %v218 = vsel %vm207, %v189, 0
    %220 = vmatpush.bf16.msra.mxu0 0
    %221 = vmatpush.bf16.msra.mxu0 0
    %222 = vmatpush.bf16.msra.mxu0 0
    %223 = vmatpush.bf16.msra.mxu0 0
    %224 = vmatpush.bf16.msra.mxu0 0
    %225 = vmatpush.bf16.msra.mxu0 0
    %226 = vmatpush.bf16.msra.mxu0 %v209
    %227 = vmatpush.bf16.msra.mxu0 %v182
    %228 = vmatmul.bf16.gmra.mxu0 %v196
    %v229 = vpop.f32.mrf.mxu0
    %v230 = vadd.f32 %v130, %v229
    %v231 = vpop.f32.mrf.mxu0
    %v232 = vadd.f32 %v130, %v231
    %233 = vmatmul.bf16.gmra.mxu0 %v199
    %v234 = vpop.f32.mrf.mxu0
    %v235 = vadd.f32 %v130, %v234
    %v236 = vpop.f32.mrf.mxu0
    %v237 = vadd.f32 %v130, %v236
    %238 = vmatmul.bf16.gmra.mxu0 %v202
    %v239 = vpop.f32.mrf.mxu0
    %v240 = vadd.f32 %v130, %v239
    %v241 = vpop.f32.mrf.mxu0
    %v242 = vadd.f32 %v130, %v241
    %243 = vmatmul.bf16.gmra.mxu0 %v205
    %v244 = vpop.f32.mrf.mxu0
    %v245 = vadd.f32 %v130, %v244
    %v246 = vpop.f32.mrf.mxu0
    %v247 = vadd.f32 %v130, %v246
    %248 = vdwg.mxu0
    %249 = vmatpush.bf16.msra.mxu0 0
    %250 = vmatpush.bf16.msra.mxu0 0
    %251 = vmatpush.bf16.msra.mxu0 0
    %252 = vmatpush.bf16.msra.mxu0 0
    %253 = vmatpush.bf16.msra.mxu0 0
    %254 = vmatpush.bf16.msra.mxu0 0
    %255 = vmatpush.bf16.msra.mxu0 %v212
    %256 = vmatpush.bf16.msra.mxu0 %v183
    %257 = vmatmul.bf16.gmra.mxu0 %v196
    %v258 = vpop.f32.mrf.mxu0
    %v259 = vadd.f32 %v131, %v258
    %v260 = vpop.f32.mrf.mxu0
    %v261 = vadd.f32 %v131, %v260
    %262 = vmatmul.bf16.gmra.mxu0 %v199
    %v263 = vpop.f32.mrf.mxu0
    %v264 = vadd.f32 %v131, %v263
    %v265 = vpop.f32.mrf.mxu0
    %v266 = vadd.f32 %v131, %v265
    %267 = vmatmul.bf16.gmra.mxu0 %v202
    %v268 = vpop.f32.mrf.mxu0
    %v269 = vadd.f32 %v131, %v268
    %v270 = vpop.f32.mrf.mxu0
    %v271 = vadd.f32 %v131, %v270
    %272 = vmatmul.bf16.gmra.mxu0 %v205
    %v273 = vpop.f32.mrf.mxu0
    %v274 = vadd.f32 %v131, %v273
    %v275 = vpop.f32.mrf.mxu0
    %v276 = vadd.f32 %v131, %v275
    %277 = vdwg.mxu0
    %278 = vmatpush.bf16.msra.mxu0 0
    %279 = vmatpush.bf16.msra.mxu0 0
    %280 = vmatpush.bf16.msra.mxu0 0
    %281 = vmatpush.bf16.msra.mxu0 0
    %282 = vmatpush.bf16.msra.mxu0 0
    %283 = vmatpush.bf16.msra.mxu0 0
    %284 = vmatpush.bf16.msra.mxu0 %v215
    %285 = vmatpush.bf16.msra.mxu0 %v184
    %286 = vmatmul.bf16.gmra.mxu0 %v196
    %v287 = vpop.f32.mrf.mxu0
    %v288 = vadd.f32 %v132, %v287
    %v289 = vpop.f32.mrf.mxu0
    %v290 = vadd.f32 %v132, %v289
    %291 = vmatmul.bf16.gmra.mxu0 %v199
    %v292 = vpop.f32.mrf.mxu0
    %v293 = vadd.f32 %v132, %v292
    %v294 = vpop.f32.mrf.mxu0
    %v295 = vadd.f32 %v132, %v294
    %296 = vmatmul.bf16.gmra.mxu0 %v202
    %v297 = vpop.f32.mrf.mxu0
    %v298 = vadd.f32 %v132, %v297
    %v299 = vpop.f32.mrf.mxu0
    %v300 = vadd.f32 %v132, %v299
    %301 = vmatmul.bf16.gmra.mxu0 %v205
    %v302 = vpop.f32.mrf.mxu0
    %v303 = vadd.f32 %v132, %v302
    %v304 = vpop.f32.mrf.mxu0
    %v305 = vadd.f32 %v132, %v304
    %306 = vdwg.mxu0
    %307 = vmatpush.bf16.msra.mxu0 0
    %308 = vmatpush.bf16.msra.mxu0 0
    %309 = vmatpush.bf16.msra.mxu0 0
    %310 = vmatpush.bf16.msra.mxu0 0
    %311 = vmatpush.bf16.msra.mxu0 0
    %312 = vmatpush.bf16.msra.mxu0 0
    %313 = vmatpush.bf16.msra.mxu0 %v218
    %314 = vmatpush.bf16.msra.mxu0 %v185
    %315 = vmatmul.bf16.gmra.mxu0 %v196
    %v316 = vpop.f32.mrf.mxu0
    %v317 = vadd.f32 %v133, %v316
    %v318 = vpop.f32.mrf.mxu0
    %v319 = vadd.f32 %v133, %v318
    %320 = vmatmul.bf16.gmra.mxu0 %v199
    %v321 = vpop.f32.mrf.mxu0
    %v322 = vadd.f32 %v133, %v321
    %v323 = vpop.f32.mrf.mxu0
    %v324 = vadd.f32 %v133, %v323
    %325 = vmatmul.bf16.gmra.mxu0 %v202
    %v326 = vpop.f32.mrf.mxu0
    %v327 = vadd.f32 %v133, %v326
    %v328 = vpop.f32.mrf.mxu0
    %v329 = vadd.f32 %v133, %v328
    %330 = vmatmul.bf16.gmra.mxu0 %v205
    %v331 = vpop.f32.mrf.mxu0
    %v332 = vadd.f32 %v133, %v331
    %v333 = vpop.f32.mrf.mxu0
    %v334 = vadd.f32 %v133, %v333
    %335 = vdwg.mxu0
    %v336 = vld [vmem:[%s6] sm:$0xf]
    %v338 = vperm.slane %v336, 0
    %v339 = vperm.slane %v336, 1
    %v340 = vperm.slane %v336, 2
    %v341 = vperm.slane %v336, 3
    %v346 = vld [vmem:[#allocation8] sm:$0xff]
    %v347 = vld [vmem:[#allocation8 + $0x8] sm:$0xff]
    %v348 = vld [vmem:[#allocation8 + $0x10] sm:$0xff]
    %v349 = vld [vmem:[#allocation8 + $0x18] sm:$0xff]
    %v350 = vld [vmem:[#allocation8 + $0x20] sm:$0xff]
    %v351 = vld [vmem:[#allocation8 + $0x28] sm:$0xff]
    %v352 = vld [vmem:[#allocation8 + $0x30] sm:$0xff]
    %v353 = vld [vmem:[#allocation8 + $0x38] sm:$0xff]
    %v354 = vld [vmem:[#allocation8 + $0x40] sm:$0xff]
    %v355 = vld [vmem:[#allocation8 + $0x48] sm:$0xff]
    %v356 = vld [vmem:[#allocation8 + $0x50] sm:$0xff]
    %v357 = vld [vmem:[#allocation8 + $0x58] sm:$0xff]
    %v358 = vld [vmem:[#allocation8 + $0x60] sm:$0xff]
    %v359 = vld [vmem:[#allocation8 + $0x68] sm:$0xff]
    %v360 = vld [vmem:[#allocation8 + $0x70] sm:$0xff]
    %v361 = vld [vmem:[#allocation8 + $0x78] sm:$0xff]
    %v362 = vld [vmem:[#allocation8 + $0x80] sm:$0xff]
    %v363 = vld [vmem:[#allocation8 + $0x88] sm:$0xff]
    %v364 = vld [vmem:[#allocation8 + $0x90] sm:$0xff]
    %v365 = vld [vmem:[#allocation8 + $0x98] sm:$0xff]
    %v366 = vld [vmem:[#allocation8 + $0xa0] sm:$0xff]
    %v367 = vld [vmem:[#allocation8 + $0xa8] sm:$0xff]
    %v368 = vld [vmem:[#allocation8 + $0xb0] sm:$0xff]
    %v369 = vld [vmem:[#allocation8 + $0xb8] sm:$0xff]
    %v370 = vld [vmem:[#allocation8 + $0xc0] sm:$0xff]
    %v371 = vld [vmem:[#allocation8 + $0xc8] sm:$0xff]
    %v372 = vld [vmem:[#allocation8 + $0xd0] sm:$0xff]
    %v373 = vld [vmem:[#allocation8 + $0xd8] sm:$0xff]
    %v374 = vld [vmem:[#allocation8 + $0xe0] sm:$0xff]
    %v375 = vld [vmem:[#allocation8 + $0xe8] sm:$0xff]
    %v376 = vld [vmem:[#allocation8 + $0xf0] sm:$0xff]
    %v377 = vld [vmem:[#allocation8 + $0xf8] sm:$0xff]
    %v378 = vld [vmem:[#allocation5] sm:$0xff]
    %v379 = vld [vmem:[#allocation5 + $0x8] sm:$0xff]
    %v380 = vld [vmem:[#allocation5 + $0x10] sm:$0xff]
    %v381 = vld [vmem:[#allocation5 + $0x18] sm:$0xff]
    %v382 = vld [vmem:[#allocation5 + $0x20] sm:$0xff]
    %v383 = vld [vmem:[#allocation5 + $0x28] sm:$0xff]
    %v384 = vld [vmem:[#allocation5 + $0x30] sm:$0xff]
    %v385 = vld [vmem:[#allocation5 + $0x38] sm:$0xff]
    %v386 = vld [vmem:[#allocation5 + $0x40] sm:$0xff]
    %v387 = vld [vmem:[#allocation5 + $0x48] sm:$0xff]
    %v388 = vld [vmem:[#allocation5 + $0x50] sm:$0xff]
    %v389 = vld [vmem:[#allocation5 + $0x58] sm:$0xff]
    %v390 = vld [vmem:[#allocation5 + $0x60] sm:$0xff]
    %v391 = vld [vmem:[#allocation5 + $0x68] sm:$0xff]
    %v392 = vld [vmem:[#allocation5 + $0x70] sm:$0xff]
    %v393 = vld [vmem:[#allocation5 + $0x78] sm:$0xff]
    %v394 = vld [vmem:[#allocation5 + $0x80] sm:$0xff]
    %v395 = vld [vmem:[#allocation5 + $0x88] sm:$0xff]
    %v396 = vld [vmem:[#allocation5 + $0x90] sm:$0xff]
    %v397 = vld [vmem:[#allocation5 + $0x98] sm:$0xff]
    %v398 = vld [vmem:[#allocation5 + $0xa0] sm:$0xff]
    %v399 = vld [vmem:[#allocation5 + $0xa8] sm:$0xff]
    %v400 = vld [vmem:[#allocation5 + $0xb0] sm:$0xff]
    %v401 = vld [vmem:[#allocation5 + $0xb8] sm:$0xff]
    %v402 = vld [vmem:[#allocation5 + $0xc0] sm:$0xff]
    %v403 = vld [vmem:[#allocation5 + $0xc8] sm:$0xff]
    %v404 = vld [vmem:[#allocation5 + $0xd0] sm:$0xff]
    %v405 = vld [vmem:[#allocation5 + $0xd8] sm:$0xff]
    %v406 = vld [vmem:[#allocation5 + $0xe0] sm:$0xff]
    %v407 = vld [vmem:[#allocation5 + $0xe8] sm:$0xff]
    %v408 = vld [vmem:[#allocation5 + $0xf0] sm:$0xff]
    %v409 = vld [vmem:[#allocation5 + $0xf8] sm:$0xff]
    %v442 = vunpack.c.l.b16 %v378
    %v443 = vunpack.c.h.b16 %v378
    %v444 = vunpack.c.l.b16 %v379
    %v445 = vunpack.c.h.b16 %v379
    %v446 = vunpack.c.l.b16 %v380
    %v447 = vunpack.c.h.b16 %v380
    %v448 = vunpack.c.l.b16 %v381
    %v449 = vunpack.c.h.b16 %v381
    %v450 = vunpack.c.l.b16 %v382
    %v451 = vunpack.c.h.b16 %v382
    %v452 = vunpack.c.l.b16 %v383
    %v453 = vunpack.c.h.b16 %v383
    %v454 = vunpack.c.l.b16 %v384
    %v455 = vunpack.c.h.b16 %v384
    %v456 = vunpack.c.l.b16 %v385
    %v457 = vunpack.c.h.b16 %v385
    %v458 = vunpack.c.l.b16 %v386
    %v459 = vunpack.c.h.b16 %v386
    %v460 = vunpack.c.l.b16 %v387
    %v461 = vunpack.c.h.b16 %v387
    %v462 = vunpack.c.l.b16 %v388
    %v463 = vunpack.c.h.b16 %v388
    %v464 = vunpack.c.l.b16 %v389
    %v465 = vunpack.c.h.b16 %v389
    %v466 = vunpack.c.l.b16 %v390
    %v467 = vunpack.c.h.b16 %v390
    %v468 = vunpack.c.l.b16 %v391
    %v469 = vunpack.c.h.b16 %v391
    %v470 = vunpack.c.l.b16 %v392
    %v471 = vunpack.c.h.b16 %v392
    %v472 = vunpack.c.l.b16 %v393
    %v473 = vunpack.c.h.b16 %v393
    %v474 = vunpack.c.l.b16 %v394
    %v475 = vunpack.c.h.b16 %v394
    %v476 = vunpack.c.l.b16 %v395
    %v477 = vunpack.c.h.b16 %v395
    %v478 = vunpack.c.l.b16 %v396
    %v479 = vunpack.c.h.b16 %v396
    %v480 = vunpack.c.l.b16 %v397
    %v481 = vunpack.c.h.b16 %v397
    %v482 = vunpack.c.l.b16 %v398
    %v483 = vunpack.c.h.b16 %v398
    %v484 = vunpack.c.l.b16 %v399
    %v485 = vunpack.c.h.b16 %v399
    %v486 = vunpack.c.l.b16 %v400
    %v487 = vunpack.c.h.b16 %v400
    %v488 = vunpack.c.l.b16 %v401
    %v489 = vunpack.c.h.b16 %v401
    %v490 = vunpack.c.l.b16 %v402
    %v491 = vunpack.c.h.b16 %v402
    %v492 = vunpack.c.l.b16 %v403
    %v493 = vunpack.c.h.b16 %v403
    %v494 = vunpack.c.l.b16 %v404
    %v495 = vunpack.c.h.b16 %v404
    %v496 = vunpack.c.l.b16 %v405
    %v497 = vunpack.c.h.b16 %v405
    %v498 = vunpack.c.l.b16 %v406
    %v499 = vunpack.c.h.b16 %v406
    %v500 = vunpack.c.l.b16 %v407
    %v501 = vunpack.c.h.b16 %v407
    %v502 = vunpack.c.l.b16 %v408
    %v503 = vunpack.c.h.b16 %v408
    %v504 = vunpack.c.l.b16 %v409
    %v505 = vunpack.c.h.b16 %v409
    %v506 = vpack.c.b16 %v446, %v442
    %v507 = vpack.c.b16 %v447, %v443
    %v508 = vpack.c.b16 %v448, %v444
    %v509 = vpack.c.b16 %v449, %v445
    %v510 = vpack.c.b16 %v454, %v450
    %v511 = vpack.c.b16 %v455, %v451
    %v512 = vpack.c.b16 %v456, %v452
    %v513 = vpack.c.b16 %v457, %v453
    %v514 = vpack.c.b16 %v462, %v458
    %v515 = vpack.c.b16 %v463, %v459
    %v516 = vpack.c.b16 %v464, %v460
    %v517 = vpack.c.b16 %v465, %v461
    %v518 = vpack.c.b16 %v470, %v466
    %v519 = vpack.c.b16 %v471, %v467
    %v520 = vpack.c.b16 %v472, %v468
    %v521 = vpack.c.b16 %v473, %v469
    %v522 = vpack.c.b16 %v478, %v474
    %v523 = vpack.c.b16 %v479, %v475
    %v524 = vpack.c.b16 %v480, %v476
    %v525 = vpack.c.b16 %v481, %v477
    %v526 = vpack.c.b16 %v486, %v482
    %v527 = vpack.c.b16 %v487, %v483
    %v528 = vpack.c.b16 %v488, %v484
    %v529 = vpack.c.b16 %v489, %v485
    %v530 = vpack.c.b16 %v494, %v490
    %v531 = vpack.c.b16 %v495, %v491
    %v532 = vpack.c.b16 %v496, %v492
    %v533 = vpack.c.b16 %v497, %v493
    %v534 = vpack.c.b16 %v502, %v498
    %v535 = vpack.c.b16 %v503, %v499
    %v536 = vpack.c.b16 %v504, %v500
    %v537 = vpack.c.b16 %v505, %v501
    %570 = vmatpush.bf16.msra.mxu0 %v534
    %571 = vmatpush.bf16.msra.mxu0 %v530
    %572 = vmatpush.bf16.msra.mxu0 %v526
    %573 = vmatpush.bf16.msra.mxu0 %v522
    %574 = vmatpush.bf16.msra.mxu0 %v518
    %575 = vmatpush.bf16.msra.mxu0 %v514
    %576 = vmatpush.bf16.msra.mxu0 %v510
    %577 = vmatpush.bf16.msra.mxu0 %v506
    %578 = vmatmul.bf16.gmra.mxu0 0
    %v579 = vpop.f32.mrf.mxu0
    %v580 = vadd.f32 0.0, %v579
    %v581 = vpop.f32.mrf.mxu0
    %582 = vdwg.mxu0
    %583 = vmatpush.bf16.msra.mxu0 %v535
    %584 = vmatpush.bf16.msra.mxu0 %v531
    %585 = vmatpush.bf16.msra.mxu0 %v527
    %586 = vmatpush.bf16.msra.mxu0 %v523
    %587 = vmatpush.bf16.msra.mxu0 %v519
    %588 = vmatpush.bf16.msra.mxu0 %v515
    %589 = vmatpush.bf16.msra.mxu0 %v511
    %590 = vmatpush.bf16.msra.mxu0 %v507
    %591 = vmatmul.bf16.gmra.mxu0 0
    %v592 = vpop.f32.mrf.mxu0
    %v593 = vadd.f32 0.0, %v592
    %v594 = vpop.f32.mrf.mxu0
    %595 = vdwg.mxu0
    %596 = vmatpush.bf16.msra.mxu0 %v536
    %597 = vmatpush.bf16.msra.mxu0 %v532
    %598 = vmatpush.bf16.msra.mxu0 %v528
    %599 = vmatpush.bf16.msra.mxu0 %v524
    %600 = vmatpush.bf16.msra.mxu0 %v520
    %601 = vmatpush.bf16.msra.mxu0 %v516
    %602 = vmatpush.bf16.msra.mxu0 %v512
    %603 = vmatpush.bf16.msra.mxu0 %v508
    %604 = vmatmul.bf16.gmra.mxu0 0
    %v605 = vpop.f32.mrf.mxu0
    %v606 = vadd.f32 0.0, %v605
    %v607 = vpop.f32.mrf.mxu0
    %608 = vdwg.mxu0
    %609 = vmatpush.bf16.msra.mxu0 %v537
    %610 = vmatpush.bf16.msra.mxu0 %v533
    %611 = vmatpush.bf16.msra.mxu0 %v529
    %612 = vmatpush.bf16.msra.mxu0 %v525
    %613 = vmatpush.bf16.msra.mxu0 %v521
    %614 = vmatpush.bf16.msra.mxu0 %v517
    %615 = vmatpush.bf16.msra.mxu0 %v513
    %616 = vmatpush.bf16.msra.mxu0 %v509
    %617 = vmatmul.bf16.gmra.mxu0 0
    %v618 = vpop.f32.mrf.mxu0
    %v619 = vadd.f32 0.0, %v618
    %v620 = vpop.f32.mrf.mxu0
    %621 = vdwg.mxu0
    %v622 = vadd.f32 %v230, %v580
    %v623 = vadd.f32 %v259, %v593
    %v624 = vadd.f32 %v288, %v606
    %v625 = vadd.f32 %v317, %v619
    %v626 = vmul.f32 %v622, 0.5
    %v627 = vtanh.pop %v626
    %v628 = vmul.f32 %v627, 0.5
    %v629 = vadd.f32 %v628, 0.5
    %v630 = vmul.f32 %v623, 0.5
    %v631 = vtanh.pop %v630
    %v632 = vmul.f32 %v631, 0.5
    %v633 = vadd.f32 %v632, 0.5
    %v634 = vtanh.pop %v624
    %v635 = vmul.f32 %v625, 0.5
    %v636 = vtanh.pop %v635
    %v637 = vmul.f32 %v636, 0.5
    %v638 = vadd.f32 %v637, 0.5
    %v639 = vmul.f32 %v633, 0.0
    %v640 = vmul.f32 %v629, %v634
    %v641 = vadd.f32 %v639, %v640
    %v642 = vtanh.pop %v641
    %v643 = vmul.f32 %v638, %v642
    %v644 = vpack.c.bf16 %v643, %v643
    %v645 = vld [vmem:[#allocation7] sm:$0xff]
    %v646 = vld [vmem:[#allocation7 + $0x8] sm:$0xff]
    %v647 = vld [vmem:[#allocation7 + $0x10] sm:$0xff]
    %v648 = vld [vmem:[#allocation7 + $0x18] sm:$0xff]
    %v649 = vld [vmem:[#allocation7 + $0x20] sm:$0xff]
    %v650 = vld [vmem:[#allocation7 + $0x28] sm:$0xff]
    %v651 = vld [vmem:[#allocation7 + $0x30] sm:$0xff]
    %v652 = vld [vmem:[#allocation7 + $0x38] sm:$0xff]
    %v653 = vld [vmem:[#allocation7 + $0x40] sm:$0xff]
    %v654 = vld [vmem:[#allocation7 + $0x48] sm:$0xff]
    %v655 = vld [vmem:[#allocation7 + $0x50] sm:$0xff]
    %v656 = vld [vmem:[#allocation7 + $0x58] sm:$0xff]
    %v657 = vld [vmem:[#allocation7 + $0x60] sm:$0xff]
    %v658 = vld [vmem:[#allocation7 + $0x68] sm:$0xff]
    %v659 = vld [vmem:[#allocation7 + $0x70] sm:$0xff]
    %v660 = vld [vmem:[#allocation7 + $0x78] sm:$0xff]
    %v661 = vld [vmem:[#allocation7 + $0x80] sm:$0xff]
    %v662 = vld [vmem:[#allocation7 + $0x88] sm:$0xff]
    %v663 = vld [vmem:[#allocation7 + $0x90] sm:$0xff]
    %v664 = vld [vmem:[#allocation7 + $0x98] sm:$0xff]
    %v665 = vld [vmem:[#allocation7 + $0xa0] sm:$0xff]
    %v666 = vld [vmem:[#allocation7 + $0xa8] sm:$0xff]
    %v667 = vld [vmem:[#allocation7 + $0xb0] sm:$0xff]
    %v668 = vld [vmem:[#allocation7 + $0xb8] sm:$0xff]
    %v669 = vld [vmem:[#allocation7 + $0xc0] sm:$0xff]
    %v670 = vld [vmem:[#allocation7 + $0xc8] sm:$0xff]
    %v671 = vld [vmem:[#allocation7 + $0xd0] sm:$0xff]
    %v672 = vld [vmem:[#allocation7 + $0xd8] sm:$0xff]
    %v673 = vld [vmem:[#allocation7 + $0xe0] sm:$0xff]
    %v674 = vld [vmem:[#allocation7 + $0xe8] sm:$0xff]
    %v675 = vld [vmem:[#allocation7 + $0xf0] sm:$0xff]
    %v676 = vld [vmem:[#allocation7 + $0xf8] sm:$0xff]
    %v709 = vunpack.c.l.b16 %v645
    %v710 = vunpack.c.h.b16 %v645
    %v711 = vunpack.c.l.b16 %v646
    %v712 = vunpack.c.h.b16 %v646
    %v713 = vunpack.c.l.b16 %v647
    %v714 = vunpack.c.h.b16 %v647
    %v715 = vunpack.c.l.b16 %v648
    %v716 = vunpack.c.h.b16 %v648
    %v717 = vunpack.c.l.b16 %v649
    %v718 = vunpack.c.h.b16 %v649
    %v719 = vunpack.c.l.b16 %v650
    %v720 = vunpack.c.h.b16 %v650
    %v721 = vunpack.c.l.b16 %v651
    %v722 = vunpack.c.h.b16 %v651
    %v723 = vunpack.c.l.b16 %v652
    %v724 = vunpack.c.h.b16 %v652
    %v725 = vunpack.c.l.b16 %v653
    %v726 = vunpack.c.h.b16 %v653
    %v727 = vunpack.c.l.b16 %v654
    %v728 = vunpack.c.h.b16 %v654
    %v729 = vunpack.c.l.b16 %v655
    %v730 = vunpack.c.h.b16 %v655
    %v731 = vunpack.c.l.b16 %v656
    %v732 = vunpack.c.h.b16 %v656
    %v733 = vunpack.c.l.b16 %v657
    %v734 = vunpack.c.h.b16 %v657
    %v735 = vunpack.c.l.b16 %v658
    %v736 = vunpack.c.h.b16 %v658
    %v737 = vunpack.c.l.b16 %v659
    %v738 = vunpack.c.h.b16 %v659
    %v739 = vunpack.c.l.b16 %v660
    %v740 = vunpack.c.h.b16 %v660
    %v741 = vunpack.c.l.b16 %v661
    %v742 = vunpack.c.h.b16 %v661
    %v743 = vunpack.c.l.b16 %v662
    %v744 = vunpack.c.h.b16 %v662
    %v745 = vunpack.c.l.b16 %v663
    %v746 = vunpack.c.h.b16 %v663
    %v747 = vunpack.c.l.b16 %v664
    %v748 = vunpack.c.h.b16 %v664
    %v749 = vunpack.c.l.b16 %v665
    %v750 = vunpack.c.h.b16 %v665
    %v751 = vunpack.c.l.b16 %v666
    %v752 = vunpack.c.h.b16 %v666
    %v753 = vunpack.c.l.b16 %v667
    %v754 = vunpack.c.h.b16 %v667
    %v755 = vunpack.c.l.b16 %v668
    %v756 = vunpack.c.h.b16 %v668
    %v757 = vunpack.c.l.b16 %v669
    %v758 = vunpack.c.h.b16 %v669
    %v759 = vunpack.c.l.b16 %v670
    %v760 = vunpack.c.h.b16 %v670
    %v761 = vunpack.c.l.b16 %v671
    %v762 = vunpack.c.h.b16 %v671
    %v763 = vunpack.c.l.b16 %v672
    %v764 = vunpack.c.h.b16 %v672
    %v765 = vunpack.c.l.b16 %v673
    %v766 = vunpack.c.h.b16 %v673
    %v767 = vunpack.c.l.b16 %v674
    %v768 = vunpack.c.h.b16 %v674
    %v769 = vunpack.c.l.b16 %v675
    %v770 = vunpack.c.h.b16 %v675
    %v771 = vunpack.c.l.b16 %v676
    %v772 = vunpack.c.h.b16 %v676
    %v773 = vpack.c.b16 %v713, %v709
    %v774 = vpack.c.b16 %v714, %v710
    %v775 = vpack.c.b16 %v715, %v711
    %v776 = vpack.c.b16 %v716, %v712
    %v777 = vpack.c.b16 %v721, %v717
    %v778 = vpack.c.b16 %v722, %v718
    %v779 = vpack.c.b16 %v723, %v719
    %v780 = vpack.c.b16 %v724, %v720
    %v781 = vpack.c.b16 %v729, %v725
    %v782 = vpack.c.b16 %v730, %v726
    %v783 = vpack.c.b16 %v731, %v727
    %v784 = vpack.c.b16 %v732, %v728
    %v785 = vpack.c.b16 %v737, %v733
    %v786 = vpack.c.b16 %v738, %v734
    %v787 = vpack.c.b16 %v739, %v735
    %v788 = vpack.c.b16 %v740, %v736
    %v789 = vpack.c.b16 %v745, %v741
    %v790 = vpack.c.b16 %v746, %v742
    %v791 = vpack.c.b16 %v747, %v743
    %v792 = vpack.c.b16 %v748, %v744
    %v793 = vpack.c.b16 %v753, %v749
    %v794 = vpack.c.b16 %v754, %v750
    %v795 = vpack.c.b16 %v755, %v751
    %v796 = vpack.c.b16 %v756, %v752
    %v797 = vpack.c.b16 %v761, %v757
    %v798 = vpack.c.b16 %v762, %v758
    %v799 = vpack.c.b16 %v763, %v759
    %v800 = vpack.c.b16 %v764, %v760
    %v801 = vpack.c.b16 %v769, %v765
    %v802 = vpack.c.b16 %v770, %v766
    %v803 = vpack.c.b16 %v771, %v767
    %v804 = vpack.c.b16 %v772, %v768
    %837 = vmatpush.bf16.msra.mxu0 %v801
    %838 = vmatpush.bf16.msra.mxu0 %v797
    %839 = vmatpush.bf16.msra.mxu0 %v793
    %840 = vmatpush.bf16.msra.mxu0 %v789
    %841 = vmatpush.bf16.msra.mxu0 %v785
    %842 = vmatpush.bf16.msra.mxu0 %v781
    %843 = vmatpush.bf16.msra.mxu0 %v777
    %844 = vmatpush.bf16.msra.mxu0 %v773
    %845 = vmatmul.bf16.gmra.mxu0 %v644
    %v846 = vpop.f32.mrf.mxu0
    %v847 = vadd.f32 0.0, %v846
    %v848 = vpop.f32.mrf.mxu0
    %849 = vdwg.mxu0
    %850 = vmatpush.bf16.msra.mxu0 %v802
    %851 = vmatpush.bf16.msra.mxu0 %v798
    %852 = vmatpush.bf16.msra.mxu0 %v794
    %853 = vmatpush.bf16.msra.mxu0 %v790
    %854 = vmatpush.bf16.msra.mxu0 %v786
    %855 = vmatpush.bf16.msra.mxu0 %v782
    %856 = vmatpush.bf16.msra.mxu0 %v778
    %857 = vmatpush.bf16.msra.mxu0 %v774
    %858 = vmatmul.bf16.gmra.mxu0 %v644
    %v859 = vpop.f32.mrf.mxu0
    %v860 = vadd.f32 0.0, %v859
    %v861 = vpop.f32.mrf.mxu0
    %862 = vdwg.mxu0
    %863 = vmatpush.bf16.msra.mxu0 %v803
    %864 = vmatpush.bf16.msra.mxu0 %v799
    %865 = vmatpush.bf16.msra.mxu0 %v795
    %866 = vmatpush.bf16.msra.mxu0 %v791
    %867 = vmatpush.bf16.msra.mxu0 %v787
    %868 = vmatpush.bf16.msra.mxu0 %v783
    %869 = vmatpush.bf16.msra.mxu0 %v779
    %870 = vmatpush.bf16.msra.mxu0 %v775
    %871 = vmatmul.bf16.gmra.mxu0 %v644
    %v872 = vpop.f32.mrf.mxu0
    %v873 = vadd.f32 0.0, %v872
    %v874 = vpop.f32.mrf.mxu0
    %875 = vdwg.mxu0
    %876 = vmatpush.bf16.msra.mxu0 %v804
    %877 = vmatpush.bf16.msra.mxu0 %v800
    %878 = vmatpush.bf16.msra.mxu0 %v796
    %879 = vmatpush.bf16.msra.mxu0 %v792
    %880 = vmatpush.bf16.msra.mxu0 %v788
    %881 = vmatpush.bf16.msra.mxu0 %v784
    %882 = vmatpush.bf16.msra.mxu0 %v780
    %883 = vmatpush.bf16.msra.mxu0 %v776
    %884 = vmatmul.bf16.gmra.mxu0 %v644
    %v885 = vpop.f32.mrf.mxu0
    %v886 = vadd.f32 0.0, %v885
    %v887 = vpop.f32.mrf.mxu0
    %888 = vdwg.mxu0
    %v921 = vunpack.c.l.b16 %v346
    %v922 = vunpack.c.h.b16 %v346
    %v923 = vunpack.c.l.b16 %v347
    %v924 = vunpack.c.h.b16 %v347
    %v925 = vunpack.c.l.b16 %v348
    %v926 = vunpack.c.h.b16 %v348
    %v927 = vunpack.c.l.b16 %v349
    %v928 = vunpack.c.h.b16 %v349
    %v929 = vunpack.c.l.b16 %v350
    %v930 = vunpack.c.h.b16 %v350
    %v931 = vunpack.c.l.b16 %v351
    %v932 = vunpack.c.h.b16 %v351
    %v933 = vunpack.c.l.b16 %v352
    %v934 = vunpack.c.h.b16 %v352
    %v935 = vunpack.c.l.b16 %v353
    %v936 = vunpack.c.h.b16 %v353
    %v937 = vunpack.c.l.b16 %v354
    %v938 = vunpack.c.h.b16 %v354
    %v939 = vunpack.c.l.b16 %v355
    %v940 = vunpack.c.h.b16 %v355
    %v941 = vunpack.c.l.b16 %v356
    %v942 = vunpack.c.h.b16 %v356
    %v943 = vunpack.c.l.b16 %v357
    %v944 = vunpack.c.h.b16 %v357
    %v945 = vunpack.c.l.b16 %v358
    %v946 = vunpack.c.h.b16 %v358
    %v947 = vunpack.c.l.b16 %v359
    %v948 = vunpack.c.h.b16 %v359
    %v949 = vunpack.c.l.b16 %v360
    %v950 = vunpack.c.h.b16 %v360
    %v951 = vunpack.c.l.b16 %v361
    %v952 = vunpack.c.h.b16 %v361
    %v953 = vunpack.c.l.b16 %v362
    %v954 = vunpack.c.h.b16 %v362
    %v955 = vunpack.c.l.b16 %v363
    %v956 = vunpack.c.h.b16 %v363
    %v957 = vunpack.c.l.b16 %v364
    %v958 = vunpack.c.h.b16 %v364
    %v959 = vunpack.c.l.b16 %v365
    %v960 = vunpack.c.h.b16 %v365
    %v961 = vunpack.c.l.b16 %v366
    %v962 = vunpack.c.h.b16 %v366
    %v963 = vunpack.c.l.b16 %v367
    %v964 = vunpack.c.h.b16 %v367
    %v965 = vunpack.c.l.b16 %v368
    %v966 = vunpack.c.h.b16 %v368
    %v967 = vunpack.c.l.b16 %v369
    %v968 = vunpack.c.h.b16 %v369
    %v969 = vunpack.c.l.b16 %v370
    %v970 = vunpack.c.h.b16 %v370
    %v971 = vunpack.c.l.b16 %v371
    %v972 = vunpack.c.h.b16 %v371
    %v973 = vunpack.c.l.b16 %v372
    %v974 = vunpack.c.h.b16 %v372
    %v975 = vunpack.c.l.b16 %v373
    %v976 = vunpack.c.h.b16 %v373
    %v977 = vunpack.c.l.b16 %v374
    %v978 = vunpack.c.h.b16 %v374
    %v979 = vunpack.c.l.b16 %v375
    %v980 = vunpack.c.h.b16 %v375
    %v981 = vunpack.c.l.b16 %v376
    %v982 = vunpack.c.h.b16 %v376
    %v983 = vunpack.c.l.b16 %v377
    %v984 = vunpack.c.h.b16 %v377
    %v985 = vpack.c.b16 %v925, %v921
    %v986 = vpack.c.b16 %v926, %v922
    %v987 = vpack.c.b16 %v927, %v923
    %v988 = vpack.c.b16 %v928, %v924
    %v989 = vpack.c.b16 %v933, %v929
    %v990 = vpack.c.b16 %v934, %v930
    %v991 = vpack.c.b16 %v935, %v931
    %v992 = vpack.c.b16 %v936, %v932
    %v993 = vpack.c.b16 %v941, %v937
    %v994 = vpack.c.b16 %v942, %v938
    %v995 = vpack.c.b16 %v943, %v939
    %v996 = vpack.c.b16 %v944, %v940
    %v997 = vpack.c.b16 %v949, %v945
    %v998 = vpack.c.b16 %v950, %v946
    %v999 = vpack.c.b16 %v951, %v947
    %v1000 = vpack.c.b16 %v952, %v948
    %v1001 = vpack.c.b16 %v957, %v953
    %v1002 = vpack.c.b16 %v958, %v954
    %v1003 = vpack.c.b16 %v959, %v955
    %v1004 = vpack.c.b16 %v960, %v956
    %v1005 = vpack.c.b16 %v965, %v961
    %v1006 = vpack.c.b16 %v966, %v962
    %v1007 = vpack.c.b16 %v967, %v963
    %v1008 = vpack.c.b16 %v968, %v964
    %v1009 = vpack.c.b16 %v973, %v969
    %v1010 = vpack.c.b16 %v974, %v970
    %v1011 = vpack.c.b16 %v975, %v971
    %v1012 = vpack.c.b16 %v976, %v972
    %v1013 = vpack.c.b16 %v981, %v977
    %v1014 = vpack.c.b16 %v982, %v978
    %v1015 = vpack.c.b16 %v983, %v979
    %v1016 = vpack.c.b16 %v984, %v980
    %1049 = vmatpush.bf16.msra.mxu0 %v1013
    %1050 = vmatpush.bf16.msra.mxu0 %v1009
    %1051 = vmatpush.bf16.msra.mxu0 %v1005
    %1052 = vmatpush.bf16.msra.mxu0 %v1001
    %1053 = vmatpush.bf16.msra.mxu0 %v997
    %1054 = vmatpush.bf16.msra.mxu0 %v993
    %1055 = vmatpush.bf16.msra.mxu0 %v989
    %1056 = vmatpush.bf16.msra.mxu0 %v985
    %1057 = vmatmul.bf16.gmra.mxu0 0
    %v1058 = vpop.f32.mrf.mxu0
    %v1059 = vadd.f32 %v847, %v1058
    %v1060 = vpop.f32.mrf.mxu0
    %1061 = vdwg.mxu0
    %1062 = vmatpush.bf16.msra.mxu0 %v1014
    %1063 = vmatpush.bf16.msra.mxu0 %v1010
    %1064 = vmatpush.bf16.msra.mxu0 %v1006
    %1065 = vmatpush.bf16.msra.mxu0 %v1002
    %1066 = vmatpush.bf16.msra.mxu0 %v998
    %1067 = vmatpush.bf16.msra.mxu0 %v994
    %1068 = vmatpush.bf16.msra.mxu0 %v990
    %1069 = vmatpush.bf16.msra.mxu0 %v986
    %1070 = vmatmul.bf16.gmra.mxu0 0
    %v1071 = vpop.f32.mrf.mxu0
    %v1072 = vadd.f32 %v860, %v1071
    %v1073 = vpop.f32.mrf.mxu0
    %1074 = vdwg.mxu0
    %1075 = vmatpush.bf16.msra.mxu0 %v1015
    %1076 = vmatpush.bf16.msra.mxu0 %v1011
    %1077 = vmatpush.bf16.msra.mxu0 %v1007
    %1078 = vmatpush.bf16.msra.mxu0 %v1003
    %1079 = vmatpush.bf16.msra.mxu0 %v999
    %1080 = vmatpush.bf16.msra.mxu0 %v995
    %1081 = vmatpush.bf16.msra.mxu0 %v991
    %1082 = vmatpush.bf16.msra.mxu0 %v987
    %1083 = vmatmul.bf16.gmra.mxu0 0
    %v1084 = vpop.f32.mrf.mxu0
    %v1085 = vadd.f32 %v873, %v1084
    %v1086 = vpop.f32.mrf.mxu0
    %1087 = vdwg.mxu0
    %1088 = vmatpush.bf16.msra.mxu0 %v1016
    %1089 = vmatpush.bf16.msra.mxu0 %v1012
    %1090 = vmatpush.bf16.msra.mxu0 %v1008
    %1091 = vmatpush.bf16.msra.mxu0 %v1004
    %1092 = vmatpush.bf16.msra.mxu0 %v1000
    %1093 = vmatpush.bf16.msra.mxu0 %v996
    %1094 = vmatpush.bf16.msra.mxu0 %v992
    %1095 = vmatpush.bf16.msra.mxu0 %v988
    %1096 = vmatmul.bf16.gmra.mxu0 0
    %v1097 = vpop.f32.mrf.mxu0
    %v1098 = vadd.f32 %v886, %v1097
    %v1099 = vpop.f32.mrf.mxu0
    %1100 = vdwg.mxu0
    %v1101 = vadd.f32 %v1059, %v338
    %v1102 = vadd.f32 %v1072, %v339
    %v1103 = vadd.f32 %v1085, %v340
    %v1104 = vadd.f32 %v1098, %v341
    %v1105 = vmul.f32 %v1101, 0.5
    %v1106 = vtanh.pop %v1105
    %v1107 = vmul.f32 %v1106, 0.5
    %v1108 = vadd.f32 %v1107, 0.5
    %v1109 = vmul.f32 %v1102, 0.5
    %v1110 = vtanh.pop %v1109
    %v1111 = vmul.f32 %v1110, 0.5
    %v1112 = vadd.f32 %v1111, 0.5
    %v1113 = vtanh.pop %v1103
    %v1114 = vmul.f32 %v1104, 0.5
    %v1115 = vtanh.pop %v1114
    %v1116 = vmul.f32 %v1115, 0.5
    %v1117 = vadd.f32 %v1116, 0.5
    %v1118 = vmul.f32 %v1112, 0.0
    %v1119 = vmul.f32 %v1108, %v1113
    %v1120 = vadd.f32 %v1118, %v1119
    %v1121 = vtanh.pop %v1120
    %v1122 = vmul.f32 %v1117, %v1121
    %v1123 = vpack.c.bf16 %v1122, %v1122
    %1124 = vmatpush.bf16.msra.mxu0 %v534
    %1125 = vmatpush.bf16.msra.mxu0 %v530
    %1126 = vmatpush.bf16.msra.mxu0 %v526
    %1127 = vmatpush.bf16.msra.mxu0 %v522
    %1128 = vmatpush.bf16.msra.mxu0 %v518
    %1129 = vmatpush.bf16.msra.mxu0 %v514
    %1130 = vmatpush.bf16.msra.mxu0 %v510
    %1131 = vmatpush.bf16.msra.mxu0 %v506
    %1132 = vmatmul.bf16.gmra.mxu0 %v644
    %v1133 = vpop.f32.mrf.mxu0
    %v1134 = vadd.f32 0.0, %v1133
    %v1135 = vpop.f32.mrf.mxu0
    %1136 = vdwg.mxu0
    %1137 = vmatpush.bf16.msra.mxu0 %v535
    %1138 = vmatpush.bf16.msra.mxu0 %v531
    %1139 = vmatpush.bf16.msra.mxu0 %v527
    %1140 = vmatpush.bf16.msra.mxu0 %v523
    %1141 = vmatpush.bf16.msra.mxu0 %v519
    %1142 = vmatpush.bf16.msra.mxu0 %v515
    %1143 = vmatpush.bf16.msra.mxu0 %v511
    %1144 = vmatpush.bf16.msra.mxu0 %v507
    %1145 = vmatmul.bf16.gmra.mxu0 %v644
    %v1146 = vpop.f32.mrf.mxu0
    %v1147 = vadd.f32 0.0, %v1146
    %v1148 = vpop.f32.mrf.mxu0
    %1149 = vdwg.mxu0
    %1150 = vmatpush.bf16.msra.mxu0 %v536
    %1151 = vmatpush.bf16.msra.mxu0 %v532
    %1152 = vmatpush.bf16.msra.mxu0 %v528
    %1153 = vmatpush.bf16.msra.mxu0 %v524
    %1154 = vmatpush.bf16.msra.mxu0 %v520
    %1155 = vmatpush.bf16.msra.mxu0 %v516
    %1156 = vmatpush.bf16.msra.mxu0 %v512
    %1157 = vmatpush.bf16.msra.mxu0 %v508
    %1158 = vmatmul.bf16.gmra.mxu0 %v644
    %v1159 = vpop.f32.mrf.mxu0
    %v1160 = vadd.f32 0.0, %v1159
    %v1161 = vpop.f32.mrf.mxu0
    %1162 = vdwg.mxu0
    %1163 = vmatpush.bf16.msra.mxu0 %v537
    %1164 = vmatpush.bf16.msra.mxu0 %v533
    %1165 = vmatpush.bf16.msra.mxu0 %v529
    %1166 = vmatpush.bf16.msra.mxu0 %v525
    %1167 = vmatpush.bf16.msra.mxu0 %v521
    %1168 = vmatpush.bf16.msra.mxu0 %v517
    %1169 = vmatpush.bf16.msra.mxu0 %v513
    %1170 = vmatpush.bf16.msra.mxu0 %v509
    %1171 = vmatmul.bf16.gmra.mxu0 %v644
    %v1172 = vpop.f32.mrf.mxu0
    %v1173 = vadd.f32 0.0, %v1172
    %v1174 = vpop.f32.mrf.mxu0
    %1175 = vdwg.mxu0
    %v1176 = vadd.f32 %v232, %v1134
    %v1177 = vadd.f32 %v261, %v1147
    %v1178 = vadd.f32 %v290, %v1160
    %v1179 = vadd.f32 %v319, %v1173
    %v1180 = vmul.f32 %v1176, 0.5
    %v1181 = vtanh.pop %v1180
    %v1182 = vmul.f32 %v1181, 0.5
    %v1183 = vadd.f32 %v1182, 0.5
    %v1184 = vmul.f32 %v1177, 0.5
    %v1185 = vtanh.pop %v1184
    %v1186 = vmul.f32 %v1185, 0.5
    %v1187 = vadd.f32 %v1186, 0.5
    %v1188 = vtanh.pop %v1178
    %v1189 = vmul.f32 %v1179, 0.5
    %v1190 = vtanh.pop %v1189
    %v1191 = vmul.f32 %v1190, 0.5
    %v1192 = vadd.f32 %v1191, 0.5
    %v1193 = vmul.f32 %v1187, %v641
    %v1194 = vmul.f32 %v1183, %v1188
    %v1195 = vadd.f32 %v1193, %v1194
    %v1196 = vtanh.pop %v1195
    %v1197 = vmul.f32 %v1192, %v1196
    %v1198 = vpack.c.bf16 %v1197, %v1197
    %1199 = vmatpush.bf16.msra.mxu0 %v801
    %1200 = vmatpush.bf16.msra.mxu0 %v797
    %1201 = vmatpush.bf16.msra.mxu0 %v793
    %1202 = vmatpush.bf16.msra.mxu0 %v789
    %1203 = vmatpush.bf16.msra.mxu0 %v785
    %1204 = vmatpush.bf16.msra.mxu0 %v781
    %1205 = vmatpush.bf16.msra.mxu0 %v777
    %1206 = vmatpush.bf16.msra.mxu0 %v773
    %1207 = vmatmul.bf16.gmra.mxu0 %v1198
    %v1208 = vpop.f32.mrf.mxu0
    %v1209 = vadd.f32 0.0, %v1208
    %v1210 = vpop.f32.mrf.mxu0
    %1211 = vdwg.mxu0
    %1212 = vmatpush.bf16.msra.mxu0 %v802
    %1213 = vmatpush.bf16.msra.mxu0 %v798
    %1214 = vmatpush.bf16.msra.mxu0 %v794
    %1215 = vmatpush.bf16.msra.mxu0 %v790
    %1216 = vmatpush.bf16.msra.mxu0 %v786
    %1217 = vmatpush.bf16.msra.mxu0 %v782
    %1218 = vmatpush.bf16.msra.mxu0 %v778
    %1219 = vmatpush.bf16.msra.mxu0 %v774
    %1220 = vmatmul.bf16.gmra.mxu0 %v1198
    %v1221 = vpop.f32.mrf.mxu0
    %v1222 = vadd.f32 0.0, %v1221
    %v1223 = vpop.f32.mrf.mxu0
    %1224 = vdwg.mxu0
    %1225 = vmatpush.bf16.msra.mxu0 %v803
    %1226 = vmatpush.bf16.msra.mxu0 %v799
    %1227 = vmatpush.bf16.msra.mxu0 %v795
    %1228 = vmatpush.bf16.msra.mxu0 %v791
    %1229 = vmatpush.bf16.msra.mxu0 %v787
    %1230 = vmatpush.bf16.msra.mxu0 %v783
    %1231 = vmatpush.bf16.msra.mxu0 %v779
    %1232 = vmatpush.bf16.msra.mxu0 %v775
    %1233 = vmatmul.bf16.gmra.mxu0 %v1198
    %v1234 = vpop.f32.mrf.mxu0
    %v1235 = vadd.f32 0.0, %v1234
    %v1236 = vpop.f32.mrf.mxu0
    %1237 = vdwg.mxu0
    %1238 = vmatpush.bf16.msra.mxu0 %v804
    %1239 = vmatpush.bf16.msra.mxu0 %v800
    %1240 = vmatpush.bf16.msra.mxu0 %v796
    %1241 = vmatpush.bf16.msra.mxu0 %v792
    %1242 = vmatpush.bf16.msra.mxu0 %v788
    %1243 = vmatpush.bf16.msra.mxu0 %v784
    %1244 = vmatpush.bf16.msra.mxu0 %v780
    %1245 = vmatpush.bf16.msra.mxu0 %v776
    %1246 = vmatmul.bf16.gmra.mxu0 %v1198
    %v1247 = vpop.f32.mrf.mxu0
    %v1248 = vadd.f32 0.0, %v1247
    %v1249 = vpop.f32.mrf.mxu0
    %1250 = vdwg.mxu0
    %1251 = vmatpush.bf16.msra.mxu0 %v1013
    %1252 = vmatpush.bf16.msra.mxu0 %v1009
    %1253 = vmatpush.bf16.msra.mxu0 %v1005
    %1254 = vmatpush.bf16.msra.mxu0 %v1001
    %1255 = vmatpush.bf16.msra.mxu0 %v997
    %1256 = vmatpush.bf16.msra.mxu0 %v993
    %1257 = vmatpush.bf16.msra.mxu0 %v989
    %1258 = vmatpush.bf16.msra.mxu0 %v985
    %1259 = vmatmul.bf16.gmra.mxu0 %v1123
    %v1260 = vpop.f32.mrf.mxu0
    %v1261 = vadd.f32 %v1209, %v1260
    %v1262 = vpop.f32.mrf.mxu0
    %1263 = vdwg.mxu0
    %1264 = vmatpush.bf16.msra.mxu0 %v1014
    %1265 = vmatpush.bf16.msra.mxu0 %v1010
    %1266 = vmatpush.bf16.msra.mxu0 %v1006
    %1267 = vmatpush.bf16.msra.mxu0 %v1002
    %1268 = vmatpush.bf16.msra.mxu0 %v998
    %1269 = vmatpush.bf16.msra.mxu0 %v994
    %1270 = vmatpush.bf16.msra.mxu0 %v990
    %1271 = vmatpush.bf16.msra.mxu0 %v986
    %1272 = vmatmul.bf16.gmra.mxu0 %v1123
    %v1273 = vpop.f32.mrf.mxu0
    %v1274 = vadd.f32 %v1222, %v1273
    %v1275 = vpop.f32.mrf.mxu0
    %1276 = vdwg.mxu0
    %1277 = vmatpush.bf16.msra.mxu0 %v1015
    %1278 = vmatpush.bf16.msra.mxu0 %v1011
    %1279 = vmatpush.bf16.msra.mxu0 %v1007
    %1280 = vmatpush.bf16.msra.mxu0 %v1003
    %1281 = vmatpush.bf16.msra.mxu0 %v999
    %1282 = vmatpush.bf16.msra.mxu0 %v995
    %1283 = vmatpush.bf16.msra.mxu0 %v991
    %1284 = vmatpush.bf16.msra.mxu0 %v987
    %1285 = vmatmul.bf16.gmra.mxu0 %v1123
    %v1286 = vpop.f32.mrf.mxu0
    %v1287 = vadd.f32 %v1235, %v1286
    %v1288 = vpop.f32.mrf.mxu0
    %1289 = vdwg.mxu0
    %1290 = vmatpush.bf16.msra.mxu0 %v1016
    %1291 = vmatpush.bf16.msra.mxu0 %v1012
    %1292 = vmatpush.bf16.msra.mxu0 %v1008
    %1293 = vmatpush.bf16.msra.mxu0 %v1004
    %1294 = vmatpush.bf16.msra.mxu0 %v1000
    %1295 = vmatpush.bf16.msra.mxu0 %v996
    %1296 = vmatpush.bf16.msra.mxu0 %v992
    %1297 = vmatpush.bf16.msra.mxu0 %v988
    %1298 = vmatmul.bf16.gmra.mxu0 %v1123
    %v1299 = vpop.f32.mrf.mxu0
    %v1300 = vadd.f32 %v1248, %v1299
    %v1301 = vpop.f32.mrf.mxu0
    %1302 = vdwg.mxu0
    %v1303 = vadd.f32 %v1261, %v338
    %v1304 = vadd.f32 %v1274, %v339
    %v1305 = vadd.f32 %v1287, %v340
    %v1306 = vadd.f32 %v1300, %v341
    %v1307 = vmul.f32 %v1303, 0.5
    %v1308 = vtanh.pop %v1307
    %v1309 = vmul.f32 %v1308, 0.5
    %v1310 = vadd.f32 %v1309, 0.5
    %v1311 = vmul.f32 %v1304, 0.5
    %v1312 = vtanh.pop %v1311
    %v1313 = vmul.f32 %v1312, 0.5
    %v1314 = vadd.f32 %v1313, 0.5
    %v1315 = vtanh.pop %v1305
    %v1316 = vmul.f32 %v1306, 0.5
    %v1317 = vtanh.pop %v1316
    %v1318 = vmul.f32 %v1317, 0.5
    %v1319 = vadd.f32 %v1318, 0.5
    %v1320 = vmul.f32 %v1314, %v1120
    %v1321 = vmul.f32 %v1310, %v1315
    %v1322 = vadd.f32 %v1320, %v1321
    %v1323 = vtanh.pop %v1322
    %v1324 = vmul.f32 %v1319, %v1323
    %v1325 = vpack.c.bf16 %v1324, %v1324
    %1326 = vmatpush.bf16.msra.mxu0 %v534
    %1327 = vmatpush.bf16.msra.mxu0 %v530
    %1328 = vmatpush.bf16.msra.mxu0 %v526
    %1329 = vmatpush.bf16.msra.mxu0 %v522
    %1330 = vmatpush.bf16.msra.mxu0 %v518
    %1331 = vmatpush.bf16.msra.mxu0 %v514
    %1332 = vmatpush.bf16.msra.mxu0 %v510
    %1333 = vmatpush.bf16.msra.mxu0 %v506
    %1334 = vmatmul.bf16.gmra.mxu0 %v1198
    %v1335 = vpop.f32.mrf.mxu0
    %v1336 = vadd.f32 0.0, %v1335
    %v1337 = vpop.f32.mrf.mxu0
    %1338 = vdwg.mxu0
    %1339 = vmatpush.bf16.msra.mxu0 %v535
    %1340 = vmatpush.bf16.msra.mxu0 %v531
    %1341 = vmatpush.bf16.msra.mxu0 %v527
    %1342 = vmatpush.bf16.msra.mxu0 %v523
    %1343 = vmatpush.bf16.msra.mxu0 %v519
    %1344 = vmatpush.bf16.msra.mxu0 %v515
    %1345 = vmatpush.bf16.msra.mxu0 %v511
    %1346 = vmatpush.bf16.msra.mxu0 %v507
    %1347 = vmatmul.bf16.gmra.mxu0 %v1198
    %v1348 = vpop.f32.mrf.mxu0
    %v1349 = vadd.f32 0.0, %v1348
    %v1350 = vpop.f32.mrf.mxu0
    %1351 = vdwg.mxu0
    %1352 = vmatpush.bf16.msra.mxu0 %v536
    %1353 = vmatpush.bf16.msra.mxu0 %v532
    %1354 = vmatpush.bf16.msra.mxu0 %v528
    %1355 = vmatpush.bf16.msra.mxu0 %v524
    %1356 = vmatpush.bf16.msra.mxu0 %v520
    %1357 = vmatpush.bf16.msra.mxu0 %v516
    %1358 = vmatpush.bf16.msra.mxu0 %v512
    %1359 = vmatpush.bf16.msra.mxu0 %v508
    %1360 = vmatmul.bf16.gmra.mxu0 %v1198
    %v1361 = vpop.f32.mrf.mxu0
    %v1362 = vadd.f32 0.0, %v1361
    %v1363 = vpop.f32.mrf.mxu0
    %1364 = vdwg.mxu0
    %1365 = vmatpush.bf16.msra.mxu0 %v537
    %1366 = vmatpush.bf16.msra.mxu0 %v533
    %1367 = vmatpush.bf16.msra.mxu0 %v529
    %1368 = vmatpush.bf16.msra.mxu0 %v525
    %1369 = vmatpush.bf16.msra.mxu0 %v521
    %1370 = vmatpush.bf16.msra.mxu0 %v517
    %1371 = vmatpush.bf16.msra.mxu0 %v513
    %1372 = vmatpush.bf16.msra.mxu0 %v509
    %1373 = vmatmul.bf16.gmra.mxu0 %v1198
    %v1374 = vpop.f32.mrf.mxu0
    %v1375 = vadd.f32 0.0, %v1374
    %v1376 = vpop.f32.mrf.mxu0
    %1377 = vdwg.mxu0
    %v1378 = vadd.f32 %v235, %v1336
    %v1379 = vadd.f32 %v264, %v1349
    %v1380 = vadd.f32 %v293, %v1362
    %v1381 = vadd.f32 %v322, %v1375
    %v1382 = vmul.f32 %v1378, 0.5
    %v1383 = vtanh.pop %v1382
    %v1384 = vmul.f32 %v1383, 0.5
    %v1385 = vadd.f32 %v1384, 0.5
    %v1386 = vmul.f32 %v1379, 0.5
    %v1387 = vtanh.pop %v1386
    %v1388 = vmul.f32 %v1387, 0.5
    %v1389 = vadd.f32 %v1388, 0.5
    %v1390 = vtanh.pop %v1380
    %v1391 = vmul.f32 %v1381, 0.5
    %v1392 = vtanh.pop %v1391
    %v1393 = vmul.f32 %v1392, 0.5
    %v1394 = vadd.f32 %v1393, 0.5
    %v1395 = vmul.f32 %v1389, %v1195
    %v1396 = vmul.f32 %v1385, %v1390
    %v1397 = vadd.f32 %v1395, %v1396
    %v1398 = vtanh.pop %v1397
    %v1399 = vmul.f32 %v1394, %v1398
    %v1400 = vpack.c.bf16 %v1399, %v1399
    %1401 = vmatpush.bf16.msra.mxu0 %v801
    %1402 = vmatpush.bf16.msra.mxu0 %v797
    %1403 = vmatpush.bf16.msra.mxu0 %v793
    %1404 = vmatpush.bf16.msra.mxu0 %v789
    %1405 = vmatpush.bf16.msra.mxu0 %v785
    %1406 = vmatpush.bf16.msra.mxu0 %v781
    %1407 = vmatpush.bf16.msra.mxu0 %v777
    %1408 = vmatpush.bf16.msra.mxu0 %v773
    %1409 = vmatmul.bf16.gmra.mxu0 %v1400
    %v1410 = vpop.f32.mrf.mxu0
    %v1411 = vadd.f32 0.0, %v1410
    %v1412 = vpop.f32.mrf.mxu0
    %1413 = vdwg.mxu0
    %1414 = vmatpush.bf16.msra.mxu0 %v802
    %1415 = vmatpush.bf16.msra.mxu0 %v798
    %1416 = vmatpush.bf16.msra.mxu0 %v794
    %1417 = vmatpush.bf16.msra.mxu0 %v790
    %1418 = vmatpush.bf16.msra.mxu0 %v786
    %1419 = vmatpush.bf16.msra.mxu0 %v782
    %1420 = vmatpush.bf16.msra.mxu0 %v778
    %1421 = vmatpush.bf16.msra.mxu0 %v774
    %1422 = vmatmul.bf16.gmra.mxu0 %v1400
    %v1423 = vpop.f32.mrf.mxu0
    %v1424 = vadd.f32 0.0, %v1423
    %v1425 = vpop.f32.mrf.mxu0
    %1426 = vdwg.mxu0
    %1427 = vmatpush.bf16.msra.mxu0 %v803
    %1428 = vmatpush.bf16.msra.mxu0 %v799
    %1429 = vmatpush.bf16.msra.mxu0 %v795
    %1430 = vmatpush.bf16.msra.mxu0 %v791
    %1431 = vmatpush.bf16.msra.mxu0 %v787
    %1432 = vmatpush.bf16.msra.mxu0 %v783
    %1433 = vmatpush.bf16.msra.mxu0 %v779
    %1434 = vmatpush.bf16.msra.mxu0 %v775
    %1435 = vmatmul.bf16.gmra.mxu0 %v1400
    %v1436 = vpop.f32.mrf.mxu0
    %v1437 = vadd.f32 0.0, %v1436
    %v1438 = vpop.f32.mrf.mxu0
    %1439 = vdwg.mxu0
    %1440 = vmatpush.bf16.msra.mxu0 %v804
    %1441 = vmatpush.bf16.msra.mxu0 %v800
    %1442 = vmatpush.bf16.msra.mxu0 %v796
    %1443 = vmatpush.bf16.msra.mxu0 %v792
    %1444 = vmatpush.bf16.msra.mxu0 %v788
    %1445 = vmatpush.bf16.msra.mxu0 %v784
    %1446 = vmatpush.bf16.msra.mxu0 %v780
    %1447 = vmatpush.bf16.msra.mxu0 %v776
    %1448 = vmatmul.bf16.gmra.mxu0 %v1400
    %v1449 = vpop.f32.mrf.mxu0
    %v1450 = vadd.f32 0.0, %v1449
    %v1451 = vpop.f32.mrf.mxu0
    %1452 = vdwg.mxu0
    %1453 = vmatpush.bf16.msra.mxu0 %v1013
    %1454 = vmatpush.bf16.msra.mxu0 %v1009
    %1455 = vmatpush.bf16.msra.mxu0 %v1005
    %1456 = vmatpush.bf16.msra.mxu0 %v1001
    %1457 = vmatpush.bf16.msra.mxu0 %v997
    %1458 = vmatpush.bf16.msra.mxu0 %v993
    %1459 = vmatpush.bf16.msra.mxu0 %v989
    %1460 = vmatpush.bf16.msra.mxu0 %v985
    %1461 = vmatmul.bf16.gmra.mxu0 %v1325
    %v1462 = vpop.f32.mrf.mxu0
    %v1463 = vadd.f32 %v1411, %v1462
    %v1464 = vpop.f32.mrf.mxu0
    %1465 = vdwg.mxu0
    %1466 = vmatpush.bf16.msra.mxu0 %v1014
    %1467 = vmatpush.bf16.msra.mxu0 %v1010
    %1468 = vmatpush.bf16.msra.mxu0 %v1006
    %1469 = vmatpush.bf16.msra.mxu0 %v1002
    %1470 = vmatpush.bf16.msra.mxu0 %v998
    %1471 = vmatpush.bf16.msra.mxu0 %v994
    %1472 = vmatpush.bf16.msra.mxu0 %v990
    %1473 = vmatpush.bf16.msra.mxu0 %v986
    %1474 = vmatmul.bf16.gmra.mxu0 %v1325
    %v1475 = vpop.f32.mrf.mxu0
    %v1476 = vadd.f32 %v1424, %v1475
    %v1477 = vpop.f32.mrf.mxu0
    %1478 = vdwg.mxu0
    %1479 = vmatpush.bf16.msra.mxu0 %v1015
    %1480 = vmatpush.bf16.msra.mxu0 %v1011
    %1481 = vmatpush.bf16.msra.mxu0 %v1007
    %1482 = vmatpush.bf16.msra.mxu0 %v1003
    %1483 = vmatpush.bf16.msra.mxu0 %v999
    %1484 = vmatpush.bf16.msra.mxu0 %v995
    %1485 = vmatpush.bf16.msra.mxu0 %v991
    %1486 = vmatpush.bf16.msra.mxu0 %v987
    %1487 = vmatmul.bf16.gmra.mxu0 %v1325
    %v1488 = vpop.f32.mrf.mxu0
    %v1489 = vadd.f32 %v1437, %v1488
    %v1490 = vpop.f32.mrf.mxu0
    %1491 = vdwg.mxu0
    %1492 = vmatpush.bf16.msra.mxu0 %v1016
    %1493 = vmatpush.bf16.msra.mxu0 %v1012
    %1494 = vmatpush.bf16.msra.mxu0 %v1008
    %1495 = vmatpush.bf16.msra.mxu0 %v1004
    %1496 = vmatpush.bf16.msra.mxu0 %v1000
    %1497 = vmatpush.bf16.msra.mxu0 %v996
    %1498 = vmatpush.bf16.msra.mxu0 %v992
    %1499 = vmatpush.bf16.msra.mxu0 %v988
    %1500 = vmatmul.bf16.gmra.mxu0 %v1325
    %v1501 = vpop.f32.mrf.mxu0
    %v1502 = vadd.f32 %v1450, %v1501
    %v1503 = vpop.f32.mrf.mxu0
    %1504 = vdwg.mxu0
    %v1505 = vadd.f32 %v1463, %v338
    %v1506 = vadd.f32 %v1476, %v339
    %v1507 = vadd.f32 %v1489, %v340
    %v1508 = vadd.f32 %v1502, %v341
    %v1509 = vmul.f32 %v1505, 0.5
    %v1510 = vtanh.pop %v1509
    %v1511 = vmul.f32 %v1510, 0.5
    %v1512 = vadd.f32 %v1511, 0.5
    %v1513 = vmul.f32 %v1506, 0.5
    %v1514 = vtanh.pop %v1513
    %v1515 = vmul.f32 %v1514, 0.5
    %v1516 = vadd.f32 %v1515, 0.5
    %v1517 = vtanh.pop %v1507
    %v1518 = vmul.f32 %v1508, 0.5
    %v1519 = vtanh.pop %v1518
    %v1520 = vmul.f32 %v1519, 0.5
    %v1521 = vadd.f32 %v1520, 0.5
    %v1522 = vmul.f32 %v1516, %v1322
    %v1523 = vmul.f32 %v1512, %v1517
    %v1524 = vadd.f32 %v1522, %v1523
    %v1525 = vtanh.pop %v1524
    %v1526 = vmul.f32 %v1521, %v1525
    %v1527 = vpack.c.bf16 %v1526, %v1526
    %1528 = vmatpush.bf16.msra.mxu0 %v534
    %1529 = vmatpush.bf16.msra.mxu0 %v530
    %1530 = vmatpush.bf16.msra.mxu0 %v526
    %1531 = vmatpush.bf16.msra.mxu0 %v522
    %1532 = vmatpush.bf16.msra.mxu0 %v518
    %1533 = vmatpush.bf16.msra.mxu0 %v514
    %1534 = vmatpush.bf16.msra.mxu0 %v510
    %1535 = vmatpush.bf16.msra.mxu0 %v506
    %1536 = vmatmul.bf16.gmra.mxu0 %v1400
    %v1537 = vpop.f32.mrf.mxu0
    %v1538 = vadd.f32 0.0, %v1537
    %v1539 = vpop.f32.mrf.mxu0
    %1540 = vdwg.mxu0
    %1541 = vmatpush.bf16.msra.mxu0 %v535
    %1542 = vmatpush.bf16.msra.mxu0 %v531
    %1543 = vmatpush.bf16.msra.mxu0 %v527
    %1544 = vmatpush.bf16.msra.mxu0 %v523
    %1545 = vmatpush.bf16.msra.mxu0 %v519
    %1546 = vmatpush.bf16.msra.mxu0 %v515
    %1547 = vmatpush.bf16.msra.mxu0 %v511
    %1548 = vmatpush.bf16.msra.mxu0 %v507
    %1549 = vmatmul.bf16.gmra.mxu0 %v1400
    %v1550 = vpop.f32.mrf.mxu0
    %v1551 = vadd.f32 0.0, %v1550
    %v1552 = vpop.f32.mrf.mxu0
    %1553 = vdwg.mxu0
    %1554 = vmatpush.bf16.msra.mxu0 %v536
    %1555 = vmatpush.bf16.msra.mxu0 %v532
    %1556 = vmatpush.bf16.msra.mxu0 %v528
    %1557 = vmatpush.bf16.msra.mxu0 %v524
    %1558 = vmatpush.bf16.msra.mxu0 %v520
    %1559 = vmatpush.bf16.msra.mxu0 %v516
    %1560 = vmatpush.bf16.msra.mxu0 %v512
    %1561 = vmatpush.bf16.msra.mxu0 %v508
    %1562 = vmatmul.bf16.gmra.mxu0 %v1400
    %v1563 = vpop.f32.mrf.mxu0
    %v1564 = vadd.f32 0.0, %v1563
    %v1565 = vpop.f32.mrf.mxu0
    %1566 = vdwg.mxu0
    %1567 = vmatpush.bf16.msra.mxu0 %v537
    %1568 = vmatpush.bf16.msra.mxu0 %v533
    %1569 = vmatpush.bf16.msra.mxu0 %v529
    %1570 = vmatpush.bf16.msra.mxu0 %v525
    %1571 = vmatpush.bf16.msra.mxu0 %v521
    %1572 = vmatpush.bf16.msra.mxu0 %v517
    %1573 = vmatpush.bf16.msra.mxu0 %v513
    %1574 = vmatpush.bf16.msra.mxu0 %v509
    %1575 = vmatmul.bf16.gmra.mxu0 %v1400
    %v1576 = vpop.f32.mrf.mxu0
    %v1577 = vadd.f32 0.0, %v1576
    %v1578 = vpop.f32.mrf.mxu0
    %1579 = vdwg.mxu0
    %v1580 = vadd.f32 %v237, %v1538
    %v1581 = vadd.f32 %v266, %v1551
    %v1582 = vadd.f32 %v295, %v1564
    %v1583 = vadd.f32 %v324, %v1577
    %v1584 = vmul.f32 %v1580, 0.5
    %v1585 = vtanh.pop %v1584
    %v1586 = vmul.f32 %v1585, 0.5
    %v1587 = vadd.f32 %v1586, 0.5
    %v1588 = vmul.f32 %v1581, 0.5
    %v1589 = vtanh.pop %v1588
    %v1590 = vmul.f32 %v1589, 0.5
    %v1591 = vadd.f32 %v1590, 0.5
    %v1592 = vtanh.pop %v1582
    %v1593 = vmul.f32 %v1583, 0.5
    %v1594 = vtanh.pop %v1593
    %v1595 = vmul.f32 %v1594, 0.5
    %v1596 = vadd.f32 %v1595, 0.5
    %v1597 = vmul.f32 %v1591, %v1397
    %v1598 = vmul.f32 %v1587, %v1592
    %v1599 = vadd.f32 %v1597, %v1598
    %v1600 = vtanh.pop %v1599
    %v1601 = vmul.f32 %v1596, %v1600
    %v1602 = vpack.c.bf16 %v1601, %v1601
    %1603 = vmatpush.bf16.msra.mxu0 %v801
    %1604 = vmatpush.bf16.msra.mxu0 %v797
    %1605 = vmatpush.bf16.msra.mxu0 %v793
    %1606 = vmatpush.bf16.msra.mxu0 %v789
    %1607 = vmatpush.bf16.msra.mxu0 %v785
    %1608 = vmatpush.bf16.msra.mxu0 %v781
    %1609 = vmatpush.bf16.msra.mxu0 %v777
    %1610 = vmatpush.bf16.msra.mxu0 %v773
    %1611 = vmatmul.bf16.gmra.mxu0 %v1602
    %v1612 = vpop.f32.mrf.mxu0
    %v1613 = vadd.f32 0.0, %v1612
    %v1614 = vpop.f32.mrf.mxu0
    %1615 = vdwg.mxu0
    %1616 = vmatpush.bf16.msra.mxu0 %v802
    %1617 = vmatpush.bf16.msra.mxu0 %v798
    %1618 = vmatpush.bf16.msra.mxu0 %v794
    %1619 = vmatpush.bf16.msra.mxu0 %v790
    %1620 = vmatpush.bf16.msra.mxu0 %v786
    %1621 = vmatpush.bf16.msra.mxu0 %v782
    %1622 = vmatpush.bf16.msra.mxu0 %v778
    %1623 = vmatpush.bf16.msra.mxu0 %v774
    %1624 = vmatmul.bf16.gmra.mxu0 %v1602
    %v1625 = vpop.f32.mrf.mxu0
    %v1626 = vadd.f32 0.0, %v1625
    %v1627 = vpop.f32.mrf.mxu0
    %1628 = vdwg.mxu0
    %1629 = vmatpush.bf16.msra.mxu0 %v803
    %1630 = vmatpush.bf16.msra.mxu0 %v799
    %1631 = vmatpush.bf16.msra.mxu0 %v795
    %1632 = vmatpush.bf16.msra.mxu0 %v791
    %1633 = vmatpush.bf16.msra.mxu0 %v787
    %1634 = vmatpush.bf16.msra.mxu0 %v783
    %1635 = vmatpush.bf16.msra.mxu0 %v779
    %1636 = vmatpush.bf16.msra.mxu0 %v775
    %1637 = vmatmul.bf16.gmra.mxu0 %v1602
    %v1638 = vpop.f32.mrf.mxu0
    %v1639 = vadd.f32 0.0, %v1638
    %v1640 = vpop.f32.mrf.mxu0
    %1641 = vdwg.mxu0
    %1642 = vmatpush.bf16.msra.mxu0 %v804
    %1643 = vmatpush.bf16.msra.mxu0 %v800
    %1644 = vmatpush.bf16.msra.mxu0 %v796
    %1645 = vmatpush.bf16.msra.mxu0 %v792
    %1646 = vmatpush.bf16.msra.mxu0 %v788
    %1647 = vmatpush.bf16.msra.mxu0 %v784
    %1648 = vmatpush.bf16.msra.mxu0 %v780
    %1649 = vmatpush.bf16.msra.mxu0 %v776
    %1650 = vmatmul.bf16.gmra.mxu0 %v1602
    %v1651 = vpop.f32.mrf.mxu0
    %v1652 = vadd.f32 0.0, %v1651
    %v1653 = vpop.f32.mrf.mxu0
    %1654 = vdwg.mxu0
    %1655 = vmatpush.bf16.msra.mxu0 %v1013
    %1656 = vmatpush.bf16.msra.mxu0 %v1009
    %1657 = vmatpush.bf16.msra.mxu0 %v1005
    %1658 = vmatpush.bf16.msra.mxu0 %v1001
    %1659 = vmatpush.bf16.msra.mxu0 %v997
    %1660 = vmatpush.bf16.msra.mxu0 %v993
    %1661 = vmatpush.bf16.msra.mxu0 %v989
    %1662 = vmatpush.bf16.msra.mxu0 %v985
    %1663 = vmatmul.bf16.gmra.mxu0 %v1527
    %v1664 = vpop.f32.mrf.mxu0
    %v1665 = vadd.f32 %v1613, %v1664
    %v1666 = vpop.f32.mrf.mxu0
    %1667 = vdwg.mxu0
    %1668 = vmatpush.bf16.msra.mxu0 %v1014
    %1669 = vmatpush.bf16.msra.mxu0 %v1010
    %1670 = vmatpush.bf16.msra.mxu0 %v1006
    %1671 = vmatpush.bf16.msra.mxu0 %v1002
    %1672 = vmatpush.bf16.msra.mxu0 %v998
    %1673 = vmatpush.bf16.msra.mxu0 %v994
    %1674 = vmatpush.bf16.msra.mxu0 %v990
    %1675 = vmatpush.bf16.msra.mxu0 %v986
    %1676 = vmatmul.bf16.gmra.mxu0 %v1527
    %v1677 = vpop.f32.mrf.mxu0
    %v1678 = vadd.f32 %v1626, %v1677
    %v1679 = vpop.f32.mrf.mxu0
    %1680 = vdwg.mxu0
    %1681 = vmatpush.bf16.msra.mxu0 %v1015
    %1682 = vmatpush.bf16.msra.mxu0 %v1011
    %1683 = vmatpush.bf16.msra.mxu0 %v1007
    %1684 = vmatpush.bf16.msra.mxu0 %v1003
    %1685 = vmatpush.bf16.msra.mxu0 %v999
    %1686 = vmatpush.bf16.msra.mxu0 %v995
    %1687 = vmatpush.bf16.msra.mxu0 %v991
    %1688 = vmatpush.bf16.msra.mxu0 %v987
    %1689 = vmatmul.bf16.gmra.mxu0 %v1527
    %v1690 = vpop.f32.mrf.mxu0
    %v1691 = vadd.f32 %v1639, %v1690
    %v1692 = vpop.f32.mrf.mxu0
    %1693 = vdwg.mxu0
    %1694 = vmatpush.bf16.msra.mxu0 %v1016
    %1695 = vmatpush.bf16.msra.mxu0 %v1012
    %1696 = vmatpush.bf16.msra.mxu0 %v1008
    %1697 = vmatpush.bf16.msra.mxu0 %v1004
    %1698 = vmatpush.bf16.msra.mxu0 %v1000
    %1699 = vmatpush.bf16.msra.mxu0 %v996
    %1700 = vmatpush.bf16.msra.mxu0 %v992
    %1701 = vmatpush.bf16.msra.mxu0 %v988
    %1702 = vmatmul.bf16.gmra.mxu0 %v1527
    %v1703 = vpop.f32.mrf.mxu0
    %v1704 = vadd.f32 %v1652, %v1703
    %v1705 = vpop.f32.mrf.mxu0
    %1706 = vdwg.mxu0
    %v1707 = vadd.f32 %v1665, %v338
    %v1708 = vadd.f32 %v1678, %v339
    %v1709 = vadd.f32 %v1691, %v340
    %v1710 = vadd.f32 %v1704, %v341
    %v1711 = vmul.f32 %v1707, 0.5
    %v1712 = vtanh.pop %v1711
    %v1713 = vmul.f32 %v1712, 0.5
    %v1714 = vadd.f32 %v1713, 0.5
    %v1715 = vmul.f32 %v1708, 0.5
    %v1716 = vtanh.pop %v1715
    %v1717 = vmul.f32 %v1716, 0.5
    %v1718 = vadd.f32 %v1717, 0.5
    %v1719 = vtanh.pop %v1709
    %v1720 = vmul.f32 %v1710, 0.5
    %v1721 = vtanh.pop %v1720
    %v1722 = vmul.f32 %v1721, 0.5
    %v1723 = vadd.f32 %v1722, 0.5
    %v1724 = vmul.f32 %v1718, %v1524
    %v1725 = vmul.f32 %v1714, %v1719
    %v1726 = vadd.f32 %v1724, %v1725
    %v1727 = vtanh.pop %v1726
    %v1728 = vmul.f32 %v1723, %v1727
    %v1729 = vpack.c.bf16 %v1728, %v1728
    %1730 = vmatpush.bf16.msra.mxu0 %v534
    %1731 = vmatpush.bf16.msra.mxu0 %v530
    %1732 = vmatpush.bf16.msra.mxu0 %v526
    %1733 = vmatpush.bf16.msra.mxu0 %v522
    %1734 = vmatpush.bf16.msra.mxu0 %v518
    %1735 = vmatpush.bf16.msra.mxu0 %v514
    %1736 = vmatpush.bf16.msra.mxu0 %v510
    %1737 = vmatpush.bf16.msra.mxu0 %v506
    %1738 = vmatmul.bf16.gmra.mxu0 %v1602
    %v1739 = vpop.f32.mrf.mxu0
    %v1740 = vadd.f32 0.0, %v1739
    %v1741 = vpop.f32.mrf.mxu0
    %1742 = vdwg.mxu0
    %1743 = vmatpush.bf16.msra.mxu0 %v535
    %1744 = vmatpush.bf16.msra.mxu0 %v531
    %1745 = vmatpush.bf16.msra.mxu0 %v527
    %1746 = vmatpush.bf16.msra.mxu0 %v523
    %1747 = vmatpush.bf16.msra.mxu0 %v519
    %1748 = vmatpush.bf16.msra.mxu0 %v515
    %1749 = vmatpush.bf16.msra.mxu0 %v511
    %1750 = vmatpush.bf16.msra.mxu0 %v507
    %1751 = vmatmul.bf16.gmra.mxu0 %v1602
    %v1752 = vpop.f32.mrf.mxu0
    %v1753 = vadd.f32 0.0, %v1752
    %v1754 = vpop.f32.mrf.mxu0
    %1755 = vdwg.mxu0
    %1756 = vmatpush.bf16.msra.mxu0 %v536
    %1757 = vmatpush.bf16.msra.mxu0 %v532
    %1758 = vmatpush.bf16.msra.mxu0 %v528
    %1759 = vmatpush.bf16.msra.mxu0 %v524
    %1760 = vmatpush.bf16.msra.mxu0 %v520
    %1761 = vmatpush.bf16.msra.mxu0 %v516
    %1762 = vmatpush.bf16.msra.mxu0 %v512
    %1763 = vmatpush.bf16.msra.mxu0 %v508
    %1764 = vmatmul.bf16.gmra.mxu0 %v1602
    %v1765 = vpop.f32.mrf.mxu0
    %v1766 = vadd.f32 0.0, %v1765
    %v1767 = vpop.f32.mrf.mxu0
    %1768 = vdwg.mxu0
    %1769 = vmatpush.bf16.msra.mxu0 %v537
    %1770 = vmatpush.bf16.msra.mxu0 %v533
    %1771 = vmatpush.bf16.msra.mxu0 %v529
    %1772 = vmatpush.bf16.msra.mxu0 %v525
    %1773 = vmatpush.bf16.msra.mxu0 %v521
    %1774 = vmatpush.bf16.msra.mxu0 %v517
    %1775 = vmatpush.bf16.msra.mxu0 %v513
    %1776 = vmatpush.bf16.msra.mxu0 %v509
    %1777 = vmatmul.bf16.gmra.mxu0 %v1602
    %v1778 = vpop.f32.mrf.mxu0
    %v1779 = vadd.f32 0.0, %v1778
    %v1780 = vpop.f32.mrf.mxu0
    %1781 = vdwg.mxu0
    %v1782 = vadd.f32 %v240, %v1740
    %v1783 = vadd.f32 %v269, %v1753
    %v1784 = vadd.f32 %v298, %v1766
    %v1785 = vadd.f32 %v327, %v1779
    %v1786 = vmul.f32 %v1782, 0.5
    %v1787 = vtanh.pop %v1786
    %v1788 = vmul.f32 %v1787, 0.5
    %v1789 = vadd.f32 %v1788, 0.5
    %v1790 = vmul.f32 %v1783, 0.5
    %v1791 = vtanh.pop %v1790
    %v1792 = vmul.f32 %v1791, 0.5
    %v1793 = vadd.f32 %v1792, 0.5
    %v1794 = vtanh.pop %v1784
    %v1795 = vmul.f32 %v1785, 0.5
    %v1796 = vtanh.pop %v1795
    %v1797 = vmul.f32 %v1796, 0.5
    %v1798 = vadd.f32 %v1797, 0.5
    %v1799 = vmul.f32 %v1793, %v1599
    %v1800 = vmul.f32 %v1789, %v1794
    %v1801 = vadd.f32 %v1799, %v1800
    %v1802 = vtanh.pop %v1801
    %v1803 = vmul.f32 %v1798, %v1802
    %v1804 = vpack.c.bf16 %v1803, %v1803
    %1805 = vmatpush.bf16.msra.mxu0 %v801
    %1806 = vmatpush.bf16.msra.mxu0 %v797
    %1807 = vmatpush.bf16.msra.mxu0 %v793
    %1808 = vmatpush.bf16.msra.mxu0 %v789
    %1809 = vmatpush.bf16.msra.mxu0 %v785
    %1810 = vmatpush.bf16.msra.mxu0 %v781
    %1811 = vmatpush.bf16.msra.mxu0 %v777
    %1812 = vmatpush.bf16.msra.mxu0 %v773
    %1813 = vmatmul.bf16.gmra.mxu0 %v1804
    %v1814 = vpop.f32.mrf.mxu0
    %v1815 = vadd.f32 0.0, %v1814
    %v1816 = vpop.f32.mrf.mxu0
    %1817 = vdwg.mxu0
    %1818 = vmatpush.bf16.msra.mxu0 %v802
    %1819 = vmatpush.bf16.msra.mxu0 %v798
    %1820 = vmatpush.bf16.msra.mxu0 %v794
    %1821 = vmatpush.bf16.msra.mxu0 %v790
    %1822 = vmatpush.bf16.msra.mxu0 %v786
    %1823 = vmatpush.bf16.msra.mxu0 %v782
    %1824 = vmatpush.bf16.msra.mxu0 %v778
    %1825 = vmatpush.bf16.msra.mxu0 %v774
    %1826 = vmatmul.bf16.gmra.mxu0 %v1804
    %v1827 = vpop.f32.mrf.mxu0
    %v1828 = vadd.f32 0.0, %v1827
    %v1829 = vpop.f32.mrf.mxu0
    %1830 = vdwg.mxu0
    %1831 = vmatpush.bf16.msra.mxu0 %v803
    %1832 = vmatpush.bf16.msra.mxu0 %v799
    %1833 = vmatpush.bf16.msra.mxu0 %v795
    %1834 = vmatpush.bf16.msra.mxu0 %v791
    %1835 = vmatpush.bf16.msra.mxu0 %v787
    %1836 = vmatpush.bf16.msra.mxu0 %v783
    %1837 = vmatpush.bf16.msra.mxu0 %v779
    %1838 = vmatpush.bf16.msra.mxu0 %v775
    %1839 = vmatmul.bf16.gmra.mxu0 %v1804
    %v1840 = vpop.f32.mrf.mxu0
    %v1841 = vadd.f32 0.0, %v1840
    %v1842 = vpop.f32.mrf.mxu0
    %1843 = vdwg.mxu0
    %1844 = vmatpush.bf16.msra.mxu0 %v804
    %1845 = vmatpush.bf16.msra.mxu0 %v800
    %1846 = vmatpush.bf16.msra.mxu0 %v796
    %1847 = vmatpush.bf16.msra.mxu0 %v792
    %1848 = vmatpush.bf16.msra.mxu0 %v788
    %1849 = vmatpush.bf16.msra.mxu0 %v784
    %1850 = vmatpush.bf16.msra.mxu0 %v780
    %1851 = vmatpush.bf16.msra.mxu0 %v776
    %1852 = vmatmul.bf16.gmra.mxu0 %v1804
    %v1853 = vpop.f32.mrf.mxu0
    %v1854 = vadd.f32 0.0, %v1853
    %v1855 = vpop.f32.mrf.mxu0
    %1856 = vdwg.mxu0
    %1857 = vmatpush.bf16.msra.mxu0 %v1013
    %1858 = vmatpush.bf16.msra.mxu0 %v1009
    %1859 = vmatpush.bf16.msra.mxu0 %v1005
    %1860 = vmatpush.bf16.msra.mxu0 %v1001
    %1861 = vmatpush.bf16.msra.mxu0 %v997
    %1862 = vmatpush.bf16.msra.mxu0 %v993
    %1863 = vmatpush.bf16.msra.mxu0 %v989
    %1864 = vmatpush.bf16.msra.mxu0 %v985
    %1865 = vmatmul.bf16.gmra.mxu0 %v1729
    %v1866 = vpop.f32.mrf.mxu0
    %v1867 = vadd.f32 %v1815, %v1866
    %v1868 = vpop.f32.mrf.mxu0
    %1869 = vdwg.mxu0
    %1870 = vmatpush.bf16.msra.mxu0 %v1014
    %1871 = vmatpush.bf16.msra.mxu0 %v1010
    %1872 = vmatpush.bf16.msra.mxu0 %v1006
    %1873 = vmatpush.bf16.msra.mxu0 %v1002
    %1874 = vmatpush.bf16.msra.mxu0 %v998
    %1875 = vmatpush.bf16.msra.mxu0 %v994
    %1876 = vmatpush.bf16.msra.mxu0 %v990
    %1877 = vmatpush.bf16.msra.mxu0 %v986
    %1878 = vmatmul.bf16.gmra.mxu0 %v1729
    %v1879 = vpop.f32.mrf.mxu0
    %v1880 = vadd.f32 %v1828, %v1879
    %v1881 = vpop.f32.mrf.mxu0
    %1882 = vdwg.mxu0
    %1883 = vmatpush.bf16.msra.mxu0 %v1015
    %1884 = vmatpush.bf16.msra.mxu0 %v1011
    %1885 = vmatpush.bf16.msra.mxu0 %v1007
    %1886 = vmatpush.bf16.msra.mxu0 %v1003
    %1887 = vmatpush.bf16.msra.mxu0 %v999
    %1888 = vmatpush.bf16.msra.mxu0 %v995
    %1889 = vmatpush.bf16.msra.mxu0 %v991
    %1890 = vmatpush.bf16.msra.mxu0 %v987
    %1891 = vmatmul.bf16.gmra.mxu0 %v1729
    %v1892 = vpop.f32.mrf.mxu0
    %v1893 = vadd.f32 %v1841, %v1892
    %v1894 = vpop.f32.mrf.mxu0
    %1895 = vdwg.mxu0
    %1896 = vmatpush.bf16.msra.mxu0 %v1016
    %1897 = vmatpush.bf16.msra.mxu0 %v1012
    %1898 = vmatpush.bf16.msra.mxu0 %v1008
    %1899 = vmatpush.bf16.msra.mxu0 %v1004
    %1900 = vmatpush.bf16.msra.mxu0 %v1000
    %1901 = vmatpush.bf16.msra.mxu0 %v996
    %1902 = vmatpush.bf16.msra.mxu0 %v992
    %1903 = vmatpush.bf16.msra.mxu0 %v988
    %1904 = vmatmul.bf16.gmra.mxu0 %v1729
    %v1905 = vpop.f32.mrf.mxu0
    %v1906 = vadd.f32 %v1854, %v1905
    %v1907 = vpop.f32.mrf.mxu0
    %1908 = vdwg.mxu0
    %v1909 = vadd.f32 %v1867, %v338
    %v1910 = vadd.f32 %v1880, %v339
    %v1911 = vadd.f32 %v1893, %v340
    %v1912 = vadd.f32 %v1906, %v341
    %v1913 = vmul.f32 %v1909, 0.5
    %v1914 = vtanh.pop %v1913
    %v1915 = vmul.f32 %v1914, 0.5
    %v1916 = vadd.f32 %v1915, 0.5
    %v1917 = vmul.f32 %v1910, 0.5
    %v1918 = vtanh.pop %v1917
    %v1919 = vmul.f32 %v1918, 0.5
    %v1920 = vadd.f32 %v1919, 0.5
    %v1921 = vtanh.pop %v1911
    %v1922 = vmul.f32 %v1912, 0.5
    %v1923 = vtanh.pop %v1922
    %v1924 = vmul.f32 %v1923, 0.5
    %v1925 = vadd.f32 %v1924, 0.5
    %v1926 = vmul.f32 %v1920, %v1726
    %v1927 = vmul.f32 %v1916, %v1921
    %v1928 = vadd.f32 %v1926, %v1927
    %v1929 = vtanh.pop %v1928
    %v1930 = vmul.f32 %v1925, %v1929
    %v1931 = vpack.c.bf16 %v1930, %v1930
    %1932 = vmatpush.bf16.msra.mxu0 %v534
    %1933 = vmatpush.bf16.msra.mxu0 %v530
    %1934 = vmatpush.bf16.msra.mxu0 %v526
    %1935 = vmatpush.bf16.msra.mxu0 %v522
    %1936 = vmatpush.bf16.msra.mxu0 %v518
    %1937 = vmatpush.bf16.msra.mxu0 %v514
    %1938 = vmatpush.bf16.msra.mxu0 %v510
    %1939 = vmatpush.bf16.msra.mxu0 %v506
    %1940 = vmatmul.bf16.gmra.mxu0 %v1804
    %v1941 = vpop.f32.mrf.mxu0
    %v1942 = vadd.f32 0.0, %v1941
    %v1943 = vpop.f32.mrf.mxu0
    %1944 = vdwg.mxu0
    %1945 = vmatpush.bf16.msra.mxu0 %v535
    %1946 = vmatpush.bf16.msra.mxu0 %v531
    %1947 = vmatpush.bf16.msra.mxu0 %v527
    %1948 = vmatpush.bf16.msra.mxu0 %v523
    %1949 = vmatpush.bf16.msra.mxu0 %v519
    %1950 = vmatpush.bf16.msra.mxu0 %v515
    %1951 = vmatpush.bf16.msra.mxu0 %v511
    %1952 = vmatpush.bf16.msra.mxu0 %v507
    %1953 = vmatmul.bf16.gmra.mxu0 %v1804
    %v1954 = vpop.f32.mrf.mxu0
    %v1955 = vadd.f32 0.0, %v1954
    %v1956 = vpop.f32.mrf.mxu0
    %1957 = vdwg.mxu0
    %1958 = vmatpush.bf16.msra.mxu0 %v536
    %1959 = vmatpush.bf16.msra.mxu0 %v532
    %1960 = vmatpush.bf16.msra.mxu0 %v528
    %1961 = vmatpush.bf16.msra.mxu0 %v524
    %1962 = vmatpush.bf16.msra.mxu0 %v520
    %1963 = vmatpush.bf16.msra.mxu0 %v516
    %1964 = vmatpush.bf16.msra.mxu0 %v512
    %1965 = vmatpush.bf16.msra.mxu0 %v508
    %1966 = vmatmul.bf16.gmra.mxu0 %v1804
    %v1967 = vpop.f32.mrf.mxu0
    %v1968 = vadd.f32 0.0, %v1967
    %v1969 = vpop.f32.mrf.mxu0
    %1970 = vdwg.mxu0
    %1971 = vmatpush.bf16.msra.mxu0 %v537
    %1972 = vmatpush.bf16.msra.mxu0 %v533
    %1973 = vmatpush.bf16.msra.mxu0 %v529
    %1974 = vmatpush.bf16.msra.mxu0 %v525
    %1975 = vmatpush.bf16.msra.mxu0 %v521
    %1976 = vmatpush.bf16.msra.mxu0 %v517
    %1977 = vmatpush.bf16.msra.mxu0 %v513
    %1978 = vmatpush.bf16.msra.mxu0 %v509
    %1979 = vmatmul.bf16.gmra.mxu0 %v1804
    %v1980 = vpop.f32.mrf.mxu0
    %v1981 = vadd.f32 0.0, %v1980
    %v1982 = vpop.f32.mrf.mxu0
    %1983 = vdwg.mxu0
    %v1984 = vadd.f32 %v242, %v1942
    %v1985 = vadd.f32 %v271, %v1955
    %v1986 = vadd.f32 %v300, %v1968
    %v1987 = vadd.f32 %v329, %v1981
    %v1988 = vmul.f32 %v1984, 0.5
    %v1989 = vtanh.pop %v1988
    %v1990 = vmul.f32 %v1989, 0.5
    %v1991 = vadd.f32 %v1990, 0.5
    %v1992 = vmul.f32 %v1985, 0.5
    %v1993 = vtanh.pop %v1992
    %v1994 = vmul.f32 %v1993, 0.5
    %v1995 = vadd.f32 %v1994, 0.5
    %v1996 = vtanh.pop %v1986
    %v1997 = vmul.f32 %v1987, 0.5
    %v1998 = vtanh.pop %v1997
    %v1999 = vmul.f32 %v1998, 0.5
    %v2000 = vadd.f32 %v1999, 0.5
    %v2001 = vmul.f32 %v1995, %v1801
    %v2002 = vmul.f32 %v1991, %v1996
    %v2003 = vadd.f32 %v2001, %v2002
    %v2004 = vtanh.pop %v2003
    %v2005 = vmul.f32 %v2000, %v2004
    %v2006 = vpack.c.bf16 %v2005, %v2005
    %2007 = vmatpush.bf16.msra.mxu0 %v801
    %2008 = vmatpush.bf16.msra.mxu0 %v797
    %2009 = vmatpush.bf16.msra.mxu0 %v793
    %2010 = vmatpush.bf16.msra.mxu0 %v789
    %2011 = vmatpush.bf16.msra.mxu0 %v785
    %2012 = vmatpush.bf16.msra.mxu0 %v781
    %2013 = vmatpush.bf16.msra.mxu0 %v777
    %2014 = vmatpush.bf16.msra.mxu0 %v773
    %2015 = vmatmul.bf16.gmra.mxu0 %v2006
    %v2016 = vpop.f32.mrf.mxu0
    %v2017 = vadd.f32 0.0, %v2016
    %v2018 = vpop.f32.mrf.mxu0
    %2019 = vdwg.mxu0
    %2020 = vmatpush.bf16.msra.mxu0 %v802
    %2021 = vmatpush.bf16.msra.mxu0 %v798
    %2022 = vmatpush.bf16.msra.mxu0 %v794
    %2023 = vmatpush.bf16.msra.mxu0 %v790
    %2024 = vmatpush.bf16.msra.mxu0 %v786
    %2025 = vmatpush.bf16.msra.mxu0 %v782
    %2026 = vmatpush.bf16.msra.mxu0 %v778
    %2027 = vmatpush.bf16.msra.mxu0 %v774
    %2028 = vmatmul.bf16.gmra.mxu0 %v2006
    %v2029 = vpop.f32.mrf.mxu0
    %v2030 = vadd.f32 0.0, %v2029
    %v2031 = vpop.f32.mrf.mxu0
    %2032 = vdwg.mxu0
    %2033 = vmatpush.bf16.msra.mxu0 %v803
    %2034 = vmatpush.bf16.msra.mxu0 %v799
    %2035 = vmatpush.bf16.msra.mxu0 %v795
    %2036 = vmatpush.bf16.msra.mxu0 %v791
    %2037 = vmatpush.bf16.msra.mxu0 %v787
    %2038 = vmatpush.bf16.msra.mxu0 %v783
    %2039 = vmatpush.bf16.msra.mxu0 %v779
    %2040 = vmatpush.bf16.msra.mxu0 %v775
    %2041 = vmatmul.bf16.gmra.mxu0 %v2006
    %v2042 = vpop.f32.mrf.mxu0
    %v2043 = vadd.f32 0.0, %v2042
    %v2044 = vpop.f32.mrf.mxu0
    %2045 = vdwg.mxu0
    %2046 = vmatpush.bf16.msra.mxu0 %v804
    %2047 = vmatpush.bf16.msra.mxu0 %v800
    %2048 = vmatpush.bf16.msra.mxu0 %v796
    %2049 = vmatpush.bf16.msra.mxu0 %v792
    %2050 = vmatpush.bf16.msra.mxu0 %v788
    %2051 = vmatpush.bf16.msra.mxu0 %v784
    %2052 = vmatpush.bf16.msra.mxu0 %v780
    %2053 = vmatpush.bf16.msra.mxu0 %v776
    %2054 = vmatmul.bf16.gmra.mxu0 %v2006
    %v2055 = vpop.f32.mrf.mxu0
    %v2056 = vadd.f32 0.0, %v2055
    %v2057 = vpop.f32.mrf.mxu0
    %2058 = vdwg.mxu0
    %2059 = vmatpush.bf16.msra.mxu0 %v1013
    %2060 = vmatpush.bf16.msra.mxu0 %v1009
    %2061 = vmatpush.bf16.msra.mxu0 %v1005
    %2062 = vmatpush.bf16.msra.mxu0 %v1001
    %2063 = vmatpush.bf16.msra.mxu0 %v997
    %2064 = vmatpush.bf16.msra.mxu0 %v993
    %2065 = vmatpush.bf16.msra.mxu0 %v989
    %2066 = vmatpush.bf16.msra.mxu0 %v985
    %2067 = vmatmul.bf16.gmra.mxu0 %v1931
    %v2068 = vpop.f32.mrf.mxu0
    %v2069 = vadd.f32 %v2017, %v2068
    %v2070 = vpop.f32.mrf.mxu0
    %2071 = vdwg.mxu0
    %2072 = vmatpush.bf16.msra.mxu0 %v1014
    %2073 = vmatpush.bf16.msra.mxu0 %v1010
    %2074 = vmatpush.bf16.msra.mxu0 %v1006
    %2075 = vmatpush.bf16.msra.mxu0 %v1002
    %2076 = vmatpush.bf16.msra.mxu0 %v998
    %2077 = vmatpush.bf16.msra.mxu0 %v994
    %2078 = vmatpush.bf16.msra.mxu0 %v990
    %2079 = vmatpush.bf16.msra.mxu0 %v986
    %2080 = vmatmul.bf16.gmra.mxu0 %v1931
    %v2081 = vpop.f32.mrf.mxu0
    %v2082 = vadd.f32 %v2030, %v2081
    %v2083 = vpop.f32.mrf.mxu0
    %2084 = vdwg.mxu0
    %2085 = vmatpush.bf16.msra.mxu0 %v1015
    %2086 = vmatpush.bf16.msra.mxu0 %v1011
    %2087 = vmatpush.bf16.msra.mxu0 %v1007
    %2088 = vmatpush.bf16.msra.mxu0 %v1003
    %2089 = vmatpush.bf16.msra.mxu0 %v999
    %2090 = vmatpush.bf16.msra.mxu0 %v995
    %2091 = vmatpush.bf16.msra.mxu0 %v991
    %2092 = vmatpush.bf16.msra.mxu0 %v987
    %2093 = vmatmul.bf16.gmra.mxu0 %v1931
    %v2094 = vpop.f32.mrf.mxu0
    %v2095 = vadd.f32 %v2043, %v2094
    %v2096 = vpop.f32.mrf.mxu0
    %2097 = vdwg.mxu0
    %2098 = vmatpush.bf16.msra.mxu0 %v1016
    %2099 = vmatpush.bf16.msra.mxu0 %v1012
    %2100 = vmatpush.bf16.msra.mxu0 %v1008
    %2101 = vmatpush.bf16.msra.mxu0 %v1004
    %2102 = vmatpush.bf16.msra.mxu0 %v1000
    %2103 = vmatpush.bf16.msra.mxu0 %v996
    %2104 = vmatpush.bf16.msra.mxu0 %v992
    %2105 = vmatpush.bf16.msra.mxu0 %v988
    %2106 = vmatmul.bf16.gmra.mxu0 %v1931
    %v2107 = vpop.f32.mrf.mxu0
    %v2108 = vadd.f32 %v2056, %v2107
    %v2109 = vpop.f32.mrf.mxu0
    %2110 = vdwg.mxu0
    %v2111 = vadd.f32 %v2069, %v338
    %v2112 = vadd.f32 %v2082, %v339
    %v2113 = vadd.f32 %v2095, %v340
    %v2114 = vadd.f32 %v2108, %v341
    %v2115 = vmul.f32 %v2111, 0.5
    %v2116 = vtanh.pop %v2115
    %v2117 = vmul.f32 %v2116, 0.5
    %v2118 = vadd.f32 %v2117, 0.5
    %v2119 = vmul.f32 %v2112, 0.5
    %v2120 = vtanh.pop %v2119
    %v2121 = vmul.f32 %v2120, 0.5
    %v2122 = vadd.f32 %v2121, 0.5
    %v2123 = vtanh.pop %v2113
    %v2124 = vmul.f32 %v2114, 0.5
    %v2125 = vtanh.pop %v2124
    %v2126 = vmul.f32 %v2125, 0.5
    %v2127 = vadd.f32 %v2126, 0.5
    %v2128 = vmul.f32 %v2122, %v1928
    %v2129 = vmul.f32 %v2118, %v2123
    %v2130 = vadd.f32 %v2128, %v2129
    %v2131 = vtanh.pop %v2130
    %v2132 = vmul.f32 %v2127, %v2131
    %v2133 = vpack.c.bf16 %v2132, %v2132
    %2134 = vmatpush.bf16.msra.mxu0 %v534
    %2135 = vmatpush.bf16.msra.mxu0 %v530
    %2136 = vmatpush.bf16.msra.mxu0 %v526
    %2137 = vmatpush.bf16.msra.mxu0 %v522
    %2138 = vmatpush.bf16.msra.mxu0 %v518
    %2139 = vmatpush.bf16.msra.mxu0 %v514
    %2140 = vmatpush.bf16.msra.mxu0 %v510
    %2141 = vmatpush.bf16.msra.mxu0 %v506
    %2142 = vmatmul.bf16.gmra.mxu0 %v2006
    %v2143 = vpop.f32.mrf.mxu0
    %v2144 = vadd.f32 0.0, %v2143
    %v2145 = vpop.f32.mrf.mxu0
    %2146 = vdwg.mxu0
    %2147 = vmatpush.bf16.msra.mxu0 %v535
    %2148 = vmatpush.bf16.msra.mxu0 %v531
    %2149 = vmatpush.bf16.msra.mxu0 %v527
    %2150 = vmatpush.bf16.msra.mxu0 %v523
    %2151 = vmatpush.bf16.msra.mxu0 %v519
    %2152 = vmatpush.bf16.msra.mxu0 %v515
    %2153 = vmatpush.bf16.msra.mxu0 %v511
    %2154 = vmatpush.bf16.msra.mxu0 %v507
    %2155 = vmatmul.bf16.gmra.mxu0 %v2006
    %v2156 = vpop.f32.mrf.mxu0
    %v2157 = vadd.f32 0.0, %v2156
    %v2158 = vpop.f32.mrf.mxu0
    %2159 = vdwg.mxu0
    %2160 = vmatpush.bf16.msra.mxu0 %v536
    %2161 = vmatpush.bf16.msra.mxu0 %v532
    %2162 = vmatpush.bf16.msra.mxu0 %v528
    %2163 = vmatpush.bf16.msra.mxu0 %v524
    %2164 = vmatpush.bf16.msra.mxu0 %v520
    %2165 = vmatpush.bf16.msra.mxu0 %v516
    %2166 = vmatpush.bf16.msra.mxu0 %v512
    %2167 = vmatpush.bf16.msra.mxu0 %v508
    %2168 = vmatmul.bf16.gmra.mxu0 %v2006
    %v2169 = vpop.f32.mrf.mxu0
    %v2170 = vadd.f32 0.0, %v2169
    %v2171 = vpop.f32.mrf.mxu0
    %2172 = vdwg.mxu0
    %2173 = vmatpush.bf16.msra.mxu0 %v537
    %2174 = vmatpush.bf16.msra.mxu0 %v533
    %2175 = vmatpush.bf16.msra.mxu0 %v529
    %2176 = vmatpush.bf16.msra.mxu0 %v525
    %2177 = vmatpush.bf16.msra.mxu0 %v521
    %2178 = vmatpush.bf16.msra.mxu0 %v517
    %2179 = vmatpush.bf16.msra.mxu0 %v513
    %2180 = vmatpush.bf16.msra.mxu0 %v509
    %2181 = vmatmul.bf16.gmra.mxu0 %v2006
    %v2182 = vpop.f32.mrf.mxu0
    %v2183 = vadd.f32 0.0, %v2182
    %v2184 = vpop.f32.mrf.mxu0
    %2185 = vdwg.mxu0
    %v2186 = vadd.f32 %v245, %v2144
    %v2187 = vadd.f32 %v274, %v2157
    %v2188 = vadd.f32 %v303, %v2170
    %v2189 = vadd.f32 %v332, %v2183
    %v2190 = vmul.f32 %v2186, 0.5
    %v2191 = vtanh.pop %v2190
    %v2192 = vmul.f32 %v2191, 0.5
    %v2193 = vadd.f32 %v2192, 0.5
    %v2194 = vmul.f32 %v2187, 0.5
    %v2195 = vtanh.pop %v2194
    %v2196 = vmul.f32 %v2195, 0.5
    %v2197 = vadd.f32 %v2196, 0.5
    %v2198 = vtanh.pop %v2188
    %v2199 = vmul.f32 %v2189, 0.5
    %v2200 = vtanh.pop %v2199
    %v2201 = vmul.f32 %v2200, 0.5
    %v2202 = vadd.f32 %v2201, 0.5
    %v2203 = vmul.f32 %v2197, %v2003
    %v2204 = vmul.f32 %v2193, %v2198
    %v2205 = vadd.f32 %v2203, %v2204
    %v2206 = vtanh.pop %v2205
    %v2207 = vmul.f32 %v2202, %v2206
    %v2208 = vpack.c.bf16 %v2207, %v2207
    %2209 = vmatpush.bf16.msra.mxu0 %v801
    %2210 = vmatpush.bf16.msra.mxu0 %v797
    %2211 = vmatpush.bf16.msra.mxu0 %v793
    %2212 = vmatpush.bf16.msra.mxu0 %v789
    %2213 = vmatpush.bf16.msra.mxu0 %v785
    %2214 = vmatpush.bf16.msra.mxu0 %v781
    %2215 = vmatpush.bf16.msra.mxu0 %v777
    %2216 = vmatpush.bf16.msra.mxu0 %v773
    %2217 = vmatmul.bf16.gmra.mxu0 %v2208
    %v2218 = vpop.f32.mrf.mxu0
    %v2219 = vadd.f32 0.0, %v2218
    %v2220 = vpop.f32.mrf.mxu0
    %2221 = vdwg.mxu0
    %2222 = vmatpush.bf16.msra.mxu0 %v802
    %2223 = vmatpush.bf16.msra.mxu0 %v798
    %2224 = vmatpush.bf16.msra.mxu0 %v794
    %2225 = vmatpush.bf16.msra.mxu0 %v790
    %2226 = vmatpush.bf16.msra.mxu0 %v786
    %2227 = vmatpush.bf16.msra.mxu0 %v782
    %2228 = vmatpush.bf16.msra.mxu0 %v778
    %2229 = vmatpush.bf16.msra.mxu0 %v774
    %2230 = vmatmul.bf16.gmra.mxu0 %v2208
    %v2231 = vpop.f32.mrf.mxu0
    %v2232 = vadd.f32 0.0, %v2231
    %v2233 = vpop.f32.mrf.mxu0
    %2234 = vdwg.mxu0
    %2235 = vmatpush.bf16.msra.mxu0 %v803
    %2236 = vmatpush.bf16.msra.mxu0 %v799
    %2237 = vmatpush.bf16.msra.mxu0 %v795
    %2238 = vmatpush.bf16.msra.mxu0 %v791
    %2239 = vmatpush.bf16.msra.mxu0 %v787
    %2240 = vmatpush.bf16.msra.mxu0 %v783
    %2241 = vmatpush.bf16.msra.mxu0 %v779
    %2242 = vmatpush.bf16.msra.mxu0 %v775
    %2243 = vmatmul.bf16.gmra.mxu0 %v2208
    %v2244 = vpop.f32.mrf.mxu0
    %v2245 = vadd.f32 0.0, %v2244
    %v2246 = vpop.f32.mrf.mxu0
    %2247 = vdwg.mxu0
    %2248 = vmatpush.bf16.msra.mxu0 %v804
    %2249 = vmatpush.bf16.msra.mxu0 %v800
    %2250 = vmatpush.bf16.msra.mxu0 %v796
    %2251 = vmatpush.bf16.msra.mxu0 %v792
    %2252 = vmatpush.bf16.msra.mxu0 %v788
    %2253 = vmatpush.bf16.msra.mxu0 %v784
    %2254 = vmatpush.bf16.msra.mxu0 %v780
    %2255 = vmatpush.bf16.msra.mxu0 %v776
    %2256 = vmatmul.bf16.gmra.mxu0 %v2208
    %v2257 = vpop.f32.mrf.mxu0
    %v2258 = vadd.f32 0.0, %v2257
    %v2259 = vpop.f32.mrf.mxu0
    %2260 = vdwg.mxu0
    %2261 = vmatpush.bf16.msra.mxu0 %v1013
    %2262 = vmatpush.bf16.msra.mxu0 %v1009
    %2263 = vmatpush.bf16.msra.mxu0 %v1005
    %2264 = vmatpush.bf16.msra.mxu0 %v1001
    %2265 = vmatpush.bf16.msra.mxu0 %v997
    %2266 = vmatpush.bf16.msra.mxu0 %v993
    %2267 = vmatpush.bf16.msra.mxu0 %v989
    %2268 = vmatpush.bf16.msra.mxu0 %v985
    %2269 = vmatmul.bf16.gmra.mxu0 %v2133
    %v2270 = vpop.f32.mrf.mxu0
    %v2271 = vadd.f32 %v2219, %v2270
    %v2272 = vpop.f32.mrf.mxu0
    %2273 = vdwg.mxu0
    %2274 = vmatpush.bf16.msra.mxu0 %v1014
    %2275 = vmatpush.bf16.msra.mxu0 %v1010
    %2276 = vmatpush.bf16.msra.mxu0 %v1006
    %2277 = vmatpush.bf16.msra.mxu0 %v1002
    %2278 = vmatpush.bf16.msra.mxu0 %v998
    %2279 = vmatpush.bf16.msra.mxu0 %v994
    %2280 = vmatpush.bf16.msra.mxu0 %v990
    %2281 = vmatpush.bf16.msra.mxu0 %v986
    %2282 = vmatmul.bf16.gmra.mxu0 %v2133
    %v2283 = vpop.f32.mrf.mxu0
    %v2284 = vadd.f32 %v2232, %v2283
    %v2285 = vpop.f32.mrf.mxu0
    %2286 = vdwg.mxu0
    %2287 = vmatpush.bf16.msra.mxu0 %v1015
    %2288 = vmatpush.bf16.msra.mxu0 %v1011
    %2289 = vmatpush.bf16.msra.mxu0 %v1007
    %2290 = vmatpush.bf16.msra.mxu0 %v1003
    %2291 = vmatpush.bf16.msra.mxu0 %v999
    %2292 = vmatpush.bf16.msra.mxu0 %v995
    %2293 = vmatpush.bf16.msra.mxu0 %v991
    %2294 = vmatpush.bf16.msra.mxu0 %v987
    %2295 = vmatmul.bf16.gmra.mxu0 %v2133
    %v2296 = vpop.f32.mrf.mxu0
    %v2297 = vadd.f32 %v2245, %v2296
    %v2298 = vpop.f32.mrf.mxu0
    %2299 = vdwg.mxu0
    %2300 = vmatpush.bf16.msra.mxu0 %v1016
    %2301 = vmatpush.bf16.msra.mxu0 %v1012
    %2302 = vmatpush.bf16.msra.mxu0 %v1008
    %2303 = vmatpush.bf16.msra.mxu0 %v1004
    %2304 = vmatpush.bf16.msra.mxu0 %v1000
    %2305 = vmatpush.bf16.msra.mxu0 %v996
    %2306 = vmatpush.bf16.msra.mxu0 %v992
    %2307 = vmatpush.bf16.msra.mxu0 %v988
    %2308 = vmatmul.bf16.gmra.mxu0 %v2133
    %v2309 = vpop.f32.mrf.mxu0
    %v2310 = vadd.f32 %v2258, %v2309
    %v2311 = vpop.f32.mrf.mxu0
    %2312 = vdwg.mxu0
    %v2313 = vadd.f32 %v2271, %v338
    %v2314 = vadd.f32 %v2284, %v339
    %v2315 = vadd.f32 %v2297, %v340
    %v2316 = vadd.f32 %v2310, %v341
    %v2317 = vmul.f32 %v2313, 0.5
    %v2318 = vtanh.pop %v2317
    %v2319 = vmul.f32 %v2318, 0.5
    %v2320 = vadd.f32 %v2319, 0.5
    %v2321 = vmul.f32 %v2314, 0.5
    %v2322 = vtanh.pop %v2321
    %v2323 = vmul.f32 %v2322, 0.5
    %v2324 = vadd.f32 %v2323, 0.5
    %v2325 = vtanh.pop %v2315
    %v2326 = vmul.f32 %v2316, 0.5
    %v2327 = vtanh.pop %v2326
    %v2328 = vmul.f32 %v2327, 0.5
    %v2329 = vadd.f32 %v2328, 0.5
    %v2330 = vmul.f32 %v2324, %v2130
    %v2331 = vmul.f32 %v2320, %v2325
    %v2332 = vadd.f32 %v2330, %v2331
    %v2333 = vtanh.pop %v2332
    %v2334 = vmul.f32 %v2329, %v2333
    %v2335 = vpack.c.bf16 %v2334, %v2334
    %2336 = vmatpush.bf16.msra.mxu0 %v534
    %2337 = vmatpush.bf16.msra.mxu0 %v530
    %2338 = vmatpush.bf16.msra.mxu0 %v526
    %2339 = vmatpush.bf16.msra.mxu0 %v522
    %2340 = vmatpush.bf16.msra.mxu0 %v518
    %2341 = vmatpush.bf16.msra.mxu0 %v514
    %2342 = vmatpush.bf16.msra.mxu0 %v510
    %2343 = vmatpush.bf16.msra.mxu0 %v506
    %2344 = vmatmul.bf16.gmra.mxu0 %v2208
    %v2345 = vpop.f32.mrf.mxu0
    %v2346 = vadd.f32 0.0, %v2345
    %v2347 = vpop.f32.mrf.mxu0
    %2348 = vdwg.mxu0
    %2349 = vmatpush.bf16.msra.mxu0 %v535
    %2350 = vmatpush.bf16.msra.mxu0 %v531
    %2351 = vmatpush.bf16.msra.mxu0 %v527
    %2352 = vmatpush.bf16.msra.mxu0 %v523
    %2353 = vmatpush.bf16.msra.mxu0 %v519
    %2354 = vmatpush.bf16.msra.mxu0 %v515
    %2355 = vmatpush.bf16.msra.mxu0 %v511
    %2356 = vmatpush.bf16.msra.mxu0 %v507
    %2357 = vmatmul.bf16.gmra.mxu0 %v2208
    %v2358 = vpop.f32.mrf.mxu0
    %v2359 = vadd.f32 0.0, %v2358
    %v2360 = vpop.f32.mrf.mxu0
    %2361 = vdwg.mxu0
    %2362 = vmatpush.bf16.msra.mxu0 %v536
    %2363 = vmatpush.bf16.msra.mxu0 %v532
    %2364 = vmatpush.bf16.msra.mxu0 %v528
    %2365 = vmatpush.bf16.msra.mxu0 %v524
    %2366 = vmatpush.bf16.msra.mxu0 %v520
    %2367 = vmatpush.bf16.msra.mxu0 %v516
    %2368 = vmatpush.bf16.msra.mxu0 %v512
    %2369 = vmatpush.bf16.msra.mxu0 %v508
    %2370 = vmatmul.bf16.gmra.mxu0 %v2208
    %v2371 = vpop.f32.mrf.mxu0
    %v2372 = vadd.f32 0.0, %v2371
    %v2373 = vpop.f32.mrf.mxu0
    %2374 = vdwg.mxu0
    %2375 = vmatpush.bf16.msra.mxu0 %v537
    %2376 = vmatpush.bf16.msra.mxu0 %v533
    %2377 = vmatpush.bf16.msra.mxu0 %v529
    %2378 = vmatpush.bf16.msra.mxu0 %v525
    %2379 = vmatpush.bf16.msra.mxu0 %v521
    %2380 = vmatpush.bf16.msra.mxu0 %v517
    %2381 = vmatpush.bf16.msra.mxu0 %v513
    %2382 = vmatpush.bf16.msra.mxu0 %v509
    %2383 = vmatmul.bf16.gmra.mxu0 %v2208
    %v2384 = vpop.f32.mrf.mxu0
    %v2385 = vadd.f32 0.0, %v2384
    %v2386 = vpop.f32.mrf.mxu0
    %2387 = vdwg.mxu0
    %v2388 = vadd.f32 %v247, %v2346
    %v2389 = vadd.f32 %v276, %v2359
    %v2390 = vadd.f32 %v305, %v2372
    %v2391 = vadd.f32 %v334, %v2385
    %v2392 = vmul.f32 %v2388, 0.5
    %v2393 = vtanh.pop %v2392
    %v2394 = vmul.f32 %v2393, 0.5
    %v2395 = vadd.f32 %v2394, 0.5
    %v2396 = vmul.f32 %v2389, 0.5
    %v2397 = vtanh.pop %v2396
    %v2398 = vmul.f32 %v2397, 0.5
    %v2399 = vadd.f32 %v2398, 0.5
    %v2400 = vtanh.pop %v2390
    %v2401 = vmul.f32 %v2391, 0.5
    %v2402 = vtanh.pop %v2401
    %v2403 = vmul.f32 %v2402, 0.5
    %v2404 = vadd.f32 %v2403, 0.5
    %v2405 = vmul.f32 %v2399, %v2205
    %v2406 = vmul.f32 %v2395, %v2400
    %v2407 = vadd.f32 %v2405, %v2406
    %v2408 = vtanh.pop %v2407
    %v2409 = vmul.f32 %v2404, %v2408
    %v2410 = vpack.c.bf16 %v2409, %v2409
    %2411 = vmatpush.bf16.msra.mxu0 %v801
    %2412 = vmatpush.bf16.msra.mxu0 %v797
    %2413 = vmatpush.bf16.msra.mxu0 %v793
    %2414 = vmatpush.bf16.msra.mxu0 %v789
    %2415 = vmatpush.bf16.msra.mxu0 %v785
    %2416 = vmatpush.bf16.msra.mxu0 %v781
    %2417 = vmatpush.bf16.msra.mxu0 %v777
    %2418 = vmatpush.bf16.msra.mxu0 %v773
    %2419 = vmatmul.bf16.gmra.mxu0 %v2410
    %v2420 = vpop.f32.mrf.mxu0
    %v2421 = vadd.f32 0.0, %v2420
    %v2422 = vpop.f32.mrf.mxu0
    %2423 = vdwg.mxu0
    %2424 = vmatpush.bf16.msra.mxu0 %v802
    %2425 = vmatpush.bf16.msra.mxu0 %v798
    %2426 = vmatpush.bf16.msra.mxu0 %v794
    %2427 = vmatpush.bf16.msra.mxu0 %v790
    %2428 = vmatpush.bf16.msra.mxu0 %v786
    %2429 = vmatpush.bf16.msra.mxu0 %v782
    %2430 = vmatpush.bf16.msra.mxu0 %v778
    %2431 = vmatpush.bf16.msra.mxu0 %v774
    %2432 = vmatmul.bf16.gmra.mxu0 %v2410
    %v2433 = vpop.f32.mrf.mxu0
    %v2434 = vadd.f32 0.0, %v2433
    %v2435 = vpop.f32.mrf.mxu0
    %2436 = vdwg.mxu0
    %2437 = vmatpush.bf16.msra.mxu0 %v803
    %2438 = vmatpush.bf16.msra.mxu0 %v799
    %2439 = vmatpush.bf16.msra.mxu0 %v795
    %2440 = vmatpush.bf16.msra.mxu0 %v791
    %2441 = vmatpush.bf16.msra.mxu0 %v787
    %2442 = vmatpush.bf16.msra.mxu0 %v783
    %2443 = vmatpush.bf16.msra.mxu0 %v779
    %2444 = vmatpush.bf16.msra.mxu0 %v775
    %2445 = vmatmul.bf16.gmra.mxu0 %v2410
    %v2446 = vpop.f32.mrf.mxu0
    %v2447 = vadd.f32 0.0, %v2446
    %v2448 = vpop.f32.mrf.mxu0
    %2449 = vdwg.mxu0
    %2450 = vmatpush.bf16.msra.mxu0 %v804
    %2451 = vmatpush.bf16.msra.mxu0 %v800
    %2452 = vmatpush.bf16.msra.mxu0 %v796
    %2453 = vmatpush.bf16.msra.mxu0 %v792
    %2454 = vmatpush.bf16.msra.mxu0 %v788
    %2455 = vmatpush.bf16.msra.mxu0 %v784
    %2456 = vmatpush.bf16.msra.mxu0 %v780
    %2457 = vmatpush.bf16.msra.mxu0 %v776
    %2458 = vmatmul.bf16.gmra.mxu0 %v2410
    %v2459 = vpop.f32.mrf.mxu0
    %v2460 = vadd.f32 0.0, %v2459
    %v2461 = vpop.f32.mrf.mxu0
    %2462 = vdwg.mxu0
    %2463 = vmatpush.bf16.msra.mxu0 %v1013
    %2464 = vmatpush.bf16.msra.mxu0 %v1009
    %2465 = vmatpush.bf16.msra.mxu0 %v1005
    %2466 = vmatpush.bf16.msra.mxu0 %v1001
    %2467 = vmatpush.bf16.msra.mxu0 %v997
    %2468 = vmatpush.bf16.msra.mxu0 %v993
    %2469 = vmatpush.bf16.msra.mxu0 %v989
    %2470 = vmatpush.bf16.msra.mxu0 %v985
    %2471 = vmatmul.bf16.gmra.mxu0 %v2335
    %v2472 = vpop.f32.mrf.mxu0
    %v2473 = vadd.f32 %v2421, %v2472
    %v2474 = vpop.f32.mrf.mxu0
    %2475 = vdwg.mxu0
    %2476 = vmatpush.bf16.msra.mxu0 %v1014
    %2477 = vmatpush.bf16.msra.mxu0 %v1010
    %2478 = vmatpush.bf16.msra.mxu0 %v1006
    %2479 = vmatpush.bf16.msra.mxu0 %v1002
    %2480 = vmatpush.bf16.msra.mxu0 %v998
    %2481 = vmatpush.bf16.msra.mxu0 %v994
    %2482 = vmatpush.bf16.msra.mxu0 %v990
    %2483 = vmatpush.bf16.msra.mxu0 %v986
    %2484 = vmatmul.bf16.gmra.mxu0 %v2335
    %v2485 = vpop.f32.mrf.mxu0
    %v2486 = vadd.f32 %v2434, %v2485
    %v2487 = vpop.f32.mrf.mxu0
    %2488 = vdwg.mxu0
    %2489 = vmatpush.bf16.msra.mxu0 %v1015
    %2490 = vmatpush.bf16.msra.mxu0 %v1011
    %2491 = vmatpush.bf16.msra.mxu0 %v1007
    %2492 = vmatpush.bf16.msra.mxu0 %v1003
    %2493 = vmatpush.bf16.msra.mxu0 %v999
    %2494 = vmatpush.bf16.msra.mxu0 %v995
    %2495 = vmatpush.bf16.msra.mxu0 %v991
    %2496 = vmatpush.bf16.msra.mxu0 %v987
    %2497 = vmatmul.bf16.gmra.mxu0 %v2335
    %v2498 = vpop.f32.mrf.mxu0
    %v2499 = vadd.f32 %v2447, %v2498
    %v2500 = vpop.f32.mrf.mxu0
    %2501 = vdwg.mxu0
    %2502 = vmatpush.bf16.msra.mxu0 %v1016
    %2503 = vmatpush.bf16.msra.mxu0 %v1012
    %2504 = vmatpush.bf16.msra.mxu0 %v1008
    %2505 = vmatpush.bf16.msra.mxu0 %v1004
    %2506 = vmatpush.bf16.msra.mxu0 %v1000
    %2507 = vmatpush.bf16.msra.mxu0 %v996
    %2508 = vmatpush.bf16.msra.mxu0 %v992
    %2509 = vmatpush.bf16.msra.mxu0 %v988
    %2510 = vmatmul.bf16.gmra.mxu0 %v2335
    %v2511 = vpop.f32.mrf.mxu0
    %v2512 = vadd.f32 %v2460, %v2511
    %v2513 = vpop.f32.mrf.mxu0
    %2514 = vdwg.mxu0
    %v2515 = vadd.f32 %v2473, %v338
    %v2516 = vadd.f32 %v2486, %v339
    %v2517 = vadd.f32 %v2499, %v340
    %v2518 = vadd.f32 %v2512, %v341
    %v2519 = vmul.f32 %v2515, 0.5
    %v2520 = vtanh.pop %v2519
    %v2521 = vmul.f32 %v2520, 0.5
    %v2522 = vadd.f32 %v2521, 0.5
    %v2523 = vmul.f32 %v2516, 0.5
    %v2524 = vtanh.pop %v2523
    %v2525 = vmul.f32 %v2524, 0.5
    %v2526 = vadd.f32 %v2525, 0.5
    %v2527 = vtanh.pop %v2517
    %v2528 = vmul.f32 %v2518, 0.5
    %v2529 = vtanh.pop %v2528
    %v2530 = vmul.f32 %v2529, 0.5
    %v2531 = vadd.f32 %v2530, 0.5
    %v2532 = vmul.f32 %v2526, %v2332
    %v2533 = vmul.f32 %v2522, %v2527
    %v2534 = vadd.f32 %v2532, %v2533
    %v2535 = vtanh.pop %v2534
    %v2536 = vmul.f32 %v2531, %v2535
    %v2537 = vpack.c.bf16 %v2536, %v2536
    %v2538 = vld [vmem:[#allocation10] sm:$0xf]
    %v2539 = vld [vmem:[#allocation10 + $0x4] sm:$0xf]
    %v2540 = vld [vmem:[#allocation10 + $0x8] sm:$0xf]
    %v2541 = vld [vmem:[#allocation10 + $0xc] sm:$0xf]
    %v2542 = vld [vmem:[#allocation10 + $0x10] sm:$0xf]
    %v2543 = vld [vmem:[#allocation10 + $0x14] sm:$0xf]
    %v2544 = vld [vmem:[#allocation10 + $0x18] sm:$0xf]
    %v2545 = vld [vmem:[#allocation10 + $0x1c] sm:$0xf]
    %v2546 = vld [vmem:[#allocation10 + $0x20] sm:$0xf]
    %v2547 = vld [vmem:[#allocation10 + $0x24] sm:$0xf]
    %v2548 = vld [vmem:[#allocation10 + $0x28] sm:$0xf]
    %v2549 = vld [vmem:[#allocation10 + $0x2c] sm:$0xf]
    %v2550 = vld [vmem:[#allocation10 + $0x30] sm:$0xf]
    %v2551 = vld [vmem:[#allocation10 + $0x34] sm:$0xf]
    %v2552 = vld [vmem:[#allocation10 + $0x38] sm:$0xf]
    %v2553 = vld [vmem:[#allocation10 + $0x3c] sm:$0xf]
    %v2554 = vld [vmem:[%s8] sm:$0x1]
    %v2556 = vperm.slane %v2554, 0
    %v2574 = vunpack.c.l.b16 %v2538
    %v2575 = vunpack.c.l.b16 %v2539
    %v2576 = vunpack.c.l.b16 %v2540
    %v2577 = vunpack.c.l.b16 %v2541
    %v2578 = vunpack.c.l.b16 %v2542
    %v2579 = vunpack.c.l.b16 %v2543
    %v2580 = vunpack.c.l.b16 %v2544
    %v2581 = vunpack.c.l.b16 %v2545
    %v2582 = vunpack.c.l.b16 %v2546
    %v2583 = vunpack.c.l.b16 %v2547
    %v2584 = vunpack.c.l.b16 %v2548
    %v2585 = vunpack.c.l.b16 %v2549
    %v2586 = vunpack.c.l.b16 %v2550
    %v2587 = vunpack.c.l.b16 %v2551
    %v2588 = vunpack.c.l.b16 %v2552
    %v2589 = vunpack.c.l.b16 %v2553
    %v2590 = vpack.c.b16 %v2575, %v2574
    %v2591 = vpack.c.b16 %v2577, %v2576
    %v2592 = vpack.c.b16 %v2579, %v2578
    %v2593 = vpack.c.b16 %v2581, %v2580
    %v2594 = vpack.c.b16 %v2583, %v2582
    %v2595 = vpack.c.b16 %v2585, %v2584
    %v2596 = vpack.c.b16 %v2587, %v2586
    %v2597 = vpack.c.b16 %v2589, %v2588
    %2606 = vmatpush.bf16.msra.mxu0 %v2597
    %2607 = vmatpush.bf16.msra.mxu0 %v2596
    %2608 = vmatpush.bf16.msra.mxu0 %v2595
    %2609 = vmatpush.bf16.msra.mxu0 %v2594
    %2610 = vmatpush.bf16.msra.mxu0 %v2593
    %2611 = vmatpush.bf16.msra.mxu0 %v2592
    %2612 = vmatpush.bf16.msra.mxu0 %v2591
    %2613 = vmatpush.bf16.msra.mxu0 %v2590
    %2614 = vmatmul.bf16.gmra.mxu0 %v2537
    %v2615 = vpop.f32.mrf.mxu0
    %v2616 = vadd.f32 %v2556, %v2615
    %v2617 = vpop.f32.mrf.mxu0
    %2618 = vdwg.mxu0
    %2619 = vst [vmem:[#allocation11] sm:$0xff] %v2616
    // Predicated region
    $region58: #{tpu_custom_call.1} parent=1 // pred_check
      _
    $region59: #{tpu_custom_call.1} parent=1 // pred_check_branch
      %2621 = sbr.rel (0) target = $region61
    $region60: #{tpu_custom_call.1} parent=1 // pred_region
      %2623 = vsyncadd [#allocation4], 0
      %s2625 = sshll.u32 [#allocation11], 4
      %s2626 = int_to_ptr.vmem [resolvable:$true] %s2625
      %s2627 = sshll.u32 %s9, 4
      %s2628 = int_to_ptr.hbm [resolvable:$true] %s2627
      %2630 = dma.vmem_to_hbm [thread:$0]  %s2626, 128, %s2628, [#allocation4]
    $region61: #{tpu_custom_call.1} parent=1 // pred_fallthru
      _
    // Predicated region
    $region62: #{tpu_custom_call.1} parent=1 // pred_check
      _
    $region63: #{tpu_custom_call.1} parent=1 // pred_check_branch
      %2632 = sbr.rel (0) target = $region65
    $region64: #{tpu_custom_call.1} parent=1 // pred_region
      %2634 = dma.done [#allocation4], 128
    $region65: #{tpu_custom_call.1} parent=1 // pred_fallthru
      _
    %2635 = vsyncpa [#allocation3], 1
    %2636 = vsyncpa [#allocation6], 1
    %2637 = vsyncpa [#allocation9], 1
    %2638 = vsyncpa [#allocation4], 1

</llo_original>
